<compile_context>
chip_gen: v7x
topology: tpu7x:2x2x1
jax: 0.10.0
libtpu: 0.0.40
codegen_flags: <defaults>
</compile_context>

<pallas_src>
import functools

import numpy as np
import jax
import jax.numpy as jnp
from jax import lax
from jax.experimental import pallas as pl
from jax.experimental.pallas import tpu as pltpu

_BN_EPS = 1e-5


# ------------------------------ fused kernel --------------------------------

def _init_stage_g_kernel(ngf, c_ref, fcw_ref, fcs_ref, fcb_ref, mats_ref,
                         cs_ref, cb_ref, sel_ref, o_ref):
    f32 = jnp.float32
    L = 4 * ngf                       # folded lane width (== 128 for ngf=32)

    # --- fc -> BN(eval) -> GLU -> folded 4x4 feature map (4, L) -------------
    c_row = c_ref[0]                                               # (1, in_dim)
    y1 = jnp.dot(c_row, fcw_ref[...], preferred_element_type=f32)  # (1, 8L)
    row_id = lax.broadcasted_iota(jnp.int32, (4, 2 * L), 0)
    zfc = jnp.zeros((4, 2 * L), dtype=f32)
    for i in range(4):                # scatter the (1, 8L) row into 4 rows of 2L lanes
        piece = y1[:, 2 * L * i:2 * L * (i + 1)]                   # (1, 2L)
        zfc = zfc + jnp.where(row_id == i, piece, 0.0)
    zfc = zfc * fcs_ref[...] + fcb_ref[...]
    x = zfc[:, :L] * jax.nn.sigmoid(zfc[:, L:])                    # (4, L)

    # --- 4 x fused [upsample x2 -> conv3x3 -> BN(eval) -> GLU] --------------
    for s in range(4):
        h = 4 * (2 ** s)              # low-res rows of this stage
        a_e = mats_ref[4 * s + 0]     # (L, 2L) weights applied to x[i-1] (even out rows)
        b_e = mats_ref[4 * s + 1]     # (L, 2L) weights applied to x[i]   (even out rows)
        b_o = mats_ref[4 * s + 2]     # (L, 2L) weights applied to x[i]   (odd  out rows)
        a_o = mats_ref[4 * s + 3]     # (L, 2L) weights applied to x[i+1] (odd  out rows)
        scale = cs_ref[s]             # (1, 2L) folded BN scale
        bias = cb_ref[s]              # (1, 2L) folded BN bias

        # +-1 row shifts via tiny 0/1 shift-matrix matmuls (zero rows at the borders)
        ri = lax.broadcasted_iota(jnp.int32, (h, h), 0)
        ci = lax.broadcasted_iota(jnp.int32, (h, h), 1)
        t_dn = (ci == ri - 1).astype(f32)
        t_up = (ci == ri + 1).astype(f32)
        x_dn = jnp.dot(t_dn, x, preferred_element_type=f32)
        x_up = jnp.dot(t_up, x, preferred_element_type=f32)

        z_e = (jnp.dot(x_dn, a_e, preferred_element_type=f32) +
               jnp.dot(x, b_e, preferred_element_type=f32))         # (h, 2L)
        z_o = (jnp.dot(x, b_o, preferred_element_type=f32) +
               jnp.dot(x_up, a_o, preferred_element_type=f32))      # (h, 2L)
        z_e = z_e * scale + bias
        z_o = z_o * scale + bias
        g_e = z_e[:, :L] * jax.nn.sigmoid(z_e[:, L:])               # (h, L) even rows
        g_o = z_o[:, :L] * jax.nn.sigmoid(z_o[:, L:])               # (h, L) odd rows

        # interleave rows: x'[2i] = g_e[i], x'[2i+1] = g_o[i]
        r2 = lax.broadcasted_iota(jnp.int32, (2 * h, h), 0)
        c2 = lax.broadcasted_iota(jnp.int32, (2 * h, h), 1)
        t_even = (2 * c2 == r2).astype(f32)
        t_odd = (2 * c2 + 1 == r2).astype(f32)
        x = (jnp.dot(t_even, g_e, preferred_element_type=f32) +
             jnp.dot(t_odd, g_o, preferred_element_type=f32))       # (2h, L)

    # --- reorder folded lanes to channel-major and store directly as NCHW ----
    c_fin = ngf // 16
    w_fin = L // c_fin                # == 64 == final spatial size
    p = jnp.dot(x, sel_ref[...], preferred_element_type=f32)        # (64, L)
    for c in range(c_fin):
        o_ref[0, c] = p[:, c * w_fin:(c + 1) * w_fin].astype(o_ref.dtype)


# ------------------------------ host wrapper ---------------------------------

def init_stage_g_forward(c_code, packed):
    """Runs the whole INIT_STAGE_G forward in one pallas_call.  Returns NCHW."""
    ngf = packed["ngf"]
    L = 4 * ngf
    c_fin = ngf // 16
    hw = 4 * (2 ** 4)                 # 64
    B, in_dim = c_code.shape

    kernel = functools.partial(_init_stage_g_kernel, ngf)
    return pl.pallas_call(
        kernel,
        out_shape=jax.ShapeDtypeStruct((B, c_fin, hw, hw), jnp.float32),
        grid=(B,),
        in_specs=[
            pl.BlockSpec((1, 1, in_dim), lambda b: (b, 0, 0)),        # c_code
            pl.BlockSpec((in_dim, 8 * L), lambda b: (0, 0)),          # packed fc weights
            pl.BlockSpec((4, 2 * L), lambda b: (0, 0)),               # fc BN scale
            pl.BlockSpec((4, 2 * L), lambda b: (0, 0)),               # fc BN bias
            pl.BlockSpec((16, L, 2 * L), lambda b: (0, 0, 0)),        # folded upsample+conv mats
            pl.BlockSpec((4, 1, 2 * L), lambda b: (0, 0, 0)),         # conv BN scale
            pl.BlockSpec((4, 1, 2 * L), lambda b: (0, 0, 0)),         # conv BN bias
            pl.BlockSpec((L, L), lambda b: (0, 0)),                   # NCHW lane selector
        ],
        out_specs=pl.BlockSpec((1, c_fin, hw, hw), lambda b: (b, 0, 0, 0)),
        compiler_params=pltpu.CompilerParams(
            dimension_semantics=("parallel",)),
    )(
        c_code.reshape(B, 1, in_dim),
        packed["fc_w"], packed["fc_scale"], packed["fc_bias"],
        packed["conv_mats"], packed["conv_scale"], packed["conv_bias"],
        packed["select"],
    )


# --------------------------- parameter synthesis -----------------------------

def _make_bn(key, c):
    k1, k2, k3, k4 = jax.random.split(key, 4)
    return {
        "gamma": 1.0 + 0.1 * jax.random.normal(k1, (c,), jnp.float32),
        "beta": 0.1 * jax.random.normal(k2, (c,), jnp.float32),
        "mean": 0.1 * jax.random.normal(k3, (c,), jnp.float32),
        "var": jax.nn.softplus(jax.random.normal(k4, (c,), jnp.float32)) + 0.5,
    }


def _bn_fold(bn):
    scale = bn["gamma"] / jnp.sqrt(bn["var"] + _BN_EPS)
    bias = bn["beta"] - bn["mean"] * scale
    return scale, bias


def init_native_params(key, in_dim, ngf):
    """Synthesize parameters in the PyTorch-native layouts."""
    assert ngf % 16 == 0
    keys = jax.random.split(key, 16)
    p = {"ngf": ngf}
    fc_out = ngf * 4 * 4 * 2
    p["fc_w"] = 0.08 * jax.random.normal(keys[0], (fc_out, in_dim), jnp.float32)  # (out, in)
    p["fc_bn"] = _make_bn(keys[1], fc_out)
    for s in range(4):
        cin = ngf >> s                # conv3x3(in_planes, 2*out_planes) with 2*out == in
        p[f"up{s}_w"] = 0.08 * jax.random.normal(
            keys[2 + 2 * s], (cin, cin, 3, 3), jnp.float32)          # OIHW
        p[f"up{s}_bn"] = _make_bn(keys[3 + 2 * s], cin)
    return p


# ------------------------ offline packing / folding --------------------------

def pack_params(native):
    """Fold PyTorch-native params into the kernel's lane-dense layouts."""
    ngf = native["ngf"]
    L = 4 * ngf
    packed = {"ngf": ngf}

    # fc: permute the 32*ngf features into the folded (4, 2L) layout.
    # packed column m = i*2L + l;  l < L: l = j*ngf + c -> feature c*16 + i*4 + j  (GLU "a")
    #                              l >= L:              -> feature 16*ngf + ...    (GLU "b")
    half = 16 * ngf
    perm = np.zeros((4, 2 * L), dtype=np.int32)
    for i in range(4):
        for j in range(4):
            for c in range(ngf):
                perm[i, j * ngf + c] = c * 16 + i * 4 + j
                perm[i, L + j * ngf + c] = half + c * 16 + i * 4 + j
    perm_flat = perm.reshape(-1)
    w_t = native["fc_w"].T                       # (in_dim, 32*ngf), y = c_code @ w_t
    packed["fc_w"] = w_t[:, perm_flat]
    fs, fb = _bn_fold(native["fc_bn"])
    packed["fc_scale"] = fs[perm_flat].reshape(4, 2 * L)
    packed["fc_bias"] = fb[perm_flat].reshape(4, 2 * L)

    # up blocks: fold (x2 nearest upsample + conv3x3) into 4 (L, 2L) matrices per stage,
    # with output lanes ordered [GLU-a half (L) | GLU-b half (L)], pixel-major per half.
    mats, scales, biases = [], [], []
    for s in range(4):
        cin = ngf >> s
        cout = cin // 2
        w_lo = L // cin               # low-res width
        w_hi = 2 * w_lo
        wc = np.asarray(native[f"up{s}_w"])      # (2*cout, cin, 3, 3), OIHW

        # U: nearest x2 upsample along width in the folded layout.
        U = np.zeros((w_lo * cin, w_hi * cin), np.float32)
        for j in range(w_lo):
            for c in range(cin):
                U[j * cin + c, (2 * j) * cin + c] = 1.0
                U[j * cin + c, (2 * j + 1) * cin + c] = 1.0

        # M[ky]: 1-D conv along the folded width axis for kernel row ky (zero-padded ends).
        M = np.zeros((3, w_hi * cin, w_hi * cin), np.float32)
        for ky in range(3):
            for kx in range(3):
                blk = wc[:, :, ky, kx].T         # (cin, 2*cout)
                for q in range(w_hi):
                    qp = q + kx - 1
                    if qp < 0 or qp >= w_hi:
                        continue
                    rows = qp * cin + np.arange(cin)
                    cols_a = q * cout + np.arange(cout)
                    cols_b = L + q * cout + np.arange(cout)
                    M[ky][np.ix_(rows, cols_a)] += blk[:, :cout]
                    M[ky][np.ix_(rows, cols_b)] += blk[:, cout:]

        um0, um1, um2 = U @ M[0], U @ M[1], U @ M[2]
        # even output rows use (x[i-1], x[i]); odd output rows use (x[i], x[i+1])
        mats += [um0, um1 + um2, um0 + um1, um2]

        cs, cb = _bn_fold(native[f"up{s}_bn"])
        cs, cb = np.asarray(cs), np.asarray(cb)
        scales.append(np.concatenate(
            [np.tile(cs[:cout], w_hi), np.tile(cs[cout:], w_hi)])[None, :])
        biases.append(np.concatenate(
            [np.tile(cb[:cout], w_hi), np.tile(cb[cout:], w_hi)])[None, :])

    packed["conv_mats"] = jnp.asarray(np.stack(mats, axis=0), jnp.float32)     # (16, L, 2L)
    packed["conv_scale"] = jnp.asarray(np.stack(scales, axis=0), jnp.float32)  # (4, 1, 2L)
    packed["conv_bias"] = jnp.asarray(np.stack(biases, axis=0), jnp.float32)   # (4, 1, 2L)

    # final folded (64, L) -> NCHW lane-reorder matrix
    c_fin = ngf // 16
    w_fin = L // c_fin
    S = np.zeros((L, L), np.float32)
    for j in range(w_fin):
        for c in range(c_fin):
            S[j * c_fin + c, c * w_fin + j] = 1.0
    packed["select"] = jnp.asarray(S)
    return packed


# ------------------------- plain-JAX reference (check) -----------------------

def reference_forward(c_code, native):
    """Eval-mode reference mirroring the PyTorch module (XLA ops only)."""
    ngf = native["ngf"]
    fs, fb = _bn_fold(native["fc_bn"])
    y = jnp.dot(c_code, native["fc_w"].T, precision=lax.Precision.HIGHEST)
    y = y * fs + fb
    half = 16 * ngf
    x = y[:, :half] * jax.nn.sigmoid(y[:, half:])
    x = x.reshape(-1, ngf, 4, 4)
    for s in range(4):
        x = jnp.repeat(jnp.repeat(x, 2, axis=2), 2, axis=3)
        x = lax.conv_general_dilated(
            x, native[f"up{s}_w"], window_strides=(1, 1), padding="SAME",
            dimension_numbers=("NCHW", "OIHW", "NCHW"),
            precision=lax.Precision.HIGHEST)
        cs, cb = _bn_fold(native[f"up{s}_bn"])
        x = x * cs[None, :, None, None] + cb[None, :, None, None]
        c2 = x.shape[1] // 2
        x = x[:, :c2] * jax.nn.sigmoid(x[:, c2:])
    return x


# ----------------------------------- main -------------------------------------

if __name__ == "__main__":
    key = jax.random.PRNGKey(0)
    k_par, k_in = jax.random.split(key)

    Z_DIM, THETA1_DIM = 16, 16          # cfg.GAN.Z_DIM + cfg.TEXT.Theta1_DIMENSION
    in_dim = Z_DIM + THETA1_DIM
    ngf = 32                            # gf_dim -> folded lane width 4*ngf = 128
    B = 2

    native = init_native_params(k_par, in_dim, ngf)
    packed = pack_params(native)
    c_code = jax.random.normal(k_in, (B, in_dim), jnp.float32)

    out = jax.block_until_ready(init_stage_g_forward(c_code, packed))

    expected = (B, ngf // 16, 64, 64)   # (2, 2, 64, 64) in NCHW
    assert out.shape == expected, (out.shape, expected)
    assert bool(jnp.all(jnp.isfinite(out)))

    # sanity-check against the plain-JAX eval-mode reference
    ref = jax.block_until_ready(reference_forward(c_code, native))
    assert bool(jnp.allclose(out, ref, rtol=2e-2, atol=1e-3)), (
        float(jnp.max(jnp.abs(out - ref))))

    print("KERNEL_OK")
</pallas_src>

<mosaic_0001>
module attributes {stable_mosaic.version = 11 : i64} {
  func.func @_init_stage_g_kernel(%arg0: i32, %arg1: memref<1x1x32xf32, #tpu.memory_space<vmem>>, %arg2: memref<32x1024xf32, #tpu.memory_space<vmem>>, %arg3: memref<4x256xf32, #tpu.memory_space<vmem>>, %arg4: memref<4x256xf32, #tpu.memory_space<vmem>>, %arg5: memref<16x128x256xf32, #tpu.memory_space<vmem>>, %arg6: memref<4x1x256xf32, #tpu.memory_space<vmem>>, %arg7: memref<4x1x256xf32, #tpu.memory_space<vmem>>, %arg8: memref<128x128xf32, #tpu.memory_space<vmem>>, %arg9: memref<1x2x64x64xf32, #tpu.memory_space<vmem>>) attributes {dimension_semantics = [#tpu.dimension_semantics<parallel>], iteration_bounds = array<i64: 2>, scalar_prefetch = 0 : i64, scratch_operands = 0 : i64, tpu.core_type = #tpu.core_type<tc>, window_params = [{transform_indices = @transform_0, window_bounds = array<i64: 1, 1, 32>}, {pipeline_mode = #tpu.pipeline_mode<synchronous>, transform_indices = @transform_1, window_bounds = array<i64: 32, 1024>}, {pipeline_mode = #tpu.pipeline_mode<synchronous>, transform_indices = @transform_2, window_bounds = array<i64: 4, 256>}, {pipeline_mode = #tpu.pipeline_mode<synchronous>, transform_indices = @transform_3, window_bounds = array<i64: 4, 256>}, {pipeline_mode = #tpu.pipeline_mode<synchronous>, transform_indices = @transform_4, window_bounds = array<i64: 16, 128, 256>}, {pipeline_mode = #tpu.pipeline_mode<synchronous>, transform_indices = @transform_5, window_bounds = array<i64: 4, 1, 256>}, {pipeline_mode = #tpu.pipeline_mode<synchronous>, transform_indices = @transform_6, window_bounds = array<i64: 4, 1, 256>}, {pipeline_mode = #tpu.pipeline_mode<synchronous>, transform_indices = @transform_7, window_bounds = array<i64: 128, 128>}, {transform_indices = @transform_8, window_bounds = array<i64: 1, 2, 64, 64>}]} {
    %c0 = arith.constant 0 : index
    %c0_0 = arith.constant 0 : index
    %c0_1 = arith.constant 0 : index
    %0 = vector.load %arg1[%c0, %c0_0, %c0_1] : memref<1x1x32xf32, #tpu.memory_space<vmem>>, vector<1x1x32xf32>
    %1 = vector.shape_cast %0 : vector<1x1x32xf32> to vector<1x32xf32>
    %c0_2 = arith.constant 0 : index
    %c0_3 = arith.constant 0 : index
    %2 = vector.load %arg2[%c0_2, %c0_3] : memref<32x1024xf32, #tpu.memory_space<vmem>>, vector<32x1024xf32>
    %cst = arith.constant dense<0.000000e+00> : vector<1x1024xf32>
    %3 = tpu.matmul %1, %2, %cst {dimension_numbers = #tpu.dot_dimension_numbers<[1], [0], [0], [1], [0, 0, 1, 1], [], []>} : vector<1x32xf32>, vector<32x1024xf32>, vector<1x1024xf32> -> vector<1x1024xf32>
    %4 = tpu.iota {dimensions = array<i32: 0>} : vector<4x256xi32>
    %cst_4 = arith.constant 0.000000e+00 : f32
    %5 = vector.broadcast %cst_4 : f32 to vector<4x256xf32>
    %6 = vector.extract_strided_slice %3 {offsets = [0, 0], sizes = [1, 256], strides = [1, 1]} : vector<1x1024xf32> to vector<1x256xf32>
    %c0_i32 = arith.constant 0 : i32
    %7 = vector.broadcast %c0_i32 : i32 to vector<4x256xi32>
    %8 = arith.cmpi eq, %4, %7 : vector<4x256xi32>
    %cst_5 = arith.constant 0.000000e+00 : f32
    %9 = vector.shape_cast %6 : vector<1x256xf32> to vector<1x256xf32>
    %10 = vector.broadcast %9 : vector<1x256xf32> to vector<4x256xf32>
    %11 = vector.broadcast %cst_5 : f32 to vector<4x256xf32>
    %12 = arith.select %8, %10, %11 : vector<4x256xi1>, vector<4x256xf32>
    %13 = arith.addf %5, %12 : vector<4x256xf32>
    %14 = vector.extract_strided_slice %3 {offsets = [0, 256], sizes = [1, 256], strides = [1, 1]} : vector<1x1024xf32> to vector<1x256xf32>
    %c1_i32 = arith.constant 1 : i32
    %15 = vector.broadcast %c1_i32 : i32 to vector<4x256xi32>
    %16 = arith.cmpi eq, %4, %15 : vector<4x256xi32>
    %cst_6 = arith.constant 0.000000e+00 : f32
    %17 = vector.shape_cast %14 : vector<1x256xf32> to vector<1x256xf32>
    %18 = vector.broadcast %17 : vector<1x256xf32> to vector<4x256xf32>
    %19 = vector.broadcast %cst_6 : f32 to vector<4x256xf32>
    %20 = arith.select %16, %18, %19 : vector<4x256xi1>, vector<4x256xf32>
    %21 = arith.addf %13, %20 : vector<4x256xf32>
    %22 = vector.extract_strided_slice %3 {offsets = [0, 512], sizes = [1, 256], strides = [1, 1]} : vector<1x1024xf32> to vector<1x256xf32>
    %c2_i32 = arith.constant 2 : i32
    %23 = vector.broadcast %c2_i32 : i32 to vector<4x256xi32>
    %24 = arith.cmpi eq, %4, %23 : vector<4x256xi32>
    %cst_7 = arith.constant 0.000000e+00 : f32
    %25 = vector.shape_cast %22 : vector<1x256xf32> to vector<1x256xf32>
    %26 = vector.broadcast %25 : vector<1x256xf32> to vector<4x256xf32>
    %27 = vector.broadcast %cst_7 : f32 to vector<4x256xf32>
    %28 = arith.select %24, %26, %27 : vector<4x256xi1>, vector<4x256xf32>
    %29 = arith.addf %21, %28 : vector<4x256xf32>
    %30 = vector.extract_strided_slice %3 {offsets = [0, 768], sizes = [1, 256], strides = [1, 1]} : vector<1x1024xf32> to vector<1x256xf32>
    %c3_i32 = arith.constant 3 : i32
    %31 = vector.broadcast %c3_i32 : i32 to vector<4x256xi32>
    %32 = arith.cmpi eq, %4, %31 : vector<4x256xi32>
    %cst_8 = arith.constant 0.000000e+00 : f32
    %33 = vector.shape_cast %30 : vector<1x256xf32> to vector<1x256xf32>
    %34 = vector.broadcast %33 : vector<1x256xf32> to vector<4x256xf32>
    %35 = vector.broadcast %cst_8 : f32 to vector<4x256xf32>
    %36 = arith.select %32, %34, %35 : vector<4x256xi1>, vector<4x256xf32>
    %37 = arith.addf %29, %36 : vector<4x256xf32>
    %c0_9 = arith.constant 0 : index
    %c0_10 = arith.constant 0 : index
    %38 = vector.load %arg3[%c0_9, %c0_10] : memref<4x256xf32, #tpu.memory_space<vmem>>, vector<4x256xf32>
    %39 = arith.mulf %37, %38 : vector<4x256xf32>
    %c0_11 = arith.constant 0 : index
    %c0_12 = arith.constant 0 : index
    %40 = vector.load %arg4[%c0_11, %c0_12] : memref<4x256xf32, #tpu.memory_space<vmem>>, vector<4x256xf32>
    %41 = arith.addf %39, %40 : vector<4x256xf32>
    %42 = vector.extract_strided_slice %41 {offsets = [0, 0], sizes = [4, 128], strides = [1, 1]} : vector<4x256xf32> to vector<4x128xf32>
    %43 = vector.extract_strided_slice %41 {offsets = [0, 128], sizes = [4, 128], strides = [1, 1]} : vector<4x256xf32> to vector<4x128xf32>
    %44 = arith.negf %43 : vector<4x128xf32>
    %45 = math.exp %44 : vector<4x128xf32>
    %cst_13 = arith.constant 1.000000e+00 : f32
    %46 = vector.broadcast %cst_13 : f32 to vector<4x128xf32>
    %47 = arith.addf %46, %45 : vector<4x128xf32>
    %48 = arith.divf %46, %47 : vector<4x128xf32>
    %49 = arith.mulf %42, %48 : vector<4x128xf32>
    %c0_14 = arith.constant 0 : index
    %c0_15 = arith.constant 0 : index
    %c0_16 = arith.constant 0 : index
    %50 = vector.load %arg5[%c0_14, %c0_15, %c0_16] : memref<16x128x256xf32, #tpu.memory_space<vmem>>, vector<1x128x256xf32>
    %51 = vector.shape_cast %50 : vector<1x128x256xf32> to vector<128x256xf32>
    %c1 = arith.constant 1 : index
    %c0_17 = arith.constant 0 : index
    %c0_18 = arith.constant 0 : index
    %52 = vector.load %arg5[%c1, %c0_17, %c0_18] : memref<16x128x256xf32, #tpu.memory_space<vmem>>, vector<1x128x256xf32>
    %53 = vector.shape_cast %52 : vector<1x128x256xf32> to vector<128x256xf32>
    %c2 = arith.constant 2 : index
    %c0_19 = arith.constant 0 : index
    %c0_20 = arith.constant 0 : index
    %54 = vector.load %arg5[%c2, %c0_19, %c0_20] : memref<16x128x256xf32, #tpu.memory_space<vmem>>, vector<1x128x256xf32>
    %55 = vector.shape_cast %54 : vector<1x128x256xf32> to vector<128x256xf32>
    %c3 = arith.constant 3 : index
    %c0_21 = arith.constant 0 : index
    %c0_22 = arith.constant 0 : index
    %56 = vector.load %arg5[%c3, %c0_21, %c0_22] : memref<16x128x256xf32, #tpu.memory_space<vmem>>, vector<1x128x256xf32>
    %57 = vector.shape_cast %56 : vector<1x128x256xf32> to vector<128x256xf32>
    %c0_23 = arith.constant 0 : index
    %c0_24 = arith.constant 0 : index
    %c0_25 = arith.constant 0 : index
    %58 = vector.load %arg6[%c0_23, %c0_24, %c0_25] : memref<4x1x256xf32, #tpu.memory_space<vmem>>, vector<1x1x256xf32>
    %59 = vector.shape_cast %58 : vector<1x1x256xf32> to vector<1x256xf32>
    %c0_26 = arith.constant 0 : index
    %c0_27 = arith.constant 0 : index
    %c0_28 = arith.constant 0 : index
    %60 = vector.load %arg7[%c0_26, %c0_27, %c0_28] : memref<4x1x256xf32, #tpu.memory_space<vmem>>, vector<1x1x256xf32>
    %61 = vector.shape_cast %60 : vector<1x1x256xf32> to vector<1x256xf32>
    %62 = tpu.iota {dimensions = array<i32: 0>} : vector<4x4xi32>
    %63 = tpu.iota {dimensions = array<i32: 1>} : vector<4x4xi32>
    %c1_i32_29 = arith.constant 1 : i32
    %64 = vector.broadcast %c1_i32_29 : i32 to vector<4x4xi32>
    %65 = arith.subi %62, %64 : vector<4x4xi32>
    %66 = arith.cmpi eq, %63, %65 : vector<4x4xi32>
    %67 = arith.extui %66 : vector<4x4xi1> to vector<4x4xi32>
    %68 = arith.sitofp %67 : vector<4x4xi32> to vector<4x4xf32>
    %c1_i32_30 = arith.constant 1 : i32
    %69 = vector.broadcast %c1_i32_30 : i32 to vector<4x4xi32>
    %70 = arith.addi %62, %69 : vector<4x4xi32>
    %71 = arith.cmpi eq, %63, %70 : vector<4x4xi32>
    %72 = arith.extui %71 : vector<4x4xi1> to vector<4x4xi32>
    %73 = arith.sitofp %72 : vector<4x4xi32> to vector<4x4xf32>
    %cst_31 = arith.constant dense<0.000000e+00> : vector<4x128xf32>
    %74 = tpu.matmul %68, %49, %cst_31 {dimension_numbers = #tpu.dot_dimension_numbers<[1], [0], [0], [1], [0, 0, 1, 1], [], []>} : vector<4x4xf32>, vector<4x128xf32>, vector<4x128xf32> -> vector<4x128xf32>
    %cst_32 = arith.constant dense<0.000000e+00> : vector<4x128xf32>
    %75 = tpu.matmul %73, %49, %cst_32 {dimension_numbers = #tpu.dot_dimension_numbers<[1], [0], [0], [1], [0, 0, 1, 1], [], []>} : vector<4x4xf32>, vector<4x128xf32>, vector<4x128xf32> -> vector<4x128xf32>
    %cst_33 = arith.constant dense<0.000000e+00> : vector<4x256xf32>
    %76 = tpu.matmul %74, %51, %cst_33 {dimension_numbers = #tpu.dot_dimension_numbers<[1], [0], [0], [1], [0, 0, 1, 1], [], []>} : vector<4x128xf32>, vector<128x256xf32>, vector<4x256xf32> -> vector<4x256xf32>
    %cst_34 = arith.constant dense<0.000000e+00> : vector<4x256xf32>
    %77 = tpu.matmul %49, %53, %cst_34 {dimension_numbers = #tpu.dot_dimension_numbers<[1], [0], [0], [1], [0, 0, 1, 1], [], []>} : vector<4x128xf32>, vector<128x256xf32>, vector<4x256xf32> -> vector<4x256xf32>
    %78 = arith.addf %76, %77 : vector<4x256xf32>
    %cst_35 = arith.constant dense<0.000000e+00> : vector<4x256xf32>
    %79 = tpu.matmul %49, %55, %cst_35 {dimension_numbers = #tpu.dot_dimension_numbers<[1], [0], [0], [1], [0, 0, 1, 1], [], []>} : vector<4x128xf32>, vector<128x256xf32>, vector<4x256xf32> -> vector<4x256xf32>
    %cst_36 = arith.constant dense<0.000000e+00> : vector<4x256xf32>
    %80 = tpu.matmul %75, %57, %cst_36 {dimension_numbers = #tpu.dot_dimension_numbers<[1], [0], [0], [1], [0, 0, 1, 1], [], []>} : vector<4x128xf32>, vector<128x256xf32>, vector<4x256xf32> -> vector<4x256xf32>
    %81 = arith.addf %79, %80 : vector<4x256xf32>
    %82 = vector.broadcast %59 : vector<1x256xf32> to vector<4x256xf32>
    %83 = arith.mulf %78, %82 : vector<4x256xf32>
    %84 = vector.broadcast %61 : vector<1x256xf32> to vector<4x256xf32>
    %85 = arith.addf %83, %84 : vector<4x256xf32>
    %86 = vector.broadcast %59 : vector<1x256xf32> to vector<4x256xf32>
    %87 = arith.mulf %81, %86 : vector<4x256xf32>
    %88 = vector.broadcast %61 : vector<1x256xf32> to vector<4x256xf32>
    %89 = arith.addf %87, %88 : vector<4x256xf32>
    %90 = vector.extract_strided_slice %85 {offsets = [0, 0], sizes = [4, 128], strides = [1, 1]} : vector<4x256xf32> to vector<4x128xf32>
    %91 = vector.extract_strided_slice %85 {offsets = [0, 128], sizes = [4, 128], strides = [1, 1]} : vector<4x256xf32> to vector<4x128xf32>
    %92 = arith.negf %91 : vector<4x128xf32>
    %93 = math.exp %92 : vector<4x128xf32>
    %cst_37 = arith.constant 1.000000e+00 : f32
    %94 = vector.broadcast %cst_37 : f32 to vector<4x128xf32>
    %95 = arith.addf %94, %93 : vector<4x128xf32>
    %96 = arith.divf %94, %95 : vector<4x128xf32>
    %97 = arith.mulf %90, %96 : vector<4x128xf32>
    %98 = vector.extract_strided_slice %89 {offsets = [0, 0], sizes = [4, 128], strides = [1, 1]} : vector<4x256xf32> to vector<4x128xf32>
    %99 = vector.extract_strided_slice %89 {offsets = [0, 128], sizes = [4, 128], strides = [1, 1]} : vector<4x256xf32> to vector<4x128xf32>
    %100 = arith.negf %99 : vector<4x128xf32>
    %101 = math.exp %100 : vector<4x128xf32>
    %cst_38 = arith.constant 1.000000e+00 : f32
    %102 = vector.broadcast %cst_38 : f32 to vector<4x128xf32>
    %103 = arith.addf %102, %101 : vector<4x128xf32>
    %104 = arith.divf %102, %103 : vector<4x128xf32>
    %105 = arith.mulf %98, %104 : vector<4x128xf32>
    %106 = tpu.iota {dimensions = array<i32: 0>} : vector<8x4xi32>
    %107 = tpu.iota {dimensions = array<i32: 1>} : vector<8x4xi32>
    %c2_i32_39 = arith.constant 2 : i32
    %108 = vector.broadcast %c2_i32_39 : i32 to vector<8x4xi32>
    %109 = arith.muli %108, %107 : vector<8x4xi32>
    %110 = arith.cmpi eq, %109, %106 : vector<8x4xi32>
    %111 = arith.extui %110 : vector<8x4xi1> to vector<8x4xi32>
    %112 = arith.sitofp %111 : vector<8x4xi32> to vector<8x4xf32>
    %c2_i32_40 = arith.constant 2 : i32
    %113 = vector.broadcast %c2_i32_40 : i32 to vector<8x4xi32>
    %114 = arith.muli %113, %107 : vector<8x4xi32>
    %c1_i32_41 = arith.constant 1 : i32
    %115 = vector.broadcast %c1_i32_41 : i32 to vector<8x4xi32>
    %116 = arith.addi %114, %115 : vector<8x4xi32>
    %117 = arith.cmpi eq, %116, %106 : vector<8x4xi32>
    %118 = arith.extui %117 : vector<8x4xi1> to vector<8x4xi32>
    %119 = arith.sitofp %118 : vector<8x4xi32> to vector<8x4xf32>
    %cst_42 = arith.constant dense<0.000000e+00> : vector<8x128xf32>
    %120 = tpu.matmul %112, %97, %cst_42 {dimension_numbers = #tpu.dot_dimension_numbers<[1], [0], [0], [1], [0, 0, 1, 1], [], []>} : vector<8x4xf32>, vector<4x128xf32>, vector<8x128xf32> -> vector<8x128xf32>
    %cst_43 = arith.constant dense<0.000000e+00> : vector<8x128xf32>
    %121 = tpu.matmul %119, %105, %cst_43 {dimension_numbers = #tpu.dot_dimension_numbers<[1], [0], [0], [1], [0, 0, 1, 1], [], []>} : vector<8x4xf32>, vector<4x128xf32>, vector<8x128xf32> -> vector<8x128xf32>
    %122 = arith.addf %120, %121 : vector<8x128xf32>
    %c4 = arith.constant 4 : index
    %c0_44 = arith.constant 0 : index
    %c0_45 = arith.constant 0 : index
    %123 = vector.load %arg5[%c4, %c0_44, %c0_45] : memref<16x128x256xf32, #tpu.memory_space<vmem>>, vector<1x128x256xf32>
    %124 = vector.shape_cast %123 : vector<1x128x256xf32> to vector<128x256xf32>
    %c5 = arith.constant 5 : index
    %c0_46 = arith.constant 0 : index
    %c0_47 = arith.constant 0 : index
    %125 = vector.load %arg5[%c5, %c0_46, %c0_47] : memref<16x128x256xf32, #tpu.memory_space<vmem>>, vector<1x128x256xf32>
    %126 = vector.shape_cast %125 : vector<1x128x256xf32> to vector<128x256xf32>
    %c6 = arith.constant 6 : index
    %c0_48 = arith.constant 0 : index
    %c0_49 = arith.constant 0 : index
    %127 = vector.load %arg5[%c6, %c0_48, %c0_49] : memref<16x128x256xf32, #tpu.memory_space<vmem>>, vector<1x128x256xf32>
    %128 = vector.shape_cast %127 : vector<1x128x256xf32> to vector<128x256xf32>
    %c7 = arith.constant 7 : index
    %c0_50 = arith.constant 0 : index
    %c0_51 = arith.constant 0 : index
    %129 = vector.load %arg5[%c7, %c0_50, %c0_51] : memref<16x128x256xf32, #tpu.memory_space<vmem>>, vector<1x128x256xf32>
    %130 = vector.shape_cast %129 : vector<1x128x256xf32> to vector<128x256xf32>
    %c1_52 = arith.constant 1 : index
    %c0_53 = arith.constant 0 : index
    %c0_54 = arith.constant 0 : index
    %131 = vector.load %arg6[%c1_52, %c0_53, %c0_54] : memref<4x1x256xf32, #tpu.memory_space<vmem>>, vector<1x1x256xf32>
    %132 = vector.shape_cast %131 : vector<1x1x256xf32> to vector<1x256xf32>
    %c1_55 = arith.constant 1 : index
    %c0_56 = arith.constant 0 : index
    %c0_57 = arith.constant 0 : index
    %133 = vector.load %arg7[%c1_55, %c0_56, %c0_57] : memref<4x1x256xf32, #tpu.memory_space<vmem>>, vector<1x1x256xf32>
    %134 = vector.shape_cast %133 : vector<1x1x256xf32> to vector<1x256xf32>
    %135 = tpu.iota {dimensions = array<i32: 0>} : vector<8x8xi32>
    %136 = tpu.iota {dimensions = array<i32: 1>} : vector<8x8xi32>
    %c1_i32_58 = arith.constant 1 : i32
    %137 = vector.broadcast %c1_i32_58 : i32 to vector<8x8xi32>
    %138 = arith.subi %135, %137 : vector<8x8xi32>
    %139 = arith.cmpi eq, %136, %138 : vector<8x8xi32>
    %140 = arith.extui %139 : vector<8x8xi1> to vector<8x8xi32>
    %141 = arith.sitofp %140 : vector<8x8xi32> to vector<8x8xf32>
    %c1_i32_59 = arith.constant 1 : i32
    %142 = vector.broadcast %c1_i32_59 : i32 to vector<8x8xi32>
    %143 = arith.addi %135, %142 : vector<8x8xi32>
    %144 = arith.cmpi eq, %136, %143 : vector<8x8xi32>
    %145 = arith.extui %144 : vector<8x8xi1> to vector<8x8xi32>
    %146 = arith.sitofp %145 : vector<8x8xi32> to vector<8x8xf32>
    %cst_60 = arith.constant dense<0.000000e+00> : vector<8x128xf32>
    %147 = tpu.matmul %141, %122, %cst_60 {dimension_numbers = #tpu.dot_dimension_numbers<[1], [0], [0], [1], [0, 0, 1, 1], [], []>} : vector<8x8xf32>, vector<8x128xf32>, vector<8x128xf32> -> vector<8x128xf32>
    %cst_61 = arith.constant dense<0.000000e+00> : vector<8x128xf32>
    %148 = tpu.matmul %146, %122, %cst_61 {dimension_numbers = #tpu.dot_dimension_numbers<[1], [0], [0], [1], [0, 0, 1, 1], [], []>} : vector<8x8xf32>, vector<8x128xf32>, vector<8x128xf32> -> vector<8x128xf32>
    %cst_62 = arith.constant dense<0.000000e+00> : vector<8x256xf32>
    %149 = tpu.matmul %147, %124, %cst_62 {dimension_numbers = #tpu.dot_dimension_numbers<[1], [0], [0], [1], [0, 0, 1, 1], [], []>} : vector<8x128xf32>, vector<128x256xf32>, vector<8x256xf32> -> vector<8x256xf32>
    %cst_63 = arith.constant dense<0.000000e+00> : vector<8x256xf32>
    %150 = tpu.matmul %122, %126, %cst_63 {dimension_numbers = #tpu.dot_dimension_numbers<[1], [0], [0], [1], [0, 0, 1, 1], [], []>} : vector<8x128xf32>, vector<128x256xf32>, vector<8x256xf32> -> vector<8x256xf32>
    %151 = arith.addf %149, %150 : vector<8x256xf32>
    %cst_64 = arith.constant dense<0.000000e+00> : vector<8x256xf32>
    %152 = tpu.matmul %122, %128, %cst_64 {dimension_numbers = #tpu.dot_dimension_numbers<[1], [0], [0], [1], [0, 0, 1, 1], [], []>} : vector<8x128xf32>, vector<128x256xf32>, vector<8x256xf32> -> vector<8x256xf32>
    %cst_65 = arith.constant dense<0.000000e+00> : vector<8x256xf32>
    %153 = tpu.matmul %148, %130, %cst_65 {dimension_numbers = #tpu.dot_dimension_numbers<[1], [0], [0], [1], [0, 0, 1, 1], [], []>} : vector<8x128xf32>, vector<128x256xf32>, vector<8x256xf32> -> vector<8x256xf32>
    %154 = arith.addf %152, %153 : vector<8x256xf32>
    %155 = vector.broadcast %132 : vector<1x256xf32> to vector<8x256xf32>
    %156 = arith.mulf %151, %155 : vector<8x256xf32>
    %157 = vector.broadcast %134 : vector<1x256xf32> to vector<8x256xf32>
    %158 = arith.addf %156, %157 : vector<8x256xf32>
    %159 = vector.broadcast %132 : vector<1x256xf32> to vector<8x256xf32>
    %160 = arith.mulf %154, %159 : vector<8x256xf32>
    %161 = vector.broadcast %134 : vector<1x256xf32> to vector<8x256xf32>
    %162 = arith.addf %160, %161 : vector<8x256xf32>
    %163 = vector.extract_strided_slice %158 {offsets = [0, 0], sizes = [8, 128], strides = [1, 1]} : vector<8x256xf32> to vector<8x128xf32>
    %164 = vector.extract_strided_slice %158 {offsets = [0, 128], sizes = [8, 128], strides = [1, 1]} : vector<8x256xf32> to vector<8x128xf32>
    %165 = arith.negf %164 : vector<8x128xf32>
    %166 = math.exp %165 : vector<8x128xf32>
    %cst_66 = arith.constant 1.000000e+00 : f32
    %167 = vector.broadcast %cst_66 : f32 to vector<8x128xf32>
    %168 = arith.addf %167, %166 : vector<8x128xf32>
    %169 = arith.divf %167, %168 : vector<8x128xf32>
    %170 = arith.mulf %163, %169 : vector<8x128xf32>
    %171 = vector.extract_strided_slice %162 {offsets = [0, 0], sizes = [8, 128], strides = [1, 1]} : vector<8x256xf32> to vector<8x128xf32>
    %172 = vector.extract_strided_slice %162 {offsets = [0, 128], sizes = [8, 128], strides = [1, 1]} : vector<8x256xf32> to vector<8x128xf32>
    %173 = arith.negf %172 : vector<8x128xf32>
    %174 = math.exp %173 : vector<8x128xf32>
    %cst_67 = arith.constant 1.000000e+00 : f32
    %175 = vector.broadcast %cst_67 : f32 to vector<8x128xf32>
    %176 = arith.addf %175, %174 : vector<8x128xf32>
    %177 = arith.divf %175, %176 : vector<8x128xf32>
    %178 = arith.mulf %171, %177 : vector<8x128xf32>
    %179 = tpu.iota {dimensions = array<i32: 0>} : vector<16x8xi32>
    %180 = tpu.iota {dimensions = array<i32: 1>} : vector<16x8xi32>
    %c2_i32_68 = arith.constant 2 : i32
    %181 = vector.broadcast %c2_i32_68 : i32 to vector<16x8xi32>
    %182 = arith.muli %181, %180 : vector<16x8xi32>
    %183 = arith.cmpi eq, %182, %179 : vector<16x8xi32>
    %184 = arith.extui %183 : vector<16x8xi1> to vector<16x8xi32>
    %185 = arith.sitofp %184 : vector<16x8xi32> to vector<16x8xf32>
    %c2_i32_69 = arith.constant 2 : i32
    %186 = vector.broadcast %c2_i32_69 : i32 to vector<16x8xi32>
    %187 = arith.muli %186, %180 : vector<16x8xi32>
    %c1_i32_70 = arith.constant 1 : i32
    %188 = vector.broadcast %c1_i32_70 : i32 to vector<16x8xi32>
    %189 = arith.addi %187, %188 : vector<16x8xi32>
    %190 = arith.cmpi eq, %189, %179 : vector<16x8xi32>
    %191 = arith.extui %190 : vector<16x8xi1> to vector<16x8xi32>
    %192 = arith.sitofp %191 : vector<16x8xi32> to vector<16x8xf32>
    %cst_71 = arith.constant dense<0.000000e+00> : vector<16x128xf32>
    %193 = tpu.matmul %185, %170, %cst_71 {dimension_numbers = #tpu.dot_dimension_numbers<[1], [0], [0], [1], [0, 0, 1, 1], [], []>} : vector<16x8xf32>, vector<8x128xf32>, vector<16x128xf32> -> vector<16x128xf32>
    %cst_72 = arith.constant dense<0.000000e+00> : vector<16x128xf32>
    %194 = tpu.matmul %192, %178, %cst_72 {dimension_numbers = #tpu.dot_dimension_numbers<[1], [0], [0], [1], [0, 0, 1, 1], [], []>} : vector<16x8xf32>, vector<8x128xf32>, vector<16x128xf32> -> vector<16x128xf32>
    %195 = arith.addf %193, %194 : vector<16x128xf32>
    %c8 = arith.constant 8 : index
    %c0_73 = arith.constant 0 : index
    %c0_74 = arith.constant 0 : index
    %196 = vector.load %arg5[%c8, %c0_73, %c0_74] : memref<16x128x256xf32, #tpu.memory_space<vmem>>, vector<1x128x256xf32>
    %197 = vector.shape_cast %196 : vector<1x128x256xf32> to vector<128x256xf32>
    %c9 = arith.constant 9 : index
    %c0_75 = arith.constant 0 : index
    %c0_76 = arith.constant 0 : index
    %198 = vector.load %arg5[%c9, %c0_75, %c0_76] : memref<16x128x256xf32, #tpu.memory_space<vmem>>, vector<1x128x256xf32>
    %199 = vector.shape_cast %198 : vector<1x128x256xf32> to vector<128x256xf32>
    %c10 = arith.constant 10 : index
    %c0_77 = arith.constant 0 : index
    %c0_78 = arith.constant 0 : index
    %200 = vector.load %arg5[%c10, %c0_77, %c0_78] : memref<16x128x256xf32, #tpu.memory_space<vmem>>, vector<1x128x256xf32>
    %201 = vector.shape_cast %200 : vector<1x128x256xf32> to vector<128x256xf32>
    %c11 = arith.constant 11 : index
    %c0_79 = arith.constant 0 : index
    %c0_80 = arith.constant 0 : index
    %202 = vector.load %arg5[%c11, %c0_79, %c0_80] : memref<16x128x256xf32, #tpu.memory_space<vmem>>, vector<1x128x256xf32>
    %203 = vector.shape_cast %202 : vector<1x128x256xf32> to vector<128x256xf32>
    %c2_81 = arith.constant 2 : index
    %c0_82 = arith.constant 0 : index
    %c0_83 = arith.constant 0 : index
    %204 = vector.load %arg6[%c2_81, %c0_82, %c0_83] : memref<4x1x256xf32, #tpu.memory_space<vmem>>, vector<1x1x256xf32>
    %205 = vector.shape_cast %204 : vector<1x1x256xf32> to vector<1x256xf32>
    %c2_84 = arith.constant 2 : index
    %c0_85 = arith.constant 0 : index
    %c0_86 = arith.constant 0 : index
    %206 = vector.load %arg7[%c2_84, %c0_85, %c0_86] : memref<4x1x256xf32, #tpu.memory_space<vmem>>, vector<1x1x256xf32>
    %207 = vector.shape_cast %206 : vector<1x1x256xf32> to vector<1x256xf32>
    %208 = tpu.iota {dimensions = array<i32: 0>} : vector<16x16xi32>
    %209 = tpu.iota {dimensions = array<i32: 1>} : vector<16x16xi32>
    %c1_i32_87 = arith.constant 1 : i32
    %210 = vector.broadcast %c1_i32_87 : i32 to vector<16x16xi32>
    %211 = arith.subi %208, %210 : vector<16x16xi32>
    %212 = arith.cmpi eq, %209, %211 : vector<16x16xi32>
    %213 = arith.extui %212 : vector<16x16xi1> to vector<16x16xi32>
    %214 = arith.sitofp %213 : vector<16x16xi32> to vector<16x16xf32>
    %c1_i32_88 = arith.constant 1 : i32
    %215 = vector.broadcast %c1_i32_88 : i32 to vector<16x16xi32>
    %216 = arith.addi %208, %215 : vector<16x16xi32>
    %217 = arith.cmpi eq, %209, %216 : vector<16x16xi32>
    %218 = arith.extui %217 : vector<16x16xi1> to vector<16x16xi32>
    %219 = arith.sitofp %218 : vector<16x16xi32> to vector<16x16xf32>
    %cst_89 = arith.constant dense<0.000000e+00> : vector<16x128xf32>
    %220 = tpu.matmul %214, %195, %cst_89 {dimension_numbers = #tpu.dot_dimension_numbers<[1], [0], [0], [1], [0, 0, 1, 1], [], []>} : vector<16x16xf32>, vector<16x128xf32>, vector<16x128xf32> -> vector<16x128xf32>
    %cst_90 = arith.constant dense<0.000000e+00> : vector<16x128xf32>
    %221 = tpu.matmul %219, %195, %cst_90 {dimension_numbers = #tpu.dot_dimension_numbers<[1], [0], [0], [1], [0, 0, 1, 1], [], []>} : vector<16x16xf32>, vector<16x128xf32>, vector<16x128xf32> -> vector<16x128xf32>
    %cst_91 = arith.constant dense<0.000000e+00> : vector<16x256xf32>
    %222 = tpu.matmul %220, %197, %cst_91 {dimension_numbers = #tpu.dot_dimension_numbers<[1], [0], [0], [1], [0, 0, 1, 1], [], []>} : vector<16x128xf32>, vector<128x256xf32>, vector<16x256xf32> -> vector<16x256xf32>
    %cst_92 = arith.constant dense<0.000000e+00> : vector<16x256xf32>
    %223 = tpu.matmul %195, %199, %cst_92 {dimension_numbers = #tpu.dot_dimension_numbers<[1], [0], [0], [1], [0, 0, 1, 1], [], []>} : vector<16x128xf32>, vector<128x256xf32>, vector<16x256xf32> -> vector<16x256xf32>
    %224 = arith.addf %222, %223 : vector<16x256xf32>
    %cst_93 = arith.constant dense<0.000000e+00> : vector<16x256xf32>
    %225 = tpu.matmul %195, %201, %cst_93 {dimension_numbers = #tpu.dot_dimension_numbers<[1], [0], [0], [1], [0, 0, 1, 1], [], []>} : vector<16x128xf32>, vector<128x256xf32>, vector<16x256xf32> -> vector<16x256xf32>
    %cst_94 = arith.constant dense<0.000000e+00> : vector<16x256xf32>
    %226 = tpu.matmul %221, %203, %cst_94 {dimension_numbers = #tpu.dot_dimension_numbers<[1], [0], [0], [1], [0, 0, 1, 1], [], []>} : vector<16x128xf32>, vector<128x256xf32>, vector<16x256xf32> -> vector<16x256xf32>
    %227 = arith.addf %225, %226 : vector<16x256xf32>
    %228 = vector.broadcast %205 : vector<1x256xf32> to vector<16x256xf32>
    %229 = arith.mulf %224, %228 : vector<16x256xf32>
    %230 = vector.broadcast %207 : vector<1x256xf32> to vector<16x256xf32>
    %231 = arith.addf %229, %230 : vector<16x256xf32>
    %232 = vector.broadcast %205 : vector<1x256xf32> to vector<16x256xf32>
    %233 = arith.mulf %227, %232 : vector<16x256xf32>
    %234 = vector.broadcast %207 : vector<1x256xf32> to vector<16x256xf32>
    %235 = arith.addf %233, %234 : vector<16x256xf32>
    %236 = vector.extract_strided_slice %231 {offsets = [0, 0], sizes = [16, 128], strides = [1, 1]} : vector<16x256xf32> to vector<16x128xf32>
    %237 = vector.extract_strided_slice %231 {offsets = [0, 128], sizes = [16, 128], strides = [1, 1]} : vector<16x256xf32> to vector<16x128xf32>
    %238 = arith.negf %237 : vector<16x128xf32>
    %239 = math.exp %238 : vector<16x128xf32>
    %cst_95 = arith.constant 1.000000e+00 : f32
    %240 = vector.broadcast %cst_95 : f32 to vector<16x128xf32>
    %241 = arith.addf %240, %239 : vector<16x128xf32>
    %242 = arith.divf %240, %241 : vector<16x128xf32>
    %243 = arith.mulf %236, %242 : vector<16x128xf32>
    %244 = vector.extract_strided_slice %235 {offsets = [0, 0], sizes = [16, 128], strides = [1, 1]} : vector<16x256xf32> to vector<16x128xf32>
    %245 = vector.extract_strided_slice %235 {offsets = [0, 128], sizes = [16, 128], strides = [1, 1]} : vector<16x256xf32> to vector<16x128xf32>
    %246 = arith.negf %245 : vector<16x128xf32>
    %247 = math.exp %246 : vector<16x128xf32>
    %cst_96 = arith.constant 1.000000e+00 : f32
    %248 = vector.broadcast %cst_96 : f32 to vector<16x128xf32>
    %249 = arith.addf %248, %247 : vector<16x128xf32>
    %250 = arith.divf %248, %249 : vector<16x128xf32>
    %251 = arith.mulf %244, %250 : vector<16x128xf32>
    %252 = tpu.iota {dimensions = array<i32: 0>} : vector<32x16xi32>
    %253 = tpu.iota {dimensions = array<i32: 1>} : vector<32x16xi32>
    %c2_i32_97 = arith.constant 2 : i32
    %254 = vector.broadcast %c2_i32_97 : i32 to vector<32x16xi32>
    %255 = arith.muli %254, %253 : vector<32x16xi32>
    %256 = arith.cmpi eq, %255, %252 : vector<32x16xi32>
    %257 = arith.extui %256 : vector<32x16xi1> to vector<32x16xi32>
    %258 = arith.sitofp %257 : vector<32x16xi32> to vector<32x16xf32>
    %c2_i32_98 = arith.constant 2 : i32
    %259 = vector.broadcast %c2_i32_98 : i32 to vector<32x16xi32>
    %260 = arith.muli %259, %253 : vector<32x16xi32>
    %c1_i32_99 = arith.constant 1 : i32
    %261 = vector.broadcast %c1_i32_99 : i32 to vector<32x16xi32>
    %262 = arith.addi %260, %261 : vector<32x16xi32>
    %263 = arith.cmpi eq, %262, %252 : vector<32x16xi32>
    %264 = arith.extui %263 : vector<32x16xi1> to vector<32x16xi32>
    %265 = arith.sitofp %264 : vector<32x16xi32> to vector<32x16xf32>
    %cst_100 = arith.constant dense<0.000000e+00> : vector<32x128xf32>
    %266 = tpu.matmul %258, %243, %cst_100 {dimension_numbers = #tpu.dot_dimension_numbers<[1], [0], [0], [1], [0, 0, 1, 1], [], []>} : vector<32x16xf32>, vector<16x128xf32>, vector<32x128xf32> -> vector<32x128xf32>
    %cst_101 = arith.constant dense<0.000000e+00> : vector<32x128xf32>
    %267 = tpu.matmul %265, %251, %cst_101 {dimension_numbers = #tpu.dot_dimension_numbers<[1], [0], [0], [1], [0, 0, 1, 1], [], []>} : vector<32x16xf32>, vector<16x128xf32>, vector<32x128xf32> -> vector<32x128xf32>
    %268 = arith.addf %266, %267 : vector<32x128xf32>
    %c12 = arith.constant 12 : index
    %c0_102 = arith.constant 0 : index
    %c0_103 = arith.constant 0 : index
    %269 = vector.load %arg5[%c12, %c0_102, %c0_103] : memref<16x128x256xf32, #tpu.memory_space<vmem>>, vector<1x128x256xf32>
    %270 = vector.shape_cast %269 : vector<1x128x256xf32> to vector<128x256xf32>
    %c13 = arith.constant 13 : index
    %c0_104 = arith.constant 0 : index
    %c0_105 = arith.constant 0 : index
    %271 = vector.load %arg5[%c13, %c0_104, %c0_105] : memref<16x128x256xf32, #tpu.memory_space<vmem>>, vector<1x128x256xf32>
    %272 = vector.shape_cast %271 : vector<1x128x256xf32> to vector<128x256xf32>
    %c14 = arith.constant 14 : index
    %c0_106 = arith.constant 0 : index
    %c0_107 = arith.constant 0 : index
    %273 = vector.load %arg5[%c14, %c0_106, %c0_107] : memref<16x128x256xf32, #tpu.memory_space<vmem>>, vector<1x128x256xf32>
    %274 = vector.shape_cast %273 : vector<1x128x256xf32> to vector<128x256xf32>
    %c15 = arith.constant 15 : index
    %c0_108 = arith.constant 0 : index
    %c0_109 = arith.constant 0 : index
    %275 = vector.load %arg5[%c15, %c0_108, %c0_109] : memref<16x128x256xf32, #tpu.memory_space<vmem>>, vector<1x128x256xf32>
    %276 = vector.shape_cast %275 : vector<1x128x256xf32> to vector<128x256xf32>
    %c3_110 = arith.constant 3 : index
    %c0_111 = arith.constant 0 : index
    %c0_112 = arith.constant 0 : index
    %277 = vector.load %arg6[%c3_110, %c0_111, %c0_112] : memref<4x1x256xf32, #tpu.memory_space<vmem>>, vector<1x1x256xf32>
    %278 = vector.shape_cast %277 : vector<1x1x256xf32> to vector<1x256xf32>
    %c3_113 = arith.constant 3 : index
    %c0_114 = arith.constant 0 : index
    %c0_115 = arith.constant 0 : index
    %279 = vector.load %arg7[%c3_113, %c0_114, %c0_115] : memref<4x1x256xf32, #tpu.memory_space<vmem>>, vector<1x1x256xf32>
    %280 = vector.shape_cast %279 : vector<1x1x256xf32> to vector<1x256xf32>
    %281 = tpu.iota {dimensions = array<i32: 0>} : vector<32x32xi32>
    %282 = tpu.iota {dimensions = array<i32: 1>} : vector<32x32xi32>
    %c1_i32_116 = arith.constant 1 : i32
    %283 = vector.broadcast %c1_i32_116 : i32 to vector<32x32xi32>
    %284 = arith.subi %281, %283 : vector<32x32xi32>
    %285 = arith.cmpi eq, %282, %284 : vector<32x32xi32>
    %286 = arith.extui %285 : vector<32x32xi1> to vector<32x32xi32>
    %287 = arith.sitofp %286 : vector<32x32xi32> to vector<32x32xf32>
    %c1_i32_117 = arith.constant 1 : i32
    %288 = vector.broadcast %c1_i32_117 : i32 to vector<32x32xi32>
    %289 = arith.addi %281, %288 : vector<32x32xi32>
    %290 = arith.cmpi eq, %282, %289 : vector<32x32xi32>
    %291 = arith.extui %290 : vector<32x32xi1> to vector<32x32xi32>
    %292 = arith.sitofp %291 : vector<32x32xi32> to vector<32x32xf32>
    %cst_118 = arith.constant dense<0.000000e+00> : vector<32x128xf32>
    %293 = tpu.matmul %287, %268, %cst_118 {dimension_numbers = #tpu.dot_dimension_numbers<[1], [0], [0], [1], [0, 0, 1, 1], [], []>} : vector<32x32xf32>, vector<32x128xf32>, vector<32x128xf32> -> vector<32x128xf32>
    %cst_119 = arith.constant dense<0.000000e+00> : vector<32x128xf32>
    %294 = tpu.matmul %292, %268, %cst_119 {dimension_numbers = #tpu.dot_dimension_numbers<[1], [0], [0], [1], [0, 0, 1, 1], [], []>} : vector<32x32xf32>, vector<32x128xf32>, vector<32x128xf32> -> vector<32x128xf32>
    %cst_120 = arith.constant dense<0.000000e+00> : vector<32x256xf32>
    %295 = tpu.matmul %293, %270, %cst_120 {dimension_numbers = #tpu.dot_dimension_numbers<[1], [0], [0], [1], [0, 0, 1, 1], [], []>} : vector<32x128xf32>, vector<128x256xf32>, vector<32x256xf32> -> vector<32x256xf32>
    %cst_121 = arith.constant dense<0.000000e+00> : vector<32x256xf32>
    %296 = tpu.matmul %268, %272, %cst_121 {dimension_numbers = #tpu.dot_dimension_numbers<[1], [0], [0], [1], [0, 0, 1, 1], [], []>} : vector<32x128xf32>, vector<128x256xf32>, vector<32x256xf32> -> vector<32x256xf32>
    %297 = arith.addf %295, %296 : vector<32x256xf32>
    %cst_122 = arith.constant dense<0.000000e+00> : vector<32x256xf32>
    %298 = tpu.matmul %268, %274, %cst_122 {dimension_numbers = #tpu.dot_dimension_numbers<[1], [0], [0], [1], [0, 0, 1, 1], [], []>} : vector<32x128xf32>, vector<128x256xf32>, vector<32x256xf32> -> vector<32x256xf32>
    %cst_123 = arith.constant dense<0.000000e+00> : vector<32x256xf32>
    %299 = tpu.matmul %294, %276, %cst_123 {dimension_numbers = #tpu.dot_dimension_numbers<[1], [0], [0], [1], [0, 0, 1, 1], [], []>} : vector<32x128xf32>, vector<128x256xf32>, vector<32x256xf32> -> vector<32x256xf32>
    %300 = arith.addf %298, %299 : vector<32x256xf32>
    %301 = vector.broadcast %278 : vector<1x256xf32> to vector<32x256xf32>
    %302 = arith.mulf %297, %301 : vector<32x256xf32>
    %303 = vector.broadcast %280 : vector<1x256xf32> to vector<32x256xf32>
    %304 = arith.addf %302, %303 : vector<32x256xf32>
    %305 = vector.broadcast %278 : vector<1x256xf32> to vector<32x256xf32>
    %306 = arith.mulf %300, %305 : vector<32x256xf32>
    %307 = vector.broadcast %280 : vector<1x256xf32> to vector<32x256xf32>
    %308 = arith.addf %306, %307 : vector<32x256xf32>
    %309 = vector.extract_strided_slice %304 {offsets = [0, 0], sizes = [32, 128], strides = [1, 1]} : vector<32x256xf32> to vector<32x128xf32>
    %310 = vector.extract_strided_slice %304 {offsets = [0, 128], sizes = [32, 128], strides = [1, 1]} : vector<32x256xf32> to vector<32x128xf32>
    %311 = arith.negf %310 : vector<32x128xf32>
    %312 = math.exp %311 : vector<32x128xf32>
    %cst_124 = arith.constant 1.000000e+00 : f32
    %313 = vector.broadcast %cst_124 : f32 to vector<32x128xf32>
    %314 = arith.addf %313, %312 : vector<32x128xf32>
    %315 = arith.divf %313, %314 : vector<32x128xf32>
    %316 = arith.mulf %309, %315 : vector<32x128xf32>
    %317 = vector.extract_strided_slice %308 {offsets = [0, 0], sizes = [32, 128], strides = [1, 1]} : vector<32x256xf32> to vector<32x128xf32>
    %318 = vector.extract_strided_slice %308 {offsets = [0, 128], sizes = [32, 128], strides = [1, 1]} : vector<32x256xf32> to vector<32x128xf32>
    %319 = arith.negf %318 : vector<32x128xf32>
    %320 = math.exp %319 : vector<32x128xf32>
    %cst_125 = arith.constant 1.000000e+00 : f32
    %321 = vector.broadcast %cst_125 : f32 to vector<32x128xf32>
    %322 = arith.addf %321, %320 : vector<32x128xf32>
    %323 = arith.divf %321, %322 : vector<32x128xf32>
    %324 = arith.mulf %317, %323 : vector<32x128xf32>
    %325 = tpu.iota {dimensions = array<i32: 0>} : vector<64x32xi32>
    %326 = tpu.iota {dimensions = array<i32: 1>} : vector<64x32xi32>
    %c2_i32_126 = arith.constant 2 : i32
    %327 = vector.broadcast %c2_i32_126 : i32 to vector<64x32xi32>
    %328 = arith.muli %327, %326 : vector<64x32xi32>
    %329 = arith.cmpi eq, %328, %325 : vector<64x32xi32>
    %330 = arith.extui %329 : vector<64x32xi1> to vector<64x32xi32>
    %331 = arith.sitofp %330 : vector<64x32xi32> to vector<64x32xf32>
    %c2_i32_127 = arith.constant 2 : i32
    %332 = vector.broadcast %c2_i32_127 : i32 to vector<64x32xi32>
    %333 = arith.muli %332, %326 : vector<64x32xi32>
    %c1_i32_128 = arith.constant 1 : i32
    %334 = vector.broadcast %c1_i32_128 : i32 to vector<64x32xi32>
    %335 = arith.addi %333, %334 : vector<64x32xi32>
    %336 = arith.cmpi eq, %335, %325 : vector<64x32xi32>
    %337 = arith.extui %336 : vector<64x32xi1> to vector<64x32xi32>
    %338 = arith.sitofp %337 : vector<64x32xi32> to vector<64x32xf32>
    %cst_129 = arith.constant dense<0.000000e+00> : vector<64x128xf32>
    %339 = tpu.matmul %331, %316, %cst_129 {dimension_numbers = #tpu.dot_dimension_numbers<[1], [0], [0], [1], [0, 0, 1, 1], [], []>} : vector<64x32xf32>, vector<32x128xf32>, vector<64x128xf32> -> vector<64x128xf32>
    %cst_130 = arith.constant dense<0.000000e+00> : vector<64x128xf32>
    %340 = tpu.matmul %338, %324, %cst_130 {dimension_numbers = #tpu.dot_dimension_numbers<[1], [0], [0], [1], [0, 0, 1, 1], [], []>} : vector<64x32xf32>, vector<32x128xf32>, vector<64x128xf32> -> vector<64x128xf32>
    %341 = arith.addf %339, %340 : vector<64x128xf32>
    %c0_131 = arith.constant 0 : index
    %c0_132 = arith.constant 0 : index
    %342 = vector.load %arg8[%c0_131, %c0_132] : memref<128x128xf32, #tpu.memory_space<vmem>>, vector<128x128xf32>
    %cst_133 = arith.constant dense<0.000000e+00> : vector<64x128xf32>
    %343 = tpu.matmul %341, %342, %cst_133 {dimension_numbers = #tpu.dot_dimension_numbers<[1], [0], [0], [1], [0, 0, 1, 1], [], []>} : vector<64x128xf32>, vector<128x128xf32>, vector<64x128xf32> -> vector<64x128xf32>
    %344 = vector.extract_strided_slice %343 {offsets = [0, 0], sizes = [64, 64], strides = [1, 1]} : vector<64x128xf32> to vector<64x64xf32>
    %c0_134 = arith.constant 0 : index
    %c0_135 = arith.constant 0 : index
    %c0_136 = arith.constant 0 : index
    %c0_137 = arith.constant 0 : index
    %345 = vector.load %arg9[%c0_134, %c0_135, %c0_136, %c0_137] : memref<1x2x64x64xf32, #tpu.memory_space<vmem>>, vector<1x1x64x64xf32>
    %346 = vector.shape_cast %345 : vector<1x1x64x64xf32> to vector<64x64xf32>
    %347 = vector.shape_cast %344 : vector<64x64xf32> to vector<1x1x64x64xf32>
    tpu.vector_store %arg9[%c0_134, %c0_135, %c0_136, %c0_137], %347 {strides = array<i32>} : memref<1x2x64x64xf32, #tpu.memory_space<vmem>>, vector<1x1x64x64xf32>,
    %348 = vector.extract_strided_slice %343 {offsets = [0, 64], sizes = [64, 64], strides = [1, 1]} : vector<64x128xf32> to vector<64x64xf32>
    %c0_138 = arith.constant 0 : index
    %c1_139 = arith.constant 1 : index
    %c0_140 = arith.constant 0 : index
    %c0_141 = arith.constant 0 : index
    %349 = vector.load %arg9[%c0_138, %c1_139, %c0_140, %c0_141] : memref<1x2x64x64xf32, #tpu.memory_space<vmem>>, vector<1x1x64x64xf32>
    %350 = vector.shape_cast %349 : vector<1x1x64x64xf32> to vector<64x64xf32>
    %351 = vector.shape_cast %348 : vector<64x64xf32> to vector<1x1x64x64xf32>
    tpu.vector_store %arg9[%c0_138, %c1_139, %c0_140, %c0_141], %351 {strides = array<i32>} : memref<1x2x64x64xf32, #tpu.memory_space<vmem>>, vector<1x1x64x64xf32>,
    return
  }
  func.func @transform_0(%arg0: i32) -> (i32, i32, i32) {
    %c0_i32 = arith.constant 0 : i32
    %c0_i32_0 = arith.constant 0 : i32
    %c0_i32_1 = arith.constant 0 : i32
    return %arg0, %c0_i32, %c0_i32_0 : i32, i32, i32
  }
  func.func @transform_1(%arg0: i32) -> (i32, i32) {
    %c0_i32 = arith.constant 0 : i32
    %c0_i32_0 = arith.constant 0 : i32
    %c0_i32_1 = arith.constant 0 : i32
    return %c0_i32, %c0_i32_0 : i32, i32
  }
  func.func @transform_2(%arg0: i32) -> (i32, i32) {
    %c0_i32 = arith.constant 0 : i32
    %c0_i32_0 = arith.constant 0 : i32
    %c0_i32_1 = arith.constant 0 : i32
    return %c0_i32, %c0_i32_0 : i32, i32
  }
  func.func @transform_3(%arg0: i32) -> (i32, i32) {
    %c0_i32 = arith.constant 0 : i32
    %c0_i32_0 = arith.constant 0 : i32
    %c0_i32_1 = arith.constant 0 : i32
    return %c0_i32, %c0_i32_0 : i32, i32
  }
  func.func @transform_4(%arg0: i32) -> (i32, i32, i32) {
    %c0_i32 = arith.constant 0 : i32
    %c0_i32_0 = arith.constant 0 : i32
    %c0_i32_1 = arith.constant 0 : i32
    %c0_i32_2 = arith.constant 0 : i32
    return %c0_i32, %c0_i32_0, %c0_i32_1 : i32, i32, i32
  }
  func.func @transform_5(%arg0: i32) -> (i32, i32, i32) {
    %c0_i32 = arith.constant 0 : i32
    %c0_i32_0 = arith.constant 0 : i32
    %c0_i32_1 = arith.constant 0 : i32
    %c0_i32_2 = arith.constant 0 : i32
    return %c0_i32, %c0_i32_0, %c0_i32_1 : i32, i32, i32
  }
  func.func @transform_6(%arg0: i32) -> (i32, i32, i32) {
    %c0_i32 = arith.constant 0 : i32
    %c0_i32_0 = arith.constant 0 : i32
    %c0_i32_1 = arith.constant 0 : i32
    %c0_i32_2 = arith.constant 0 : i32
    return %c0_i32, %c0_i32_0, %c0_i32_1 : i32, i32, i32
  }
  func.func @transform_7(%arg0: i32) -> (i32, i32) {
    %c0_i32 = arith.constant 0 : i32
    %c0_i32_0 = arith.constant 0 : i32
    %c0_i32_1 = arith.constant 0 : i32
    return %c0_i32, %c0_i32_0 : i32, i32
  }
  func.func @transform_8(%arg0: i32) -> (i32, i32, i32, i32) {
    %c0_i32 = arith.constant 0 : i32
    %c0_i32_0 = arith.constant 0 : i32
    %c0_i32_1 = arith.constant 0 : i32
    %c0_i32_2 = arith.constant 0 : i32
    return %arg0, %c0_i32, %c0_i32_0, %c0_i32_1 : i32, i32, i32, i32
  }
}

</mosaic_0001>

<llo_original>
// kernel: tpu_custom_call.1
$region0: #{tpu_custom_call.1}
  #allocation0 [shape = 'u32[]', space=smem, size = 0x4, offset = 0x4, fixed_abs, tag = 'smem constant byte address 0x4 - core index']
  #allocation1 [shape = 'u32[144,128]{1,0:T(1,128)}', space=vmem, size = 0x12000, scoped, tag = 'internal scratch']
  %s0 = inlined_call_operand.hbm [shape: f32[2,1,32], index: 0, kind: input, shape index: {}]
  %s1 = inlined_call_operand.hbm [shape: f32[32,1024], index: 1, kind: input, shape index: {}]
  %s2 = inlined_call_operand.hbm [shape: f32[4,256], index: 2, kind: input, shape index: {}]
  %s3 = inlined_call_operand.hbm [shape: f32[4,256], index: 3, kind: input, shape index: {}]
  %s4 = inlined_call_operand.hbm [shape: f32[16,128,256], index: 4, kind: input, shape index: {}]
  %s5 = inlined_call_operand.hbm [shape: f32[4,1,256], index: 5, kind: input, shape index: {}]
  %s6 = inlined_call_operand.hbm [shape: f32[4,1,256], index: 6, kind: input, shape index: {}]
  %s7 = inlined_call_operand.hbm [shape: f32[128,128], index: 7, kind: input, shape index: {}]
  %s8 = inlined_call_operand.hbm [shape: f32[2,2,64,64], index: 8, kind: output, shape index: {}]
  %s9 = sld [smem:[#allocation0]]
  $region97: #{tpu_custom_call.1} parent=0
    _
  %s11 = ssub.s32 1, %s9
  %s12 = scalar_select 0, %s11, %s9
  $region1: #{tpu_custom_call.1} parent=0
    #allocation2 [shape = 'u8[1024]{0}', space=vmem, size = 0x400, scoped, tag = 'input window, operand 0']
    #allocation3 [shape = 's32[2]{0}', space=sflag, size = 0x8, scoped, tag = 'scoped memory for tpu_custom_call.1']
    #allocation4 [shape = 's32[2]{0}', space=sflag, size = 0x8, scoped, tag = 'scoped memory for tpu_custom_call.1']
    #allocation5 [shape = 'u8[131072]{0}', space=vmem, size = 0x20000, scoped, tag = 'input window, operand 1, single buffered']
    #allocation6 [shape = 's32[1]{0}', space=sflag, size = 0x4, scoped, tag = 'scoped memory for tpu_custom_call.1']
    #allocation7 [shape = 'u8[4096]{0}', space=vmem, size = 0x1000, scoped, tag = 'input window, operand 2, single buffered']
    #allocation8 [shape = 'u8[4096]{0}', space=vmem, size = 0x1000, scoped, tag = 'input window, operand 3, single buffered']
    #allocation9 [shape = 's32[1]{0}', space=sflag, size = 0x4, scoped, tag = 'scoped memory for tpu_custom_call.1']
    #allocation10 [shape = 'u8[2097152]{0}', space=vmem, size = 0x200000, scoped, tag = 'input window, operand 4, single buffered']
    #allocation11 [shape = 'u8[4096]{0}', space=vmem, size = 0x1000, scoped, tag = 'input window, operand 5, single buffered']
    #allocation12 [shape = 's32[1]{0}', space=sflag, size = 0x4, scoped, tag = 'scoped memory for tpu_custom_call.1']
    #allocation13 [shape = 'u8[4096]{0}', space=vmem, size = 0x1000, scoped, tag = 'input window, operand 6, single buffered']
    #allocation14 [shape = 'u8[65536]{0}', space=vmem, size = 0x10000, scoped, tag = 'input window, operand 7, single buffered']
    #allocation15 [shape = 's32[1]{0}', space=sflag, size = 0x4, scoped, tag = 'scoped memory for tpu_custom_call.1']
    #allocation16 [shape = 'u8[131072]{0}', space=vmem, size = 0x20000, scoped, tag = 'output window, operand 0']
    %13 = vsyncpa [#allocation3], 0
    %s14 = scalar_lea.sflag [#allocation3], 1
    %15 = vsyncpa %s14, 0
    %16 = vsyncpa [#allocation6], 0
    %17 = vsyncpa [#allocation9], 0
    %18 = vsyncpa [#allocation12], 0
    %19 = vsyncpa [#allocation15], 0
    %20 = vsyncpa [#allocation4], 0
    %s21 = scalar_lea.sflag [#allocation4], 1
    %22 = vsyncpa %s21, 0
    loop: start=0, step=1, limit=4
    $region2: #{tpu_custom_call.1} parent=1 // loop_pre_header
      _
    $region3: #{tpu_custom_call.1} parent=1 // loop_header
      %s24 = sphi 0, %s28
      %p25 = scmp.ge.s32.totalorder %s24, 4
      %s34 = sphi 0, %s36
      %s37 = sphi 0, %s34
      %s38 = sphi 0, %s37
      %s54 = sphi 0, %s38
      %s58 = sphi 0, %s58
      %s60 = sphi 0, %s58
      %s61 = sphi 0, %s60
      %s75 = sphi 0, %s61
      %s79 = sphi 0, %s79
      %s81 = sphi 0, %s79
      %s82 = sphi 0, %s81
      %s96 = sphi 0, %s82
      %s100 = sphi 0, %s100
      %s102 = sphi 0, %s100
      %s103 = sphi 0, %s102
      %s117 = sphi 0, %s103
      %s121 = sphi 0, %s121
      %s123 = sphi 0, %s121
      %s124 = sphi 0, %s123
      %s138 = sphi 0, %s124
      %s142 = sphi 0, %s142
      %s144 = sphi 0, %s142
      %s145 = sphi 0, %s144
      %s159 = sphi 0, %s145
      %s163 = sphi 0, %s163
      %s165 = sphi 0, %s163
      %s166 = sphi 0, %s165
      %s180 = sphi 0, %s166
      %s184 = sphi 0, %s184
      %s186 = sphi 0, %s184
      %s187 = sphi 0, %s186
      %s201 = sphi 0, %s187
      %s207 = sphi 0, %s209
      %s210 = sphi 0, %s207
      %s211 = sphi 0, %s210
      %s227 = sphi 0, %s211
    $region4: #{tpu_custom_call.1} parent=1 // loop_header_branch
      %27 = sbr.rel (%p25) target = $region8
    $region5: #{tpu_custom_call.1} parent=1 // loop_body
      %s29 = ssub.s32 %s24, 1
      %s30 = ssub.s32 %s24, 2
      %s31 = sadd.s32 %s24, 1
      %s32 = ssub.s32 %s24, %s31
      %p33 = scmp.eq.s32.totalorder %s32, 0
      %s35 = sadd.s32 %s34, 1
      %s36 = scalar_select %p33, %s34, %s35
      %p39 = pneg %p33
      %p40 = scmp.eq.s32.totalorder %s24, 1
      %p41 = por %p39, %p40
      %p42 = scmp.ne.s32.totalorder %s34, %s37
      %p43 = scmp.eq.s32.totalorder %s24, 0
      %p44 = por %p42, %p43
      %p45 = scmp.ne.s32.totalorder %s34, %s37
      %p46 = scmp.eq.s32.totalorder %s29, 1
      %p47 = por %p45, %p46
      %p48 = scmp.ne.s32.totalorder %s37, %s38
      %p49 = scmp.eq.s32.totalorder %s29, 0
      %p50 = por %p48, %p49
      %p51 = scmp.ne.s32.totalorder %s37, %s38
      %p52 = scmp.eq.s32.totalorder %s30, 1
      %p53 = por %p51, %p52
      %p55 = scmp.ne.s32.totalorder %s38, %s54
      %p56 = scmp.eq.s32.totalorder %s30, 0
      %p57 = por %p55, %p56
      %s59 = sadd.s32 %s58, 1
      %p62 = scmp.eq.s32.totalorder %s24, 1
      %p63 = scmp.ne.s32.totalorder %s58, %s60
      %p64 = scmp.eq.s32.totalorder %s24, 0
      %p65 = por %p63, %p64
      %p66 = scmp.ne.s32.totalorder %s58, %s60
      %p67 = scmp.eq.s32.totalorder %s29, 1
      %p68 = por %p66, %p67
      %p69 = scmp.ne.s32.totalorder %s60, %s61
      %p70 = scmp.eq.s32.totalorder %s29, 0
      %p71 = por %p69, %p70
      %p72 = scmp.ne.s32.totalorder %s60, %s61
      %p73 = scmp.eq.s32.totalorder %s30, 1
      %p74 = por %p72, %p73
      %p76 = scmp.ne.s32.totalorder %s61, %s75
      %p77 = scmp.eq.s32.totalorder %s30, 0
      %p78 = por %p76, %p77
      %s80 = sadd.s32 %s79, 1
      %p83 = scmp.eq.s32.totalorder %s24, 1
      %p84 = scmp.ne.s32.totalorder %s79, %s81
      %p85 = scmp.eq.s32.totalorder %s24, 0
      %p86 = por %p84, %p85
      %p87 = scmp.ne.s32.totalorder %s79, %s81
      %p88 = scmp.eq.s32.totalorder %s29, 1
      %p89 = por %p87, %p88
      %p90 = scmp.ne.s32.totalorder %s81, %s82
      %p91 = scmp.eq.s32.totalorder %s29, 0
      %p92 = por %p90, %p91
      %p93 = scmp.ne.s32.totalorder %s81, %s82
      %p94 = scmp.eq.s32.totalorder %s30, 1
      %p95 = por %p93, %p94
      %p97 = scmp.ne.s32.totalorder %s82, %s96
      %p98 = scmp.eq.s32.totalorder %s30, 0
      %p99 = por %p97, %p98
      %s101 = sadd.s32 %s100, 1
      %p104 = scmp.eq.s32.totalorder %s24, 1
      %p105 = scmp.ne.s32.totalorder %s100, %s102
      %p106 = scmp.eq.s32.totalorder %s24, 0
      %p107 = por %p105, %p106
      %p108 = scmp.ne.s32.totalorder %s100, %s102
      %p109 = scmp.eq.s32.totalorder %s29, 1
      %p110 = por %p108, %p109
      %p111 = scmp.ne.s32.totalorder %s102, %s103
      %p112 = scmp.eq.s32.totalorder %s29, 0
      %p113 = por %p111, %p112
      %p114 = scmp.ne.s32.totalorder %s102, %s103
      %p115 = scmp.eq.s32.totalorder %s30, 1
      %p116 = por %p114, %p115
      %p118 = scmp.ne.s32.totalorder %s103, %s117
      %p119 = scmp.eq.s32.totalorder %s30, 0
      %p120 = por %p118, %p119
      %s122 = sadd.s32 %s121, 1
      %p125 = scmp.eq.s32.totalorder %s24, 1
      %p126 = scmp.ne.s32.totalorder %s121, %s123
      %p127 = scmp.eq.s32.totalorder %s24, 0
      %p128 = por %p126, %p127
      %p129 = scmp.ne.s32.totalorder %s121, %s123
      %p130 = scmp.eq.s32.totalorder %s29, 1
      %p131 = por %p129, %p130
      %p132 = scmp.ne.s32.totalorder %s123, %s124
      %p133 = scmp.eq.s32.totalorder %s29, 0
      %p134 = por %p132, %p133
      %p135 = scmp.ne.s32.totalorder %s123, %s124
      %p136 = scmp.eq.s32.totalorder %s30, 1
      %p137 = por %p135, %p136
      %p139 = scmp.ne.s32.totalorder %s124, %s138
      %p140 = scmp.eq.s32.totalorder %s30, 0
      %p141 = por %p139, %p140
      %s143 = sadd.s32 %s142, 1
      %p146 = scmp.eq.s32.totalorder %s24, 1
      %p147 = scmp.ne.s32.totalorder %s142, %s144
      %p148 = scmp.eq.s32.totalorder %s24, 0
      %p149 = por %p147, %p148
      %p150 = scmp.ne.s32.totalorder %s142, %s144
      %p151 = scmp.eq.s32.totalorder %s29, 1
      %p152 = por %p150, %p151
      %p153 = scmp.ne.s32.totalorder %s144, %s145
      %p154 = scmp.eq.s32.totalorder %s29, 0
      %p155 = por %p153, %p154
      %p156 = scmp.ne.s32.totalorder %s144, %s145
      %p157 = scmp.eq.s32.totalorder %s30, 1
      %p158 = por %p156, %p157
      %p160 = scmp.ne.s32.totalorder %s145, %s159
      %p161 = scmp.eq.s32.totalorder %s30, 0
      %p162 = por %p160, %p161
      %s164 = sadd.s32 %s163, 1
      %p167 = scmp.eq.s32.totalorder %s24, 1
      %p168 = scmp.ne.s32.totalorder %s163, %s165
      %p169 = scmp.eq.s32.totalorder %s24, 0
      %p170 = por %p168, %p169
      %p171 = scmp.ne.s32.totalorder %s163, %s165
      %p172 = scmp.eq.s32.totalorder %s29, 1
      %p173 = por %p171, %p172
      %p174 = scmp.ne.s32.totalorder %s165, %s166
      %p175 = scmp.eq.s32.totalorder %s29, 0
      %p176 = por %p174, %p175
      %p177 = scmp.ne.s32.totalorder %s165, %s166
      %p178 = scmp.eq.s32.totalorder %s30, 1
      %p179 = por %p177, %p178
      %p181 = scmp.ne.s32.totalorder %s166, %s180
      %p182 = scmp.eq.s32.totalorder %s30, 0
      %p183 = por %p181, %p182
      %s185 = sadd.s32 %s184, 1
      %p188 = scmp.eq.s32.totalorder %s24, 1
      %p189 = scmp.ne.s32.totalorder %s184, %s186
      %p190 = scmp.eq.s32.totalorder %s24, 0
      %p191 = por %p189, %p190
      %p192 = scmp.ne.s32.totalorder %s184, %s186
      %p193 = scmp.eq.s32.totalorder %s29, 1
      %p194 = por %p192, %p193
      %p195 = scmp.ne.s32.totalorder %s186, %s187
      %p196 = scmp.eq.s32.totalorder %s29, 0
      %p197 = por %p195, %p196
      %p198 = scmp.ne.s32.totalorder %s186, %s187
      %p199 = scmp.eq.s32.totalorder %s30, 1
      %p200 = por %p198, %p199
      %p202 = scmp.ne.s32.totalorder %s187, %s201
      %p203 = scmp.eq.s32.totalorder %s30, 0
      %p204 = por %p202, %p203
      %s205 = ssub.s32 %s24, %s31
      %p206 = scmp.eq.s32.totalorder %s205, 0
      %s208 = sadd.s32 %s207, 1
      %s209 = scalar_select %p206, %s207, %s208
      %p212 = pneg %p206
      %p213 = scmp.eq.s32.totalorder %s24, 1
      %p214 = por %p212, %p213
      %p215 = scmp.ne.s32.totalorder %s207, %s210
      %p216 = scmp.eq.s32.totalorder %s24, 0
      %p217 = por %p215, %p216
      %p218 = scmp.ne.s32.totalorder %s207, %s210
      %p219 = scmp.eq.s32.totalorder %s29, 1
      %p220 = por %p218, %p219
      %p221 = scmp.ne.s32.totalorder %s210, %s211
      %p222 = scmp.eq.s32.totalorder %s29, 0
      %p223 = por %p221, %p222
      %p224 = scmp.ne.s32.totalorder %s210, %s211
      %p225 = scmp.eq.s32.totalorder %s30, 1
      %p226 = por %p224, %p225
      %p228 = scmp.ne.s32.totalorder %s211, %s227
      %p229 = scmp.eq.s32.totalorder %s30, 0
      %p230 = por %p228, %p229
      %p231 = scmp.le.s32.totalorder 1, %s24
      %p232 = scmp.lt.s32.totalorder %s24, 3
      %p233 = pnand %p231, %p232
      %p234 = pneg %p233
      // Predicated region
      $region9: #{tpu_custom_call.1} parent=5 // pred_check
        _
      $region10: #{tpu_custom_call.1} parent=5 // pred_check_branch
        %236 = sbr.rel (%p233) target = $region12
      $region11: #{tpu_custom_call.1} parent=5 // pred_region
        %s237 = ssub.s32 %s24, 1
        // Predicated region
        $region13: #{tpu_custom_call.1} parent=11 // pred_check
          %p238 = pneg %p71
        $region14: #{tpu_custom_call.1} parent=11 // pred_check_branch
          %240 = sbr.rel (%p238) target = $region16
        $region15: #{tpu_custom_call.1} parent=11 // pred_region
          %s242 = ssub.s32 4096, 4096
          %243 = vsyncadd [#allocation6], %s242
          %s244 = sshll.u32 [#allocation5], 4
          %s245 = int_to_ptr.vmem [resolvable:$true] %s244
          %250 = dma.hbm_to_vmem [thread:$0]  %s1, 4096, %s245, [#allocation6], 1024, 1024, 64
        $region16: #{tpu_custom_call.1} parent=11 // pred_fallthru
          _
        // Predicated region
        $region17: #{tpu_custom_call.1} parent=11 // pred_check
          %p251 = pneg %p92
        $region18: #{tpu_custom_call.1} parent=11 // pred_check_branch
          %253 = sbr.rel (%p251) target = $region20
        $region19: #{tpu_custom_call.1} parent=11 // pred_region
          %s255 = ssub.s32 128, 128
          %256 = vsyncadd [#allocation6], %s255
          %s258 = sshll.u32 [#allocation7], 4
          %s259 = int_to_ptr.vmem [resolvable:$true] %s258
          %261 = dma.hbm_to_vmem [thread:$0]  %s2, 128, %s259, [#allocation6]
        $region20: #{tpu_custom_call.1} parent=11 // pred_fallthru
          _
        // Predicated region
        $region21: #{tpu_custom_call.1} parent=11 // pred_check
          %p262 = pneg %p113
        $region22: #{tpu_custom_call.1} parent=11 // pred_check_branch
          %264 = sbr.rel (%p262) target = $region24
        $region23: #{tpu_custom_call.1} parent=11 // pred_region
          %s266 = ssub.s32 128, 128
          %267 = vsyncadd [#allocation9], %s266
          %s269 = sshll.u32 [#allocation8], 4
          %s270 = int_to_ptr.vmem [resolvable:$true] %s269
          %272 = dma.hbm_to_vmem [thread:$0]  %s3, 128, %s270, [#allocation9]
        $region24: #{tpu_custom_call.1} parent=11 // pred_fallthru
          _
        // Predicated region
        $region25: #{tpu_custom_call.1} parent=11 // pred_check
          %p273 = pneg %p134
        $region26: #{tpu_custom_call.1} parent=11 // pred_check_branch
          %275 = sbr.rel (%p273) target = $region28
        $region27: #{tpu_custom_call.1} parent=11 // pred_region
          %s277 = ssub.s32 65536, 65536
          %278 = vsyncadd [#allocation9], %s277
          %s279 = sshll.u32 [#allocation10], 4
          %s280 = int_to_ptr.vmem [resolvable:$true] %s279
          %285 = dma.hbm_to_vmem [thread:$0]  %s4, 65536, %s280, [#allocation9], 256, 256, 16
        $region28: #{tpu_custom_call.1} parent=11 // pred_fallthru
          _
        // Predicated region
        $region29: #{tpu_custom_call.1} parent=11 // pred_check
          %p286 = pneg %p155
        $region30: #{tpu_custom_call.1} parent=11 // pred_check_branch
          %288 = sbr.rel (%p286) target = $region32
        $region31: #{tpu_custom_call.1} parent=11 // pred_region
          %s290 = ssub.s32 128, 128
          %291 = vsyncadd [#allocation12], %s290
          %s292 = sshll.u32 [#allocation11], 4
          %s293 = int_to_ptr.vmem [resolvable:$true] %s292
          %298 = dma.hbm_to_vmem [thread:$0]  %s5, 128, %s293, [#allocation12], 32, 32, 2
        $region32: #{tpu_custom_call.1} parent=11 // pred_fallthru
          _
        // Predicated region
        $region33: #{tpu_custom_call.1} parent=11 // pred_check
          %p299 = pneg %p176
        $region34: #{tpu_custom_call.1} parent=11 // pred_check_branch
          %301 = sbr.rel (%p299) target = $region36
        $region35: #{tpu_custom_call.1} parent=11 // pred_region
          %s303 = ssub.s32 128, 128
          %304 = vsyncadd [#allocation12], %s303
          %s305 = sshll.u32 [#allocation13], 4
          %s306 = int_to_ptr.vmem [resolvable:$true] %s305
          %311 = dma.hbm_to_vmem [thread:$0]  %s6, 128, %s306, [#allocation12], 32, 32, 2
        $region36: #{tpu_custom_call.1} parent=11 // pred_fallthru
          _
        // Predicated region
        $region37: #{tpu_custom_call.1} parent=11 // pred_check
          %p312 = pneg %p197
        $region38: #{tpu_custom_call.1} parent=11 // pred_check_branch
          %314 = sbr.rel (%p312) target = $region40
        $region39: #{tpu_custom_call.1} parent=11 // pred_region
          %s316 = ssub.s32 2048, 2048
          %317 = vsyncadd [#allocation15], %s316
          %s318 = sshll.u32 [#allocation14], 4
          %s319 = int_to_ptr.vmem [resolvable:$true] %s318
          %324 = dma.hbm_to_vmem [thread:$0]  %s7, 2048, %s319, [#allocation15], 128, 128, 8
        $region40: #{tpu_custom_call.1} parent=11 // pred_fallthru
          _
      $region12: #{tpu_custom_call.1} parent=5 // pred_fallthru
        _
      %p325 = scmp.lt.s32.totalorder %s24, 2
      // Predicated region
      $region41: #{tpu_custom_call.1} parent=5 // pred_check
        %p326 = pneg %p325
      $region42: #{tpu_custom_call.1} parent=5 // pred_check_branch
        %328 = sbr.rel (%p326) target = $region44
      $region43: #{tpu_custom_call.1} parent=5 // pred_region
        // Predicated region
        $region45: #{tpu_custom_call.1} parent=43 // pred_check
          %p329 = pneg %p44
        $region46: #{tpu_custom_call.1} parent=43 // pred_check_branch
          %331 = sbr.rel (%p329) target = $region48
        $region47: #{tpu_custom_call.1} parent=43 // pred_region
          %s332 = sand.u32 %s34, 1
          %s333 = scalar_lea.sflag [#allocation3], %s332
          %s334 = sand.u32 %s34, 1
          %s335 = scalar_lea.vmem [#allocation2], %s334
          %s337 = ssub.s32 16, 16
          %338 = vsyncadd %s333, %s337
          %s339 = smul.addr %s24, 16
          %s340 = scalar_lea.hbm %s0, %s339
          %s342 = sshll.u32 %s335, 4
          %s343 = int_to_ptr.vmem [resolvable:$true] %s342
          %345 = dma.hbm_to_vmem [thread:$0]  %s340, 16, %s343, %s333
        $region48: #{tpu_custom_call.1} parent=43 // pred_fallthru
          _
      $region44: #{tpu_custom_call.1} parent=5 // pred_fallthru
        _
      %p346 = scmp.le.s32.totalorder 1, %s24
      %p347 = scmp.lt.s32.totalorder %s24, 3
      %p348 = pnand %p346, %p347
      %p349 = pneg %p348
      // Predicated region
      $region49: #{tpu_custom_call.1} parent=5 // pred_check
        _
      $region50: #{tpu_custom_call.1} parent=5 // pred_check_branch
        %351 = sbr.rel (%p348) target = $region52
      $region51: #{tpu_custom_call.1} parent=5 // pred_region
        %s352 = ssub.s32 %s24, 1
        %s353 = sand.u32 %s37, 1
        %s354 = scalar_lea.sflag [#allocation3], %s353
        %s355 = sand.u32 %s37, 1
        %s356 = scalar_lea.vmem [#allocation2], %s355
        // Predicated region
        $region53: #{tpu_custom_call.1} parent=51 // pred_check
          %p357 = pneg %p50
        $region54: #{tpu_custom_call.1} parent=51 // pred_check_branch
          %359 = sbr.rel (%p357) target = $region56
        $region55: #{tpu_custom_call.1} parent=51 // pred_region
          %360 = dma.done %s354, 16
        $region56: #{tpu_custom_call.1} parent=51 // pred_fallthru
          _
        // Predicated region
        $region57: #{tpu_custom_call.1} parent=51 // pred_check
          %p361 = pneg %p71
        $region58: #{tpu_custom_call.1} parent=51 // pred_check_branch
          %363 = sbr.rel (%p361) target = $region60
        $region59: #{tpu_custom_call.1} parent=51 // pred_region
          %364 = dma.done [#allocation6], 4096
        $region60: #{tpu_custom_call.1} parent=51 // pred_fallthru
          _
        // Predicated region
        $region61: #{tpu_custom_call.1} parent=51 // pred_check
          %p365 = pneg %p92
        $region62: #{tpu_custom_call.1} parent=51 // pred_check_branch
          %367 = sbr.rel (%p365) target = $region64
        $region63: #{tpu_custom_call.1} parent=51 // pred_region
          %368 = dma.done [#allocation6], 128
        $region64: #{tpu_custom_call.1} parent=51 // pred_fallthru
          _
        // Predicated region
        $region65: #{tpu_custom_call.1} parent=51 // pred_check
          %p369 = pneg %p113
        $region66: #{tpu_custom_call.1} parent=51 // pred_check_branch
          %371 = sbr.rel (%p369) target = $region68
        $region67: #{tpu_custom_call.1} parent=51 // pred_region
          %372 = dma.done [#allocation9], 128
        $region68: #{tpu_custom_call.1} parent=51 // pred_fallthru
          _
        // Predicated region
        $region69: #{tpu_custom_call.1} parent=51 // pred_check
          %p373 = pneg %p134
        $region70: #{tpu_custom_call.1} parent=51 // pred_check_branch
          %375 = sbr.rel (%p373) target = $region72
        $region71: #{tpu_custom_call.1} parent=51 // pred_region
          %376 = dma.done [#allocation9], 65536
        $region72: #{tpu_custom_call.1} parent=51 // pred_fallthru
          _
        // Predicated region
        $region73: #{tpu_custom_call.1} parent=51 // pred_check
          %p377 = pneg %p155
        $region74: #{tpu_custom_call.1} parent=51 // pred_check_branch
          %379 = sbr.rel (%p377) target = $region76
        $region75: #{tpu_custom_call.1} parent=51 // pred_region
          %380 = dma.done [#allocation12], 128
        $region76: #{tpu_custom_call.1} parent=51 // pred_fallthru
          _
        // Predicated region
        $region77: #{tpu_custom_call.1} parent=51 // pred_check
          %p381 = pneg %p176
        $region78: #{tpu_custom_call.1} parent=51 // pred_check_branch
          %383 = sbr.rel (%p381) target = $region80
        $region79: #{tpu_custom_call.1} parent=51 // pred_region
          %384 = dma.done [#allocation12], 128
        $region80: #{tpu_custom_call.1} parent=51 // pred_fallthru
          _
        // Predicated region
        $region81: #{tpu_custom_call.1} parent=51 // pred_check
          %p385 = pneg %p197
        $region82: #{tpu_custom_call.1} parent=51 // pred_check_branch
          %387 = sbr.rel (%p385) target = $region84
        $region83: #{tpu_custom_call.1} parent=51 // pred_region
          %388 = dma.done [#allocation15], 2048
        $region84: #{tpu_custom_call.1} parent=51 // pred_fallthru
          _
        %s389 = sand.u32 %s37, 1
        %s390 = scalar_lea.sflag [#allocation3], %s389
        %s391 = sand.u32 %s37, 1
        %s392 = scalar_lea.vmem [#allocation2], %s391
        %p393 = pneg %p50
        %p394 = pneg %p47
        %p395 = pneg %p71
        %p396 = pneg %p68
        %p397 = pneg %p92
        %p398 = pneg %p89
        %p399 = pneg %p113
        %p400 = pneg %p110
        %p401 = pneg %p134
        %p402 = pneg %p131
        %p403 = pneg %p155
        %p404 = pneg %p152
        %p405 = pneg %p176
        %p406 = pneg %p173
        %p407 = pneg %p197
        %p408 = pneg %p194
        %p409 = pneg %p223
        %p410 = pneg %p220
        %s411 = sand.u32 %s210, 1
        %s412 = scalar_lea.sflag [#allocation4], %s411
        %s413 = sand.u32 %s210, 1
        %s414 = smul.addr %s413, 128
        %s415 = scalar_lea.vmem [#allocation16], %s414
        %v416 = vld [vmem:[%s356] sm:$0x1]
        %v417 = vld [vmem:[#allocation5] sm:$0xff]
        %v418 = vld [vmem:[#allocation5 + $0x8] sm:$0xff]
        %v419 = vld [vmem:[#allocation5 + $0x10] sm:$0xff]
        %v420 = vld [vmem:[#allocation5 + $0x18] sm:$0xff]
        %v421 = vld [vmem:[#allocation5 + $0x20] sm:$0xff]
        %v422 = vld [vmem:[#allocation5 + $0x28] sm:$0xff]
        %v423 = vld [vmem:[#allocation5 + $0x30] sm:$0xff]
        %v424 = vld [vmem:[#allocation5 + $0x38] sm:$0xff]
        %v425 = vld [vmem:[#allocation5 + $0x40] sm:$0xff]
        %v426 = vld [vmem:[#allocation5 + $0x48] sm:$0xff]
        %v427 = vld [vmem:[#allocation5 + $0x50] sm:$0xff]
        %v428 = vld [vmem:[#allocation5 + $0x58] sm:$0xff]
        %v429 = vld [vmem:[#allocation5 + $0x60] sm:$0xff]
        %v430 = vld [vmem:[#allocation5 + $0x68] sm:$0xff]
        %v431 = vld [vmem:[#allocation5 + $0x70] sm:$0xff]
        %v432 = vld [vmem:[#allocation5 + $0x78] sm:$0xff]
        %v433 = vld [vmem:[#allocation5 + $0x80] sm:$0xff]
        %v434 = vld [vmem:[#allocation5 + $0x88] sm:$0xff]
        %v435 = vld [vmem:[#allocation5 + $0x90] sm:$0xff]
        %v436 = vld [vmem:[#allocation5 + $0x98] sm:$0xff]
        %v437 = vld [vmem:[#allocation5 + $0xa0] sm:$0xff]
        %v438 = vld [vmem:[#allocation5 + $0xa8] sm:$0xff]
        %v439 = vld [vmem:[#allocation5 + $0xb0] sm:$0xff]
        %v440 = vld [vmem:[#allocation5 + $0xb8] sm:$0xff]
        %v441 = vld [vmem:[#allocation5 + $0xc0] sm:$0xff]
        %v442 = vld [vmem:[#allocation5 + $0xc8] sm:$0xff]
        %v443 = vld [vmem:[#allocation5 + $0xd0] sm:$0xff]
        %v444 = vld [vmem:[#allocation5 + $0xd8] sm:$0xff]
        %v445 = vld [vmem:[#allocation5 + $0xe0] sm:$0xff]
        %v446 = vld [vmem:[#allocation5 + $0xe8] sm:$0xff]
        %v447 = vld [vmem:[#allocation5 + $0xf0] sm:$0xff]
        %v448 = vld [vmem:[#allocation5 + $0xf8] sm:$0xff]
        %vm449 = vcmask 261120
        %v451 = vsel %vm449, %v416, 0
        %453 = vmatprep.subr.mxu0 %v418
        %454 = vmatpush1.msra.mxu0 %v417
        %455 = vmatprep.subr.mxu0 %v426
        %456 = vmatpush1.msra.mxu0 %v425
        %457 = vmatprep.subr.mxu0 %v434
        %458 = vmatpush1.msra.mxu0 %v433
        %459 = vmatprep.subr.mxu0 %v442
        %460 = vmatpush1.msra.mxu0 %v441
        %461 = vmatprep.subr.mxu0 0.0
        %462 = vmatpush1.msra.mxu0 0.0
        %463 = vmatprep.subr.mxu0 0.0
        %464 = vmatpush1.msra.mxu0 0.0
        %465 = vmatprep.subr.mxu0 0.0
        %466 = vmatpush1.msra.mxu0 0.0
        %467 = vmatprep.subr.mxu0 0.0
        %468 = vmatpush1.msra.mxu0 0.0
        %469 = vmatprep.subr.mxu0 0.0
        %470 = vmatpush1.msra.mxu0 0.0
        %471 = vmatprep.subr.mxu0 0.0
        %472 = vmatpush1.msra.mxu0 0.0
        %473 = vmatprep.subr.mxu0 0.0
        %474 = vmatpush1.msra.mxu0 0.0
        %475 = vmatprep.subr.mxu0 0.0
        %476 = vmatpush1.msra.mxu0 0.0
        %477 = vmatprep.subr.mxu0 0.0
        %478 = vmatpush1.msra.mxu0 0.0
        %479 = vmatprep.subr.mxu0 0.0
        %480 = vmatpush1.msra.mxu0 0.0
        %481 = vmatprep.subr.mxu0 0.0
        %482 = vmatpush1.msra.mxu0 0.0
        %483 = vmatprep.subr.mxu0 0.0
        %484 = vmatpush1.msra.mxu0 0.0
        %485 = vmatprep.subr.mxu0 0.0
        %486 = vmatpush1.msra.mxu0 0.0
        %487 = vmatprep.subr.mxu0 0.0
        %488 = vmatpush1.msra.mxu0 0.0
        %489 = vmatprep.subr.mxu0 0.0
        %490 = vmatpush1.msra.mxu0 0.0
        %491 = vmatprep.subr.mxu0 0.0
        %492 = vmatpush1.msra.mxu0 0.0
        %493 = vmatprep.subr.mxu0 0.0
        %494 = vmatpush1.msra.mxu0 0.0
        %495 = vmatprep.subr.mxu0 0.0
        %496 = vmatpush1.msra.mxu0 0.0
        %497 = vmatprep.subr.mxu0 0.0
        %498 = vmatpush1.msra.mxu0 0.0
        %499 = vmatprep.subr.mxu0 0.0
        %500 = vmatpush1.msra.mxu0 0.0
        %501 = vmatprep.subr.mxu0 0.0
        %502 = vmatpush1.msra.mxu0 0.0
        %503 = vmatprep.subr.mxu0 0.0
        %504 = vmatpush1.msra.mxu0 0.0
        %505 = vmatprep.subr.mxu0 0.0
        %506 = vmatpush1.msra.mxu0 0.0
        %507 = vmatprep.subr.mxu0 0.0
        %508 = vmatpush1.msra.mxu0 0.0
        %509 = vmatprep.subr.mxu0 0.0
        %510 = vmatpush1.msra.mxu0 0.0
        %511 = vmatprep.subr.mxu0 0.0
        %512 = vmatpush1.msra.mxu0 0.0
        %513 = vmatprep.subr.mxu0 0.0
        %514 = vmatpush1.msra.mxu0 0.0
        %515 = vmatprep.subr.mxu0 0.0
        %516 = vmatpush1.msra.mxu0 0.0
        %517 = vmatprep.mubr.f32.mxu0 0.0
        %518 = vmatmul.mubr.f32.gmra.mrb[0].mxu0 %v451
        %v519 = vpop.f32.mrb[0].mxu0
        %v520 = vadd.f32 0.0, %v519
        %v521 = vpop.f32.mrb[0].mxu0
        %v522 = vadd.f32 0.0, %v521
        %523 = vdwg.mxu0
        %524 = vmatprep.subr.mxu0 %v420
        %525 = vmatpush1.msra.mxu0 %v419
        %526 = vmatprep.subr.mxu0 %v428
        %527 = vmatpush1.msra.mxu0 %v427
        %528 = vmatprep.subr.mxu0 %v436
        %529 = vmatpush1.msra.mxu0 %v435
        %530 = vmatprep.subr.mxu0 %v444
        %531 = vmatpush1.msra.mxu0 %v443
        %532 = vmatprep.subr.mxu0 0.0
        %533 = vmatpush1.msra.mxu0 0.0
        %534 = vmatprep.subr.mxu0 0.0
        %535 = vmatpush1.msra.mxu0 0.0
        %536 = vmatprep.subr.mxu0 0.0
        %537 = vmatpush1.msra.mxu0 0.0
        %538 = vmatprep.subr.mxu0 0.0
        %539 = vmatpush1.msra.mxu0 0.0
        %540 = vmatprep.subr.mxu0 0.0
        %541 = vmatpush1.msra.mxu0 0.0
        %542 = vmatprep.subr.mxu0 0.0
        %543 = vmatpush1.msra.mxu0 0.0
        %544 = vmatprep.subr.mxu0 0.0
        %545 = vmatpush1.msra.mxu0 0.0
        %546 = vmatprep.subr.mxu0 0.0
        %547 = vmatpush1.msra.mxu0 0.0
        %548 = vmatprep.subr.mxu0 0.0
        %549 = vmatpush1.msra.mxu0 0.0
        %550 = vmatprep.subr.mxu0 0.0
        %551 = vmatpush1.msra.mxu0 0.0
        %552 = vmatprep.subr.mxu0 0.0
        %553 = vmatpush1.msra.mxu0 0.0
        %554 = vmatprep.subr.mxu0 0.0
        %555 = vmatpush1.msra.mxu0 0.0
        %556 = vmatprep.subr.mxu0 0.0
        %557 = vmatpush1.msra.mxu0 0.0
        %558 = vmatprep.subr.mxu0 0.0
        %559 = vmatpush1.msra.mxu0 0.0
        %560 = vmatprep.subr.mxu0 0.0
        %561 = vmatpush1.msra.mxu0 0.0
        %562 = vmatprep.subr.mxu0 0.0
        %563 = vmatpush1.msra.mxu0 0.0
        %564 = vmatprep.subr.mxu0 0.0
        %565 = vmatpush1.msra.mxu0 0.0
        %566 = vmatprep.subr.mxu0 0.0
        %567 = vmatpush1.msra.mxu0 0.0
        %568 = vmatprep.subr.mxu0 0.0
        %569 = vmatpush1.msra.mxu0 0.0
        %570 = vmatprep.subr.mxu0 0.0
        %571 = vmatpush1.msra.mxu0 0.0
        %572 = vmatprep.subr.mxu0 0.0
        %573 = vmatpush1.msra.mxu0 0.0
        %574 = vmatprep.subr.mxu0 0.0
        %575 = vmatpush1.msra.mxu0 0.0
        %576 = vmatprep.subr.mxu0 0.0
        %577 = vmatpush1.msra.mxu0 0.0
        %578 = vmatprep.subr.mxu0 0.0
        %579 = vmatpush1.msra.mxu0 0.0
        %580 = vmatprep.subr.mxu0 0.0
        %581 = vmatpush1.msra.mxu0 0.0
        %582 = vmatprep.subr.mxu0 0.0
        %583 = vmatpush1.msra.mxu0 0.0
        %584 = vmatprep.subr.mxu0 0.0
        %585 = vmatpush1.msra.mxu0 0.0
        %586 = vmatprep.subr.mxu0 0.0
        %587 = vmatpush1.msra.mxu0 0.0
        %588 = vmatprep.mubr.f32.mxu0 0.0
        %589 = vmatmul.mubr.f32.gmra.mrb[0].mxu0 %v451
        %v590 = vpop.f32.mrb[0].mxu0
        %v591 = vadd.f32 0.0, %v590
        %v592 = vpop.f32.mrb[0].mxu0
        %v593 = vadd.f32 0.0, %v592
        %594 = vdwg.mxu0
        %595 = vmatprep.subr.mxu0 %v422
        %596 = vmatpush1.msra.mxu0 %v421
        %597 = vmatprep.subr.mxu0 %v430
        %598 = vmatpush1.msra.mxu0 %v429
        %599 = vmatprep.subr.mxu0 %v438
        %600 = vmatpush1.msra.mxu0 %v437
        %601 = vmatprep.subr.mxu0 %v446
        %602 = vmatpush1.msra.mxu0 %v445
        %603 = vmatprep.subr.mxu0 0.0
        %604 = vmatpush1.msra.mxu0 0.0
        %605 = vmatprep.subr.mxu0 0.0
        %606 = vmatpush1.msra.mxu0 0.0
        %607 = vmatprep.subr.mxu0 0.0
        %608 = vmatpush1.msra.mxu0 0.0
        %609 = vmatprep.subr.mxu0 0.0
        %610 = vmatpush1.msra.mxu0 0.0
        %611 = vmatprep.subr.mxu0 0.0
        %612 = vmatpush1.msra.mxu0 0.0
        %613 = vmatprep.subr.mxu0 0.0
        %614 = vmatpush1.msra.mxu0 0.0
        %615 = vmatprep.subr.mxu0 0.0
        %616 = vmatpush1.msra.mxu0 0.0
        %617 = vmatprep.subr.mxu0 0.0
        %618 = vmatpush1.msra.mxu0 0.0
        %619 = vmatprep.subr.mxu0 0.0
        %620 = vmatpush1.msra.mxu0 0.0
        %621 = vmatprep.subr.mxu0 0.0
        %622 = vmatpush1.msra.mxu0 0.0
        %623 = vmatprep.subr.mxu0 0.0
        %624 = vmatpush1.msra.mxu0 0.0
        %625 = vmatprep.subr.mxu0 0.0
        %626 = vmatpush1.msra.mxu0 0.0
        %627 = vmatprep.subr.mxu0 0.0
        %628 = vmatpush1.msra.mxu0 0.0
        %629 = vmatprep.subr.mxu0 0.0
        %630 = vmatpush1.msra.mxu0 0.0
        %631 = vmatprep.subr.mxu0 0.0
        %632 = vmatpush1.msra.mxu0 0.0
        %633 = vmatprep.subr.mxu0 0.0
        %634 = vmatpush1.msra.mxu0 0.0
        %635 = vmatprep.subr.mxu0 0.0
        %636 = vmatpush1.msra.mxu0 0.0
        %637 = vmatprep.subr.mxu0 0.0
        %638 = vmatpush1.msra.mxu0 0.0
        %639 = vmatprep.subr.mxu0 0.0
        %640 = vmatpush1.msra.mxu0 0.0
        %641 = vmatprep.subr.mxu0 0.0
        %642 = vmatpush1.msra.mxu0 0.0
        %643 = vmatprep.subr.mxu0 0.0
        %644 = vmatpush1.msra.mxu0 0.0
        %645 = vmatprep.subr.mxu0 0.0
        %646 = vmatpush1.msra.mxu0 0.0
        %647 = vmatprep.subr.mxu0 0.0
        %648 = vmatpush1.msra.mxu0 0.0
        %649 = vmatprep.subr.mxu0 0.0
        %650 = vmatpush1.msra.mxu0 0.0
        %651 = vmatprep.subr.mxu0 0.0
        %652 = vmatpush1.msra.mxu0 0.0
        %653 = vmatprep.subr.mxu0 0.0
        %654 = vmatpush1.msra.mxu0 0.0
        %655 = vmatprep.subr.mxu0 0.0
        %656 = vmatpush1.msra.mxu0 0.0
        %657 = vmatprep.subr.mxu0 0.0
        %658 = vmatpush1.msra.mxu0 0.0
        %659 = vmatprep.mubr.f32.mxu0 0.0
        %660 = vmatmul.mubr.f32.gmra.mrb[0].mxu0 %v451
        %v661 = vpop.f32.mrb[0].mxu0
        %v662 = vadd.f32 0.0, %v661
        %v663 = vpop.f32.mrb[0].mxu0
        %v664 = vadd.f32 0.0, %v663
        %665 = vdwg.mxu0
        %666 = vmatprep.subr.mxu0 %v424
        %667 = vmatpush1.msra.mxu0 %v423
        %668 = vmatprep.subr.mxu0 %v432
        %669 = vmatpush1.msra.mxu0 %v431
        %670 = vmatprep.subr.mxu0 %v440
        %671 = vmatpush1.msra.mxu0 %v439
        %672 = vmatprep.subr.mxu0 %v448
        %673 = vmatpush1.msra.mxu0 %v447
        %674 = vmatprep.subr.mxu0 0.0
        %675 = vmatpush1.msra.mxu0 0.0
        %676 = vmatprep.subr.mxu0 0.0
        %677 = vmatpush1.msra.mxu0 0.0
        %678 = vmatprep.subr.mxu0 0.0
        %679 = vmatpush1.msra.mxu0 0.0
        %680 = vmatprep.subr.mxu0 0.0
        %681 = vmatpush1.msra.mxu0 0.0
        %682 = vmatprep.subr.mxu0 0.0
        %683 = vmatpush1.msra.mxu0 0.0
        %684 = vmatprep.subr.mxu0 0.0
        %685 = vmatpush1.msra.mxu0 0.0
        %686 = vmatprep.subr.mxu0 0.0
        %687 = vmatpush1.msra.mxu0 0.0
        %688 = vmatprep.subr.mxu0 0.0
        %689 = vmatpush1.msra.mxu0 0.0
        %690 = vmatprep.subr.mxu0 0.0
        %691 = vmatpush1.msra.mxu0 0.0
        %692 = vmatprep.subr.mxu0 0.0
        %693 = vmatpush1.msra.mxu0 0.0
        %694 = vmatprep.subr.mxu0 0.0
        %695 = vmatpush1.msra.mxu0 0.0
        %696 = vmatprep.subr.mxu0 0.0
        %697 = vmatpush1.msra.mxu0 0.0
        %698 = vmatprep.subr.mxu0 0.0
        %699 = vmatpush1.msra.mxu0 0.0
        %700 = vmatprep.subr.mxu0 0.0
        %701 = vmatpush1.msra.mxu0 0.0
        %702 = vmatprep.subr.mxu0 0.0
        %703 = vmatpush1.msra.mxu0 0.0
        %704 = vmatprep.subr.mxu0 0.0
        %705 = vmatpush1.msra.mxu0 0.0
        %706 = vmatprep.subr.mxu0 0.0
        %707 = vmatpush1.msra.mxu0 0.0
        %708 = vmatprep.subr.mxu0 0.0
        %709 = vmatpush1.msra.mxu0 0.0
        %710 = vmatprep.subr.mxu0 0.0
        %711 = vmatpush1.msra.mxu0 0.0
        %712 = vmatprep.subr.mxu0 0.0
        %713 = vmatpush1.msra.mxu0 0.0
        %714 = vmatprep.subr.mxu0 0.0
        %715 = vmatpush1.msra.mxu0 0.0
        %716 = vmatprep.subr.mxu0 0.0
        %717 = vmatpush1.msra.mxu0 0.0
        %718 = vmatprep.subr.mxu0 0.0
        %719 = vmatpush1.msra.mxu0 0.0
        %720 = vmatprep.subr.mxu0 0.0
        %721 = vmatpush1.msra.mxu0 0.0
        %722 = vmatprep.subr.mxu0 0.0
        %723 = vmatpush1.msra.mxu0 0.0
        %724 = vmatprep.subr.mxu0 0.0
        %725 = vmatpush1.msra.mxu0 0.0
        %726 = vmatprep.subr.mxu0 0.0
        %727 = vmatpush1.msra.mxu0 0.0
        %728 = vmatprep.subr.mxu0 0.0
        %729 = vmatpush1.msra.mxu0 0.0
        %730 = vmatprep.mubr.f32.mxu0 0.0
        %731 = vmatmul.mubr.f32.gmra.mrb[0].mxu0 %v451
        %v732 = vpop.f32.mrb[0].mxu0
        %v733 = vadd.f32 0.0, %v732
        %v734 = vpop.f32.mrb[0].mxu0
        %v735 = vadd.f32 0.0, %v734
        %736 = vdwg.mxu0
        %v737 = vlaneseq
        %v738 = vshrl.u32 %v737, 7
        %vm739 = vcmp.eq.s32.totalorder %v738, 0
        %v740 = vlaneseq
        %v741 = vshrl.u32 %v740, 7
        %v742 = vsub.s32 0, %v741
        %v743 = vrot.slane %v520, %v742
        %v744 = vlaneseq
        %v745 = vshrl.u32 %v744, 7
        %v746 = vsub.s32 0, %v745
        %v747 = vrot.slane %v522, %v746
        %v748 = vsel %vm739, %v743, 0.0
        %v749 = vsel %vm739, %v747, 0.0
        %v750 = vadd.f32 %v748, 0.0
        %v751 = vadd.f32 %v749, 0.0
        %vm752 = vcmp.eq.s32.totalorder %v738, 1
        %v753 = vlaneseq
        %v754 = vshrl.u32 %v753, 7
        %v755 = vsub.s32 0, %v754
        %v756 = vrot.slane %v591, %v755
        %v757 = vlaneseq
        %v758 = vshrl.u32 %v757, 7
        %v759 = vsub.s32 0, %v758
        %v760 = vrot.slane %v593, %v759
        %v761 = vsel %vm752, %v756, 0.0
        %v762 = vsel %vm752, %v760, 0.0
        %v763 = vadd.f32 %v750, %v761
        %v764 = vadd.f32 %v751, %v762
        %vm765 = vcmp.eq.s32.totalorder %v738, 2
        %v766 = vlaneseq
        %v767 = vshrl.u32 %v766, 7
        %v768 = vsub.s32 0, %v767
        %v769 = vrot.slane %v662, %v768
        %v770 = vlaneseq
        %v771 = vshrl.u32 %v770, 7
        %v772 = vsub.s32 0, %v771
        %v773 = vrot.slane %v664, %v772
        %v774 = vsel %vm765, %v769, 0.0
        %v775 = vsel %vm765, %v773, 0.0
        %v776 = vadd.f32 %v763, %v774
        %v777 = vadd.f32 %v764, %v775
        %vm778 = vcmp.eq.s32.totalorder %v738, 3
        %v779 = vlaneseq
        %v780 = vshrl.u32 %v779, 7
        %v781 = vsub.s32 0, %v780
        %v782 = vrot.slane %v733, %v781
        %v783 = vlaneseq
        %v784 = vshrl.u32 %v783, 7
        %v785 = vsub.s32 0, %v784
        %v786 = vrot.slane %v735, %v785
        %v787 = vsel %vm778, %v782, 0.0
        %v788 = vsel %vm778, %v786, 0.0
        %v789 = vadd.f32 %v776, %v787
        %v790 = vadd.f32 %v777, %v788
        %v791 = vld [vmem:[#allocation7] sm:$0xff]
        %v793 = vcombine.high %v791, %v791
        %v795 = vmul.f32 %v789, %v791
        %v796 = vmul.f32 %v790, %v793
        %v797 = vld [vmem:[#allocation8] sm:$0xff]
        %v799 = vcombine.high %v797, %v797
        %v801 = vadd.f32 %v795, %v797
        %v802 = vadd.f32 %v796, %v799
        %v803 = vxor.u32 %v802, 2147483648
        %v804 = vmul.f32 %v803, 1.442695
        %v805 = vpow.pop %v804
        %v806 = vadd.f32 %v805, 1.0
        %v807 = vrcp.pop %v806
        %v808 = vmul.f32 1.0, %v807
        %v809 = vmul.f32 %v801, %v808
        %v810 = vld [vmem:[#allocation10] sm:$0xff]
        %v811 = vld [vmem:[#allocation10 + $0x8] sm:$0xff]
        %v812 = vld [vmem:[#allocation10 + $0x10] sm:$0xff]
        %v813 = vld [vmem:[#allocation10 + $0x18] sm:$0xff]
        %v814 = vld [vmem:[#allocation10 + $0x20] sm:$0xff]
        %v815 = vld [vmem:[#allocation10 + $0x28] sm:$0xff]
        %v816 = vld [vmem:[#allocation10 + $0x30] sm:$0xff]
        %v817 = vld [vmem:[#allocation10 + $0x38] sm:$0xff]
        %v818 = vld [vmem:[#allocation10 + $0x40] sm:$0xff]
        %v819 = vld [vmem:[#allocation10 + $0x48] sm:$0xff]
        %v820 = vld [vmem:[#allocation10 + $0x50] sm:$0xff]
        %v821 = vld [vmem:[#allocation10 + $0x58] sm:$0xff]
        %v822 = vld [vmem:[#allocation10 + $0x60] sm:$0xff]
        %v823 = vld [vmem:[#allocation10 + $0x68] sm:$0xff]
        %v824 = vld [vmem:[#allocation10 + $0x70] sm:$0xff]
        %v825 = vld [vmem:[#allocation10 + $0x78] sm:$0xff]
        %v826 = vld [vmem:[#allocation10 + $0x80] sm:$0xff]
        %v827 = vld [vmem:[#allocation10 + $0x88] sm:$0xff]
        %v828 = vld [vmem:[#allocation10 + $0x90] sm:$0xff]
        %v829 = vld [vmem:[#allocation10 + $0x98] sm:$0xff]
        %v830 = vld [vmem:[#allocation10 + $0xa0] sm:$0xff]
        %v831 = vld [vmem:[#allocation10 + $0xa8] sm:$0xff]
        %v832 = vld [vmem:[#allocation10 + $0xb0] sm:$0xff]
        %v833 = vld [vmem:[#allocation10 + $0xb8] sm:$0xff]
        %v834 = vld [vmem:[#allocation10 + $0xc0] sm:$0xff]
        %v835 = vld [vmem:[#allocation10 + $0xc8] sm:$0xff]
        %v836 = vld [vmem:[#allocation10 + $0xd0] sm:$0xff]
        %v837 = vld [vmem:[#allocation10 + $0xd8] sm:$0xff]
        %v838 = vld [vmem:[#allocation10 + $0xe0] sm:$0xff]
        %v839 = vld [vmem:[#allocation10 + $0xe8] sm:$0xff]
        %v840 = vld [vmem:[#allocation10 + $0xf0] sm:$0xff]
        %v841 = vld [vmem:[#allocation10 + $0xf8] sm:$0xff]
        %s842 = scalar_lea.vmem [#allocation10], 256
        %v843 = vld [vmem:[%s842] sm:$0xff]
        %v844 = vld [vmem:[%s842 + $0x8] sm:$0xff]
        %v845 = vld [vmem:[%s842 + $0x10] sm:$0xff]
        %v846 = vld [vmem:[%s842 + $0x18] sm:$0xff]
        %v847 = vld [vmem:[%s842 + $0x20] sm:$0xff]
        %v848 = vld [vmem:[%s842 + $0x28] sm:$0xff]
        %v849 = vld [vmem:[%s842 + $0x30] sm:$0xff]
        %v850 = vld [vmem:[%s842 + $0x38] sm:$0xff]
        %v851 = vld [vmem:[%s842 + $0x40] sm:$0xff]
        %v852 = vld [vmem:[%s842 + $0x48] sm:$0xff]
        %v853 = vld [vmem:[%s842 + $0x50] sm:$0xff]
        %v854 = vld [vmem:[%s842 + $0x58] sm:$0xff]
        %v855 = vld [vmem:[%s842 + $0x60] sm:$0xff]
        %v856 = vld [vmem:[%s842 + $0x68] sm:$0xff]
        %v857 = vld [vmem:[%s842 + $0x70] sm:$0xff]
        %v858 = vld [vmem:[%s842 + $0x78] sm:$0xff]
        %v859 = vld [vmem:[%s842 + $0x80] sm:$0xff]
        %v860 = vld [vmem:[%s842 + $0x88] sm:$0xff]
        %v861 = vld [vmem:[%s842 + $0x90] sm:$0xff]
        %v862 = vld [vmem:[%s842 + $0x98] sm:$0xff]
        %v863 = vld [vmem:[%s842 + $0xa0] sm:$0xff]
        %v864 = vld [vmem:[%s842 + $0xa8] sm:$0xff]
        %v865 = vld [vmem:[%s842 + $0xb0] sm:$0xff]
        %v866 = vld [vmem:[%s842 + $0xb8] sm:$0xff]
        %v867 = vld [vmem:[%s842 + $0xc0] sm:$0xff]
        %v868 = vld [vmem:[%s842 + $0xc8] sm:$0xff]
        %v869 = vld [vmem:[%s842 + $0xd0] sm:$0xff]
        %v870 = vld [vmem:[%s842 + $0xd8] sm:$0xff]
        %v871 = vld [vmem:[%s842 + $0xe0] sm:$0xff]
        %v872 = vld [vmem:[%s842 + $0xe8] sm:$0xff]
        %v873 = vld [vmem:[%s842 + $0xf0] sm:$0xff]
        %v874 = vld [vmem:[%s842 + $0xf8] sm:$0xff]
        %s875 = scalar_lea.vmem [#allocation10], 512
        %v876 = vld [vmem:[%s875] sm:$0xff]
        %v877 = vld [vmem:[%s875 + $0x8] sm:$0xff]
        %v878 = vld [vmem:[%s875 + $0x10] sm:$0xff]
        %v879 = vld [vmem:[%s875 + $0x18] sm:$0xff]
        %v880 = vld [vmem:[%s875 + $0x20] sm:$0xff]
        %v881 = vld [vmem:[%s875 + $0x28] sm:$0xff]
        %v882 = vld [vmem:[%s875 + $0x30] sm:$0xff]
        %v883 = vld [vmem:[%s875 + $0x38] sm:$0xff]
        %v884 = vld [vmem:[%s875 + $0x40] sm:$0xff]
        %v885 = vld [vmem:[%s875 + $0x48] sm:$0xff]
        %v886 = vld [vmem:[%s875 + $0x50] sm:$0xff]
        %v887 = vld [vmem:[%s875 + $0x58] sm:$0xff]
        %v888 = vld [vmem:[%s875 + $0x60] sm:$0xff]
        %v889 = vld [vmem:[%s875 + $0x68] sm:$0xff]
        %v890 = vld [vmem:[%s875 + $0x70] sm:$0xff]
        %v891 = vld [vmem:[%s875 + $0x78] sm:$0xff]
        %v892 = vld [vmem:[%s875 + $0x80] sm:$0xff]
        %v893 = vld [vmem:[%s875 + $0x88] sm:$0xff]
        %v894 = vld [vmem:[%s875 + $0x90] sm:$0xff]
        %v895 = vld [vmem:[%s875 + $0x98] sm:$0xff]
        %v896 = vld [vmem:[%s875 + $0xa0] sm:$0xff]
        %v897 = vld [vmem:[%s875 + $0xa8] sm:$0xff]
        %v898 = vld [vmem:[%s875 + $0xb0] sm:$0xff]
        %v899 = vld [vmem:[%s875 + $0xb8] sm:$0xff]
        %v900 = vld [vmem:[%s875 + $0xc0] sm:$0xff]
        %v901 = vld [vmem:[%s875 + $0xc8] sm:$0xff]
        %v902 = vld [vmem:[%s875 + $0xd0] sm:$0xff]
        %v903 = vld [vmem:[%s875 + $0xd8] sm:$0xff]
        %v904 = vld [vmem:[%s875 + $0xe0] sm:$0xff]
        %v905 = vld [vmem:[%s875 + $0xe8] sm:$0xff]
        %v906 = vld [vmem:[%s875 + $0xf0] sm:$0xff]
        %v907 = vld [vmem:[%s875 + $0xf8] sm:$0xff]
        %s908 = scalar_lea.vmem [#allocation10], 768
        %v909 = vld [vmem:[%s908] sm:$0xff]
        %v910 = vld [vmem:[%s908 + $0x8] sm:$0xff]
        %v911 = vld [vmem:[%s908 + $0x10] sm:$0xff]
        %v912 = vld [vmem:[%s908 + $0x18] sm:$0xff]
        %v913 = vld [vmem:[%s908 + $0x20] sm:$0xff]
        %v914 = vld [vmem:[%s908 + $0x28] sm:$0xff]
        %v915 = vld [vmem:[%s908 + $0x30] sm:$0xff]
        %v916 = vld [vmem:[%s908 + $0x38] sm:$0xff]
        %v917 = vld [vmem:[%s908 + $0x40] sm:$0xff]
        %v918 = vld [vmem:[%s908 + $0x48] sm:$0xff]
        %v919 = vld [vmem:[%s908 + $0x50] sm:$0xff]
        %v920 = vld [vmem:[%s908 + $0x58] sm:$0xff]
        %v921 = vld [vmem:[%s908 + $0x60] sm:$0xff]
        %v922 = vld [vmem:[%s908 + $0x68] sm:$0xff]
        %v923 = vld [vmem:[%s908 + $0x70] sm:$0xff]
        %v924 = vld [vmem:[%s908 + $0x78] sm:$0xff]
        %v925 = vld [vmem:[%s908 + $0x80] sm:$0xff]
        %v926 = vld [vmem:[%s908 + $0x88] sm:$0xff]
        %v927 = vld [vmem:[%s908 + $0x90] sm:$0xff]
        %v928 = vld [vmem:[%s908 + $0x98] sm:$0xff]
        %v929 = vld [vmem:[%s908 + $0xa0] sm:$0xff]
        %v930 = vld [vmem:[%s908 + $0xa8] sm:$0xff]
        %v931 = vld [vmem:[%s908 + $0xb0] sm:$0xff]
        %v932 = vld [vmem:[%s908 + $0xb8] sm:$0xff]
        %v933 = vld [vmem:[%s908 + $0xc0] sm:$0xff]
        %v934 = vld [vmem:[%s908 + $0xc8] sm:$0xff]
        %v935 = vld [vmem:[%s908 + $0xd0] sm:$0xff]
        %v936 = vld [vmem:[%s908 + $0xd8] sm:$0xff]
        %v937 = vld [vmem:[%s908 + $0xe0] sm:$0xff]
        %v938 = vld [vmem:[%s908 + $0xe8] sm:$0xff]
        %v939 = vld [vmem:[%s908 + $0xf0] sm:$0xff]
        %v940 = vld [vmem:[%s908 + $0xf8] sm:$0xff]
        %v941 = vld [vmem:[#allocation11] sm:$0x3]
        %v942 = vld [vmem:[#allocation13] sm:$0x3]
        %v943 = vlaneseq
        %v944 = vand.u32 %v943, 127
        %v945 = vsub.s32 %v738, 1
        %vm946 = vcmp.eq.s32.totalorder %v944, %v945
        %v947 = vsel %vm946, 1, 0
        %v948 = vcvt.s32.f32 %v947
        %v949 = vadd.s32 %v738, 1
        %vm950 = vcmp.eq.s32.totalorder %v944, %v949
        %v951 = vsel %vm950, 1, 0
        %v952 = vcvt.s32.f32 %v951
        %vm953 = vcmask 31744
        %v955 = vsel %vm953, %v948, 0
        %vm957 = vcmask 1043456
        %v959 = vsel %vm957, %v809, 0
        %961 = vmatprep.subr.mxu0 0.0
        %962 = vmatpush1.msra.mxu0 %v959
        %963 = vmatprep.subr.mxu0 0.0
        %964 = vmatpush1.msra.mxu0 0.0
        %965 = vmatprep.subr.mxu0 0.0
        %966 = vmatpush1.msra.mxu0 0.0
        %967 = vmatprep.subr.mxu0 0.0
        %968 = vmatpush1.msra.mxu0 0.0
        %969 = vmatprep.subr.mxu0 0.0
        %970 = vmatpush1.msra.mxu0 0.0
        %971 = vmatprep.subr.mxu0 0.0
        %972 = vmatpush1.msra.mxu0 0.0
        %973 = vmatprep.subr.mxu0 0.0
        %974 = vmatpush1.msra.mxu0 0.0
        %975 = vmatprep.subr.mxu0 0.0
        %976 = vmatpush1.msra.mxu0 0.0
        %977 = vmatprep.subr.mxu0 0.0
        %978 = vmatpush1.msra.mxu0 0.0
        %979 = vmatprep.subr.mxu0 0.0
        %980 = vmatpush1.msra.mxu0 0.0
        %981 = vmatprep.subr.mxu0 0.0
        %982 = vmatpush1.msra.mxu0 0.0
        %983 = vmatprep.subr.mxu0 0.0
        %984 = vmatpush1.msra.mxu0 0.0
        %985 = vmatprep.subr.mxu0 0.0
        %986 = vmatpush1.msra.mxu0 0.0
        %987 = vmatprep.subr.mxu0 0.0
        %988 = vmatpush1.msra.mxu0 0.0
        %989 = vmatprep.subr.mxu0 0.0
        %990 = vmatpush1.msra.mxu0 0.0
        %991 = vmatprep.subr.mxu0 0.0
        %992 = vmatpush1.msra.mxu0 0.0
        %993 = vmatprep.subr.mxu0 0.0
        %994 = vmatpush1.msra.mxu0 0.0
        %995 = vmatprep.subr.mxu0 0.0
        %996 = vmatpush1.msra.mxu0 0.0
        %997 = vmatprep.subr.mxu0 0.0
        %998 = vmatpush1.msra.mxu0 0.0
        %999 = vmatprep.subr.mxu0 0.0
        %1000 = vmatpush1.msra.mxu0 0.0
        %1001 = vmatprep.subr.mxu0 0.0
        %1002 = vmatpush1.msra.mxu0 0.0
        %1003 = vmatprep.subr.mxu0 0.0
        %1004 = vmatpush1.msra.mxu0 0.0
        %1005 = vmatprep.subr.mxu0 0.0
        %1006 = vmatpush1.msra.mxu0 0.0
        %1007 = vmatprep.subr.mxu0 0.0
        %1008 = vmatpush1.msra.mxu0 0.0
        %1009 = vmatprep.subr.mxu0 0.0
        %1010 = vmatpush1.msra.mxu0 0.0
        %1011 = vmatprep.subr.mxu0 0.0
        %1012 = vmatpush1.msra.mxu0 0.0
        %1013 = vmatprep.subr.mxu0 0.0
        %1014 = vmatpush1.msra.mxu0 0.0
        %1015 = vmatprep.subr.mxu0 0.0
        %1016 = vmatpush1.msra.mxu0 0.0
        %1017 = vmatprep.subr.mxu0 0.0
        %1018 = vmatpush1.msra.mxu0 0.0
        %1019 = vmatprep.subr.mxu0 0.0
        %1020 = vmatpush1.msra.mxu0 0.0
        %1021 = vmatprep.subr.mxu0 0.0
        %1022 = vmatpush1.msra.mxu0 0.0
        %1023 = vmatprep.subr.mxu0 0.0
        %1024 = vmatpush1.msra.mxu0 0.0
        %1025 = vmatprep.mubr.f32.mxu0 0.0
        %1026 = vmatmul.mubr.f32.gmra.mrb[0].mxu0 %v955
        %v1027 = vpop.f32.mrb[0].mxu0
        %v1028 = vadd.f32 0.0, %v1027
        %v1029 = vpop.f32.mrb[0].mxu0
        %1030 = vdwg.mxu0
        %v1032 = vsel %vm953, %v952, 0
        %1034 = vmatprep.subr.mxu0 0.0
        %1035 = vmatpush1.msra.mxu0 %v959
        %1036 = vmatprep.subr.mxu0 0.0
        %1037 = vmatpush1.msra.mxu0 0.0
        %1038 = vmatprep.subr.mxu0 0.0
        %1039 = vmatpush1.msra.mxu0 0.0
        %1040 = vmatprep.subr.mxu0 0.0
        %1041 = vmatpush1.msra.mxu0 0.0
        %1042 = vmatprep.subr.mxu0 0.0
        %1043 = vmatpush1.msra.mxu0 0.0
        %1044 = vmatprep.subr.mxu0 0.0
        %1045 = vmatpush1.msra.mxu0 0.0
        %1046 = vmatprep.subr.mxu0 0.0
        %1047 = vmatpush1.msra.mxu0 0.0
        %1048 = vmatprep.subr.mxu0 0.0
        %1049 = vmatpush1.msra.mxu0 0.0
        %1050 = vmatprep.subr.mxu0 0.0
        %1051 = vmatpush1.msra.mxu0 0.0
        %1052 = vmatprep.subr.mxu0 0.0
        %1053 = vmatpush1.msra.mxu0 0.0
        %1054 = vmatprep.subr.mxu0 0.0
        %1055 = vmatpush1.msra.mxu0 0.0
        %1056 = vmatprep.subr.mxu0 0.0
        %1057 = vmatpush1.msra.mxu0 0.0
        %1058 = vmatprep.subr.mxu0 0.0
        %1059 = vmatpush1.msra.mxu0 0.0
        %1060 = vmatprep.subr.mxu0 0.0
        %1061 = vmatpush1.msra.mxu0 0.0
        %1062 = vmatprep.subr.mxu0 0.0
        %1063 = vmatpush1.msra.mxu0 0.0
        %1064 = vmatprep.subr.mxu0 0.0
        %1065 = vmatpush1.msra.mxu0 0.0
        %1066 = vmatprep.subr.mxu0 0.0
        %1067 = vmatpush1.msra.mxu0 0.0
        %1068 = vmatprep.subr.mxu0 0.0
        %1069 = vmatpush1.msra.mxu0 0.0
        %1070 = vmatprep.subr.mxu0 0.0
        %1071 = vmatpush1.msra.mxu0 0.0
        %1072 = vmatprep.subr.mxu0 0.0
        %1073 = vmatpush1.msra.mxu0 0.0
        %1074 = vmatprep.subr.mxu0 0.0
        %1075 = vmatpush1.msra.mxu0 0.0
        %1076 = vmatprep.subr.mxu0 0.0
        %1077 = vmatpush1.msra.mxu0 0.0
        %1078 = vmatprep.subr.mxu0 0.0
        %1079 = vmatpush1.msra.mxu0 0.0
        %1080 = vmatprep.subr.mxu0 0.0
        %1081 = vmatpush1.msra.mxu0 0.0
        %1082 = vmatprep.subr.mxu0 0.0
        %1083 = vmatpush1.msra.mxu0 0.0
        %1084 = vmatprep.subr.mxu0 0.0
        %1085 = vmatpush1.msra.mxu0 0.0
        %1086 = vmatprep.subr.mxu0 0.0
        %1087 = vmatpush1.msra.mxu0 0.0
        %1088 = vmatprep.subr.mxu0 0.0
        %1089 = vmatpush1.msra.mxu0 0.0
        %1090 = vmatprep.subr.mxu0 0.0
        %1091 = vmatpush1.msra.mxu0 0.0
        %1092 = vmatprep.subr.mxu0 0.0
        %1093 = vmatpush1.msra.mxu0 0.0
        %1094 = vmatprep.subr.mxu0 0.0
        %1095 = vmatpush1.msra.mxu0 0.0
        %1096 = vmatprep.subr.mxu0 0.0
        %1097 = vmatpush1.msra.mxu0 0.0
        %1098 = vmatprep.mubr.f32.mxu0 0.0
        %1099 = vmatmul.mubr.f32.gmra.mrb[0].mxu0 %v1032
        %v1100 = vpop.f32.mrb[0].mxu0
        %v1101 = vadd.f32 0.0, %v1100
        %v1102 = vpop.f32.mrb[0].mxu0
        %1103 = vdwg.mxu0
        %1104 = vmatprep.subr.mxu0 %v844
        %1105 = vmatpush1.msra.mxu0 %v843
        %1106 = vmatprep.subr.mxu0 %v846
        %1107 = vmatpush1.msra.mxu0 %v845
        %1108 = vmatprep.subr.mxu0 %v848
        %1109 = vmatpush1.msra.mxu0 %v847
        %1110 = vmatprep.subr.mxu0 %v850
        %1111 = vmatpush1.msra.mxu0 %v849
        %1112 = vmatprep.subr.mxu0 %v852
        %1113 = vmatpush1.msra.mxu0 %v851
        %1114 = vmatprep.subr.mxu0 %v854
        %1115 = vmatpush1.msra.mxu0 %v853
        %1116 = vmatprep.subr.mxu0 %v856
        %1117 = vmatpush1.msra.mxu0 %v855
        %1118 = vmatprep.subr.mxu0 %v858
        %1119 = vmatpush1.msra.mxu0 %v857
        %1120 = vmatprep.subr.mxu0 %v860
        %1121 = vmatpush1.msra.mxu0 %v859
        %1122 = vmatprep.subr.mxu0 %v862
        %1123 = vmatpush1.msra.mxu0 %v861
        %1124 = vmatprep.subr.mxu0 %v864
        %1125 = vmatpush1.msra.mxu0 %v863
        %1126 = vmatprep.subr.mxu0 %v866
        %1127 = vmatpush1.msra.mxu0 %v865
        %1128 = vmatprep.subr.mxu0 %v868
        %1129 = vmatpush1.msra.mxu0 %v867
        %1130 = vmatprep.subr.mxu0 %v870
        %1131 = vmatpush1.msra.mxu0 %v869
        %1132 = vmatprep.subr.mxu0 %v872
        %1133 = vmatpush1.msra.mxu0 %v871
        %1134 = vmatprep.subr.mxu0 %v874
        %1135 = vmatpush1.msra.mxu0 %v873
        %1136 = vmatprep.subr.mxu0 0.0
        %1137 = vmatpush1.msra.mxu0 0.0
        %1138 = vmatprep.subr.mxu0 0.0
        %1139 = vmatpush1.msra.mxu0 0.0
        %1140 = vmatprep.subr.mxu0 0.0
        %1141 = vmatpush1.msra.mxu0 0.0
        %1142 = vmatprep.subr.mxu0 0.0
        %1143 = vmatpush1.msra.mxu0 0.0
        %1144 = vmatprep.subr.mxu0 0.0
        %1145 = vmatpush1.msra.mxu0 0.0
        %1146 = vmatprep.subr.mxu0 0.0
        %1147 = vmatpush1.msra.mxu0 0.0
        %1148 = vmatprep.subr.mxu0 0.0
        %1149 = vmatpush1.msra.mxu0 0.0
        %1150 = vmatprep.subr.mxu0 0.0
        %1151 = vmatpush1.msra.mxu0 0.0
        %1152 = vmatprep.subr.mxu0 0.0
        %1153 = vmatpush1.msra.mxu0 0.0
        %1154 = vmatprep.subr.mxu0 0.0
        %1155 = vmatpush1.msra.mxu0 0.0
        %1156 = vmatprep.subr.mxu0 0.0
        %1157 = vmatpush1.msra.mxu0 0.0
        %1158 = vmatprep.subr.mxu0 0.0
        %1159 = vmatpush1.msra.mxu0 0.0
        %1160 = vmatprep.subr.mxu0 0.0
        %1161 = vmatpush1.msra.mxu0 0.0
        %1162 = vmatprep.subr.mxu0 0.0
        %1163 = vmatpush1.msra.mxu0 0.0
        %1164 = vmatprep.subr.mxu0 0.0
        %1165 = vmatpush1.msra.mxu0 0.0
        %1166 = vmatprep.subr.mxu0 0.0
        %1167 = vmatpush1.msra.mxu0 0.0
        %1168 = vmatprep.mubr.f32.mxu0 0.0
        %1169 = vmatmul.mubr.f32.gmra.mrb[0].mxu0 %v809
        %v1170 = vpop.f32.mrb[0].mxu0
        %v1171 = vadd.f32 0.0, %v1170
        %v1172 = vpop.f32.mrb[0].mxu0
        %v1173 = vadd.f32 0.0, %v1172
        %1174 = vdwg.mxu0
        %1175 = vmatprep.subr.mxu0 %v811
        %1176 = vmatpush1.msra.mxu0 %v810
        %1177 = vmatprep.subr.mxu0 %v813
        %1178 = vmatpush1.msra.mxu0 %v812
        %1179 = vmatprep.subr.mxu0 %v815
        %1180 = vmatpush1.msra.mxu0 %v814
        %1181 = vmatprep.subr.mxu0 %v817
        %1182 = vmatpush1.msra.mxu0 %v816
        %1183 = vmatprep.subr.mxu0 %v819
        %1184 = vmatpush1.msra.mxu0 %v818
        %1185 = vmatprep.subr.mxu0 %v821
        %1186 = vmatpush1.msra.mxu0 %v820
        %1187 = vmatprep.subr.mxu0 %v823
        %1188 = vmatpush1.msra.mxu0 %v822
        %1189 = vmatprep.subr.mxu0 %v825
        %1190 = vmatpush1.msra.mxu0 %v824
        %1191 = vmatprep.subr.mxu0 %v827
        %1192 = vmatpush1.msra.mxu0 %v826
        %1193 = vmatprep.subr.mxu0 %v829
        %1194 = vmatpush1.msra.mxu0 %v828
        %1195 = vmatprep.subr.mxu0 %v831
        %1196 = vmatpush1.msra.mxu0 %v830
        %1197 = vmatprep.subr.mxu0 %v833
        %1198 = vmatpush1.msra.mxu0 %v832
        %1199 = vmatprep.subr.mxu0 %v835
        %1200 = vmatpush1.msra.mxu0 %v834
        %1201 = vmatprep.subr.mxu0 %v837
        %1202 = vmatpush1.msra.mxu0 %v836
        %1203 = vmatprep.subr.mxu0 %v839
        %1204 = vmatpush1.msra.mxu0 %v838
        %1205 = vmatprep.subr.mxu0 %v841
        %1206 = vmatpush1.msra.mxu0 %v840
        %1207 = vmatprep.subr.mxu0 0.0
        %1208 = vmatpush1.msra.mxu0 0.0
        %1209 = vmatprep.subr.mxu0 0.0
        %1210 = vmatpush1.msra.mxu0 0.0
        %1211 = vmatprep.subr.mxu0 0.0
        %1212 = vmatpush1.msra.mxu0 0.0
        %1213 = vmatprep.subr.mxu0 0.0
        %1214 = vmatpush1.msra.mxu0 0.0
        %1215 = vmatprep.subr.mxu0 0.0
        %1216 = vmatpush1.msra.mxu0 0.0
        %1217 = vmatprep.subr.mxu0 0.0
        %1218 = vmatpush1.msra.mxu0 0.0
        %1219 = vmatprep.subr.mxu0 0.0
        %1220 = vmatpush1.msra.mxu0 0.0
        %1221 = vmatprep.subr.mxu0 0.0
        %1222 = vmatpush1.msra.mxu0 0.0
        %1223 = vmatprep.subr.mxu0 0.0
        %1224 = vmatpush1.msra.mxu0 0.0
        %1225 = vmatprep.subr.mxu0 0.0
        %1226 = vmatpush1.msra.mxu0 0.0
        %1227 = vmatprep.subr.mxu0 0.0
        %1228 = vmatpush1.msra.mxu0 0.0
        %1229 = vmatprep.subr.mxu0 0.0
        %1230 = vmatpush1.msra.mxu0 0.0
        %1231 = vmatprep.subr.mxu0 0.0
        %1232 = vmatpush1.msra.mxu0 0.0
        %1233 = vmatprep.subr.mxu0 0.0
        %1234 = vmatpush1.msra.mxu0 0.0
        %1235 = vmatprep.subr.mxu0 0.0
        %1236 = vmatpush1.msra.mxu0 0.0
        %1237 = vmatprep.subr.mxu0 0.0
        %1238 = vmatpush1.msra.mxu0 0.0
        %1239 = vmatprep.mubr.f32.mxu0 0.0
        %1240 = vmatmul.mubr.f32.gmra.mrb[0].mxu0 %v1028
        %v1241 = vpop.f32.mrb[0].mxu0
        %v1242 = vadd.f32 %v1171, %v1241
        %v1243 = vpop.f32.mrb[0].mxu0
        %v1244 = vadd.f32 %v1173, %v1243
        %1245 = vdwg.mxu0
        %1246 = vmatprep.subr.mxu0 %v910
        %1247 = vmatpush1.msra.mxu0 %v909
        %1248 = vmatprep.subr.mxu0 %v912
        %1249 = vmatpush1.msra.mxu0 %v911
        %1250 = vmatprep.subr.mxu0 %v914
        %1251 = vmatpush1.msra.mxu0 %v913
        %1252 = vmatprep.subr.mxu0 %v916
        %1253 = vmatpush1.msra.mxu0 %v915
        %1254 = vmatprep.subr.mxu0 %v918
        %1255 = vmatpush1.msra.mxu0 %v917
        %1256 = vmatprep.subr.mxu0 %v920
        %1257 = vmatpush1.msra.mxu0 %v919
        %1258 = vmatprep.subr.mxu0 %v922
        %1259 = vmatpush1.msra.mxu0 %v921
        %1260 = vmatprep.subr.mxu0 %v924
        %1261 = vmatpush1.msra.mxu0 %v923
        %1262 = vmatprep.subr.mxu0 %v926
        %1263 = vmatpush1.msra.mxu0 %v925
        %1264 = vmatprep.subr.mxu0 %v928
        %1265 = vmatpush1.msra.mxu0 %v927
        %1266 = vmatprep.subr.mxu0 %v930
        %1267 = vmatpush1.msra.mxu0 %v929
        %1268 = vmatprep.subr.mxu0 %v932
        %1269 = vmatpush1.msra.mxu0 %v931
        %1270 = vmatprep.subr.mxu0 %v934
        %1271 = vmatpush1.msra.mxu0 %v933
        %1272 = vmatprep.subr.mxu0 %v936
        %1273 = vmatpush1.msra.mxu0 %v935
        %1274 = vmatprep.subr.mxu0 %v938
        %1275 = vmatpush1.msra.mxu0 %v937
        %1276 = vmatprep.subr.mxu0 %v940
        %1277 = vmatpush1.msra.mxu0 %v939
        %1278 = vmatprep.subr.mxu0 0.0
        %1279 = vmatpush1.msra.mxu0 0.0
        %1280 = vmatprep.subr.mxu0 0.0
        %1281 = vmatpush1.msra.mxu0 0.0
        %1282 = vmatprep.subr.mxu0 0.0
        %1283 = vmatpush1.msra.mxu0 0.0
        %1284 = vmatprep.subr.mxu0 0.0
        %1285 = vmatpush1.msra.mxu0 0.0
        %1286 = vmatprep.subr.mxu0 0.0
        %1287 = vmatpush1.msra.mxu0 0.0
        %1288 = vmatprep.subr.mxu0 0.0
        %1289 = vmatpush1.msra.mxu0 0.0
        %1290 = vmatprep.subr.mxu0 0.0
        %1291 = vmatpush1.msra.mxu0 0.0
        %1292 = vmatprep.subr.mxu0 0.0
        %1293 = vmatpush1.msra.mxu0 0.0
        %1294 = vmatprep.subr.mxu0 0.0
        %1295 = vmatpush1.msra.mxu0 0.0
        %1296 = vmatprep.subr.mxu0 0.0
        %1297 = vmatpush1.msra.mxu0 0.0
        %1298 = vmatprep.subr.mxu0 0.0
        %1299 = vmatpush1.msra.mxu0 0.0
        %1300 = vmatprep.subr.mxu0 0.0
        %1301 = vmatpush1.msra.mxu0 0.0
        %1302 = vmatprep.subr.mxu0 0.0
        %1303 = vmatpush1.msra.mxu0 0.0
        %1304 = vmatprep.subr.mxu0 0.0
        %1305 = vmatpush1.msra.mxu0 0.0
        %1306 = vmatprep.subr.mxu0 0.0
        %1307 = vmatpush1.msra.mxu0 0.0
        %1308 = vmatprep.subr.mxu0 0.0
        %1309 = vmatpush1.msra.mxu0 0.0
        %1310 = vmatprep.mubr.f32.mxu0 0.0
        %1311 = vmatmul.mubr.f32.gmra.mrb[0].mxu0 %v1101
        %v1312 = vpop.f32.mrb[0].mxu0
        %v1313 = vadd.f32 0.0, %v1312
        %v1314 = vpop.f32.mrb[0].mxu0
        %v1315 = vadd.f32 0.0, %v1314
        %1316 = vdwg.mxu0
        %1317 = vmatprep.subr.mxu0 %v877
        %1318 = vmatpush1.msra.mxu0 %v876
        %1319 = vmatprep.subr.mxu0 %v879
        %1320 = vmatpush1.msra.mxu0 %v878
        %1321 = vmatprep.subr.mxu0 %v881
        %1322 = vmatpush1.msra.mxu0 %v880
        %1323 = vmatprep.subr.mxu0 %v883
        %1324 = vmatpush1.msra.mxu0 %v882
        %1325 = vmatprep.subr.mxu0 %v885
        %1326 = vmatpush1.msra.mxu0 %v884
        %1327 = vmatprep.subr.mxu0 %v887
        %1328 = vmatpush1.msra.mxu0 %v886
        %1329 = vmatprep.subr.mxu0 %v889
        %1330 = vmatpush1.msra.mxu0 %v888
        %1331 = vmatprep.subr.mxu0 %v891
        %1332 = vmatpush1.msra.mxu0 %v890
        %1333 = vmatprep.subr.mxu0 %v893
        %1334 = vmatpush1.msra.mxu0 %v892
        %1335 = vmatprep.subr.mxu0 %v895
        %1336 = vmatpush1.msra.mxu0 %v894
        %1337 = vmatprep.subr.mxu0 %v897
        %1338 = vmatpush1.msra.mxu0 %v896
        %1339 = vmatprep.subr.mxu0 %v899
        %1340 = vmatpush1.msra.mxu0 %v898
        %1341 = vmatprep.subr.mxu0 %v901
        %1342 = vmatpush1.msra.mxu0 %v900
        %1343 = vmatprep.subr.mxu0 %v903
        %1344 = vmatpush1.msra.mxu0 %v902
        %1345 = vmatprep.subr.mxu0 %v905
        %1346 = vmatpush1.msra.mxu0 %v904
        %1347 = vmatprep.subr.mxu0 %v907
        %1348 = vmatpush1.msra.mxu0 %v906
        %1349 = vmatprep.subr.mxu0 0.0
        %1350 = vmatpush1.msra.mxu0 0.0
        %1351 = vmatprep.subr.mxu0 0.0
        %1352 = vmatpush1.msra.mxu0 0.0
        %1353 = vmatprep.subr.mxu0 0.0
        %1354 = vmatpush1.msra.mxu0 0.0
        %1355 = vmatprep.subr.mxu0 0.0
        %1356 = vmatpush1.msra.mxu0 0.0
        %1357 = vmatprep.subr.mxu0 0.0
        %1358 = vmatpush1.msra.mxu0 0.0
        %1359 = vmatprep.subr.mxu0 0.0
        %1360 = vmatpush1.msra.mxu0 0.0
        %1361 = vmatprep.subr.mxu0 0.0
        %1362 = vmatpush1.msra.mxu0 0.0
        %1363 = vmatprep.subr.mxu0 0.0
        %1364 = vmatpush1.msra.mxu0 0.0
        %1365 = vmatprep.subr.mxu0 0.0
        %1366 = vmatpush1.msra.mxu0 0.0
        %1367 = vmatprep.subr.mxu0 0.0
        %1368 = vmatpush1.msra.mxu0 0.0
        %1369 = vmatprep.subr.mxu0 0.0
        %1370 = vmatpush1.msra.mxu0 0.0
        %1371 = vmatprep.subr.mxu0 0.0
        %1372 = vmatpush1.msra.mxu0 0.0
        %1373 = vmatprep.subr.mxu0 0.0
        %1374 = vmatpush1.msra.mxu0 0.0
        %1375 = vmatprep.subr.mxu0 0.0
        %1376 = vmatpush1.msra.mxu0 0.0
        %1377 = vmatprep.subr.mxu0 0.0
        %1378 = vmatpush1.msra.mxu0 0.0
        %1379 = vmatprep.subr.mxu0 0.0
        %1380 = vmatpush1.msra.mxu0 0.0
        %1381 = vmatprep.mubr.f32.mxu0 0.0
        %1382 = vmatmul.mubr.f32.gmra.mrb[0].mxu0 %v809
        %v1383 = vpop.f32.mrb[0].mxu0
        %v1384 = vadd.f32 %v1313, %v1383
        %v1385 = vpop.f32.mrb[0].mxu0
        %v1386 = vadd.f32 %v1315, %v1385
        %1387 = vdwg.mxu0
        %v1389 = vlaneseq
        %v1390 = vshrl.u32 %v1389, 7
        %v1391 = vsub.s32 0, %v1390
        %v1392 = vrot.slane %v941, %v1391
        %v1393 = vlaneseq
        %v1394 = vshrl.u32 %v1393, 7
        %v1395 = vsub.s32 1, %v1394
        %v1396 = vrot.slane %v941, %v1395
        %v1399 = vmul.f32 %v1242, %v1392
        %v1400 = vmul.f32 %v1244, %v1396
        %v1402 = vlaneseq
        %v1403 = vshrl.u32 %v1402, 7
        %v1404 = vsub.s32 0, %v1403
        %v1405 = vrot.slane %v942, %v1404
        %v1406 = vlaneseq
        %v1407 = vshrl.u32 %v1406, 7
        %v1408 = vsub.s32 1, %v1407
        %v1409 = vrot.slane %v942, %v1408
        %v1412 = vadd.f32 %v1399, %v1405
        %v1413 = vadd.f32 %v1400, %v1409
        %v1414 = vmul.f32 %v1384, %v1392
        %v1415 = vmul.f32 %v1386, %v1396
        %v1416 = vadd.f32 %v1414, %v1405
        %v1417 = vadd.f32 %v1415, %v1409
        %v1418 = vxor.u32 %v1413, 2147483648
        %v1419 = vmul.f32 %v1418, 1.442695
        %v1420 = vpow.pop %v1419
        %v1421 = vadd.f32 %v1420, 1.0
        %v1422 = vrcp.pop %v1421
        %v1423 = vmul.f32 1.0, %v1422
        %v1424 = vmul.f32 %v1412, %v1423
        %v1425 = vxor.u32 %v1417, 2147483648
        %v1426 = vmul.f32 %v1425, 1.442695
        %v1427 = vpow.pop %v1426
        %v1428 = vadd.f32 %v1427, 1.0
        %v1429 = vrcp.pop %v1428
        %v1430 = vmul.f32 1.0, %v1429
        %v1431 = vmul.f32 %v1416, %v1430
        %v1432 = vmul.u32 %v944, 2
        %vm1433 = vcmp.eq.s32.totalorder %v1432, %v738
        %v1434 = vsel %vm1433, 1, 0
        %v1435 = vcvt.s32.f32 %v1434
        %v1436 = vadd.s32 %v1432, 1
        %vm1437 = vcmp.eq.s32.totalorder %v1436, %v738
        %v1438 = vsel %vm1437, 1, 0
        %v1439 = vcvt.s32.f32 %v1438
        %v1441 = vsel %vm953, %v1439, 0
        %v1444 = vsel %vm957, %v1431, 0
        %1446 = vmatprep.subr.mxu0 0.0
        %1447 = vmatpush1.msra.mxu0 %v1444
        %1448 = vmatprep.subr.mxu0 0.0
        %1449 = vmatpush1.msra.mxu0 0.0
        %1450 = vmatprep.subr.mxu0 0.0
        %1451 = vmatpush1.msra.mxu0 0.0
        %1452 = vmatprep.subr.mxu0 0.0
        %1453 = vmatpush1.msra.mxu0 0.0
        %1454 = vmatprep.subr.mxu0 0.0
        %1455 = vmatpush1.msra.mxu0 0.0
        %1456 = vmatprep.subr.mxu0 0.0
        %1457 = vmatpush1.msra.mxu0 0.0
        %1458 = vmatprep.subr.mxu0 0.0
        %1459 = vmatpush1.msra.mxu0 0.0
        %1460 = vmatprep.subr.mxu0 0.0
        %1461 = vmatpush1.msra.mxu0 0.0
        %1462 = vmatprep.subr.mxu0 0.0
        %1463 = vmatpush1.msra.mxu0 0.0
        %1464 = vmatprep.subr.mxu0 0.0
        %1465 = vmatpush1.msra.mxu0 0.0
        %1466 = vmatprep.subr.mxu0 0.0
        %1467 = vmatpush1.msra.mxu0 0.0
        %1468 = vmatprep.subr.mxu0 0.0
        %1469 = vmatpush1.msra.mxu0 0.0
        %1470 = vmatprep.subr.mxu0 0.0
        %1471 = vmatpush1.msra.mxu0 0.0
        %1472 = vmatprep.subr.mxu0 0.0
        %1473 = vmatpush1.msra.mxu0 0.0
        %1474 = vmatprep.subr.mxu0 0.0
        %1475 = vmatpush1.msra.mxu0 0.0
        %1476 = vmatprep.subr.mxu0 0.0
        %1477 = vmatpush1.msra.mxu0 0.0
        %1478 = vmatprep.subr.mxu0 0.0
        %1479 = vmatpush1.msra.mxu0 0.0
        %1480 = vmatprep.subr.mxu0 0.0
        %1481 = vmatpush1.msra.mxu0 0.0
        %1482 = vmatprep.subr.mxu0 0.0
        %1483 = vmatpush1.msra.mxu0 0.0
        %1484 = vmatprep.subr.mxu0 0.0
        %1485 = vmatpush1.msra.mxu0 0.0
        %1486 = vmatprep.subr.mxu0 0.0
        %1487 = vmatpush1.msra.mxu0 0.0
        %1488 = vmatprep.subr.mxu0 0.0
        %1489 = vmatpush1.msra.mxu0 0.0
        %1490 = vmatprep.subr.mxu0 0.0
        %1491 = vmatpush1.msra.mxu0 0.0
        %1492 = vmatprep.subr.mxu0 0.0
        %1493 = vmatpush1.msra.mxu0 0.0
        %1494 = vmatprep.subr.mxu0 0.0
        %1495 = vmatpush1.msra.mxu0 0.0
        %1496 = vmatprep.subr.mxu0 0.0
        %1497 = vmatpush1.msra.mxu0 0.0
        %1498 = vmatprep.subr.mxu0 0.0
        %1499 = vmatpush1.msra.mxu0 0.0
        %1500 = vmatprep.subr.mxu0 0.0
        %1501 = vmatpush1.msra.mxu0 0.0
        %1502 = vmatprep.subr.mxu0 0.0
        %1503 = vmatpush1.msra.mxu0 0.0
        %1504 = vmatprep.subr.mxu0 0.0
        %1505 = vmatpush1.msra.mxu0 0.0
        %1506 = vmatprep.subr.mxu0 0.0
        %1507 = vmatpush1.msra.mxu0 0.0
        %1508 = vmatprep.subr.mxu0 0.0
        %1509 = vmatpush1.msra.mxu0 0.0
        %1510 = vmatprep.mubr.f32.mxu0 0.0
        %1511 = vmatmul.mubr.f32.gmra.mrb[0].mxu0 %v1441
        %v1512 = vpop.f32.mrb[0].mxu0
        %v1513 = vadd.f32 0.0, %v1512
        %v1514 = vpop.f32.mrb[0].mxu0
        %1515 = vdwg.mxu0
        %v1517 = vsel %vm953, %v1435, 0
        %v1520 = vsel %vm957, %v1424, 0
        %1522 = vmatprep.subr.mxu0 0.0
        %1523 = vmatpush1.msra.mxu0 %v1520
        %1524 = vmatprep.subr.mxu0 0.0
        %1525 = vmatpush1.msra.mxu0 0.0
        %1526 = vmatprep.subr.mxu0 0.0
        %1527 = vmatpush1.msra.mxu0 0.0
        %1528 = vmatprep.subr.mxu0 0.0
        %1529 = vmatpush1.msra.mxu0 0.0
        %1530 = vmatprep.subr.mxu0 0.0
        %1531 = vmatpush1.msra.mxu0 0.0
        %1532 = vmatprep.subr.mxu0 0.0
        %1533 = vmatpush1.msra.mxu0 0.0
        %1534 = vmatprep.subr.mxu0 0.0
        %1535 = vmatpush1.msra.mxu0 0.0
        %1536 = vmatprep.subr.mxu0 0.0
        %1537 = vmatpush1.msra.mxu0 0.0
        %1538 = vmatprep.subr.mxu0 0.0
        %1539 = vmatpush1.msra.mxu0 0.0
        %1540 = vmatprep.subr.mxu0 0.0
        %1541 = vmatpush1.msra.mxu0 0.0
        %1542 = vmatprep.subr.mxu0 0.0
        %1543 = vmatpush1.msra.mxu0 0.0
        %1544 = vmatprep.subr.mxu0 0.0
        %1545 = vmatpush1.msra.mxu0 0.0
        %1546 = vmatprep.subr.mxu0 0.0
        %1547 = vmatpush1.msra.mxu0 0.0
        %1548 = vmatprep.subr.mxu0 0.0
        %1549 = vmatpush1.msra.mxu0 0.0
        %1550 = vmatprep.subr.mxu0 0.0
        %1551 = vmatpush1.msra.mxu0 0.0
        %1552 = vmatprep.subr.mxu0 0.0
        %1553 = vmatpush1.msra.mxu0 0.0
        %1554 = vmatprep.subr.mxu0 0.0
        %1555 = vmatpush1.msra.mxu0 0.0
        %1556 = vmatprep.subr.mxu0 0.0
        %1557 = vmatpush1.msra.mxu0 0.0
        %1558 = vmatprep.subr.mxu0 0.0
        %1559 = vmatpush1.msra.mxu0 0.0
        %1560 = vmatprep.subr.mxu0 0.0
        %1561 = vmatpush1.msra.mxu0 0.0
        %1562 = vmatprep.subr.mxu0 0.0
        %1563 = vmatpush1.msra.mxu0 0.0
        %1564 = vmatprep.subr.mxu0 0.0
        %1565 = vmatpush1.msra.mxu0 0.0
        %1566 = vmatprep.subr.mxu0 0.0
        %1567 = vmatpush1.msra.mxu0 0.0
        %1568 = vmatprep.subr.mxu0 0.0
        %1569 = vmatpush1.msra.mxu0 0.0
        %1570 = vmatprep.subr.mxu0 0.0
        %1571 = vmatpush1.msra.mxu0 0.0
        %1572 = vmatprep.subr.mxu0 0.0
        %1573 = vmatpush1.msra.mxu0 0.0
        %1574 = vmatprep.subr.mxu0 0.0
        %1575 = vmatpush1.msra.mxu0 0.0
        %1576 = vmatprep.subr.mxu0 0.0
        %1577 = vmatpush1.msra.mxu0 0.0
        %1578 = vmatprep.subr.mxu0 0.0
        %1579 = vmatpush1.msra.mxu0 0.0
        %1580 = vmatprep.subr.mxu0 0.0
        %1581 = vmatpush1.msra.mxu0 0.0
        %1582 = vmatprep.subr.mxu0 0.0
        %1583 = vmatpush1.msra.mxu0 0.0
        %1584 = vmatprep.subr.mxu0 0.0
        %1585 = vmatpush1.msra.mxu0 0.0
        %1586 = vmatprep.mubr.f32.mxu0 0.0
        %1587 = vmatmul.mubr.f32.gmra.mrb[0].mxu0 %v1517
        %v1588 = vpop.f32.mrb[0].mxu0
        %v1589 = vadd.f32 %v1513, %v1588
        %v1590 = vpop.f32.mrb[0].mxu0
        %1591 = vdwg.mxu0
        %s1592 = scalar_lea.vmem [#allocation10], 1024
        %v1593 = vld [vmem:[%s1592] sm:$0xff]
        %v1594 = vld [vmem:[%s1592 + $0x8] sm:$0xff]
        %v1595 = vld [vmem:[%s1592 + $0x10] sm:$0xff]
        %v1596 = vld [vmem:[%s1592 + $0x18] sm:$0xff]
        %v1597 = vld [vmem:[%s1592 + $0x20] sm:$0xff]
        %v1598 = vld [vmem:[%s1592 + $0x28] sm:$0xff]
        %v1599 = vld [vmem:[%s1592 + $0x30] sm:$0xff]
        %v1600 = vld [vmem:[%s1592 + $0x38] sm:$0xff]
        %v1601 = vld [vmem:[%s1592 + $0x40] sm:$0xff]
        %v1602 = vld [vmem:[%s1592 + $0x48] sm:$0xff]
        %v1603 = vld [vmem:[%s1592 + $0x50] sm:$0xff]
        %v1604 = vld [vmem:[%s1592 + $0x58] sm:$0xff]
        %v1605 = vld [vmem:[%s1592 + $0x60] sm:$0xff]
        %v1606 = vld [vmem:[%s1592 + $0x68] sm:$0xff]
        %v1607 = vld [vmem:[%s1592 + $0x70] sm:$0xff]
        %v1608 = vld [vmem:[%s1592 + $0x78] sm:$0xff]
        %v1609 = vld [vmem:[%s1592 + $0x80] sm:$0xff]
        %v1610 = vld [vmem:[%s1592 + $0x88] sm:$0xff]
        %v1611 = vld [vmem:[%s1592 + $0x90] sm:$0xff]
        %v1612 = vld [vmem:[%s1592 + $0x98] sm:$0xff]
        %v1613 = vld [vmem:[%s1592 + $0xa0] sm:$0xff]
        %v1614 = vld [vmem:[%s1592 + $0xa8] sm:$0xff]
        %v1615 = vld [vmem:[%s1592 + $0xb0] sm:$0xff]
        %v1616 = vld [vmem:[%s1592 + $0xb8] sm:$0xff]
        %v1617 = vld [vmem:[%s1592 + $0xc0] sm:$0xff]
        %v1618 = vld [vmem:[%s1592 + $0xc8] sm:$0xff]
        %v1619 = vld [vmem:[%s1592 + $0xd0] sm:$0xff]
        %v1620 = vld [vmem:[%s1592 + $0xd8] sm:$0xff]
        %v1621 = vld [vmem:[%s1592 + $0xe0] sm:$0xff]
        %v1622 = vld [vmem:[%s1592 + $0xe8] sm:$0xff]
        %v1623 = vld [vmem:[%s1592 + $0xf0] sm:$0xff]
        %v1624 = vld [vmem:[%s1592 + $0xf8] sm:$0xff]
        %s1625 = scalar_lea.vmem [#allocation10], 1280
        %v1626 = vld [vmem:[%s1625] sm:$0xff]
        %v1627 = vld [vmem:[%s1625 + $0x8] sm:$0xff]
        %v1628 = vld [vmem:[%s1625 + $0x10] sm:$0xff]
        %v1629 = vld [vmem:[%s1625 + $0x18] sm:$0xff]
        %v1630 = vld [vmem:[%s1625 + $0x20] sm:$0xff]
        %v1631 = vld [vmem:[%s1625 + $0x28] sm:$0xff]
        %v1632 = vld [vmem:[%s1625 + $0x30] sm:$0xff]
        %v1633 = vld [vmem:[%s1625 + $0x38] sm:$0xff]
        %v1634 = vld [vmem:[%s1625 + $0x40] sm:$0xff]
        %v1635 = vld [vmem:[%s1625 + $0x48] sm:$0xff]
        %v1636 = vld [vmem:[%s1625 + $0x50] sm:$0xff]
        %v1637 = vld [vmem:[%s1625 + $0x58] sm:$0xff]
        %v1638 = vld [vmem:[%s1625 + $0x60] sm:$0xff]
        %v1639 = vld [vmem:[%s1625 + $0x68] sm:$0xff]
        %v1640 = vld [vmem:[%s1625 + $0x70] sm:$0xff]
        %v1641 = vld [vmem:[%s1625 + $0x78] sm:$0xff]
        %v1642 = vld [vmem:[%s1625 + $0x80] sm:$0xff]
        %v1643 = vld [vmem:[%s1625 + $0x88] sm:$0xff]
        %v1644 = vld [vmem:[%s1625 + $0x90] sm:$0xff]
        %v1645 = vld [vmem:[%s1625 + $0x98] sm:$0xff]
        %v1646 = vld [vmem:[%s1625 + $0xa0] sm:$0xff]
        %v1647 = vld [vmem:[%s1625 + $0xa8] sm:$0xff]
        %v1648 = vld [vmem:[%s1625 + $0xb0] sm:$0xff]
        %v1649 = vld [vmem:[%s1625 + $0xb8] sm:$0xff]
        %v1650 = vld [vmem:[%s1625 + $0xc0] sm:$0xff]
        %v1651 = vld [vmem:[%s1625 + $0xc8] sm:$0xff]
        %v1652 = vld [vmem:[%s1625 + $0xd0] sm:$0xff]
        %v1653 = vld [vmem:[%s1625 + $0xd8] sm:$0xff]
        %v1654 = vld [vmem:[%s1625 + $0xe0] sm:$0xff]
        %v1655 = vld [vmem:[%s1625 + $0xe8] sm:$0xff]
        %v1656 = vld [vmem:[%s1625 + $0xf0] sm:$0xff]
        %v1657 = vld [vmem:[%s1625 + $0xf8] sm:$0xff]
        %s1658 = scalar_lea.vmem [#allocation10], 1536
        %v1659 = vld [vmem:[%s1658] sm:$0xff]
        %v1660 = vld [vmem:[%s1658 + $0x8] sm:$0xff]
        %v1661 = vld [vmem:[%s1658 + $0x10] sm:$0xff]
        %v1662 = vld [vmem:[%s1658 + $0x18] sm:$0xff]
        %v1663 = vld [vmem:[%s1658 + $0x20] sm:$0xff]
        %v1664 = vld [vmem:[%s1658 + $0x28] sm:$0xff]
        %v1665 = vld [vmem:[%s1658 + $0x30] sm:$0xff]
        %v1666 = vld [vmem:[%s1658 + $0x38] sm:$0xff]
        %v1667 = vld [vmem:[%s1658 + $0x40] sm:$0xff]
        %v1668 = vld [vmem:[%s1658 + $0x48] sm:$0xff]
        %v1669 = vld [vmem:[%s1658 + $0x50] sm:$0xff]
        %v1670 = vld [vmem:[%s1658 + $0x58] sm:$0xff]
        %v1671 = vld [vmem:[%s1658 + $0x60] sm:$0xff]
        %v1672 = vld [vmem:[%s1658 + $0x68] sm:$0xff]
        %v1673 = vld [vmem:[%s1658 + $0x70] sm:$0xff]
        %v1674 = vld [vmem:[%s1658 + $0x78] sm:$0xff]
        %v1675 = vld [vmem:[%s1658 + $0x80] sm:$0xff]
        %v1676 = vld [vmem:[%s1658 + $0x88] sm:$0xff]
        %v1677 = vld [vmem:[%s1658 + $0x90] sm:$0xff]
        %v1678 = vld [vmem:[%s1658 + $0x98] sm:$0xff]
        %v1679 = vld [vmem:[%s1658 + $0xa0] sm:$0xff]
        %v1680 = vld [vmem:[%s1658 + $0xa8] sm:$0xff]
        %v1681 = vld [vmem:[%s1658 + $0xb0] sm:$0xff]
        %v1682 = vld [vmem:[%s1658 + $0xb8] sm:$0xff]
        %v1683 = vld [vmem:[%s1658 + $0xc0] sm:$0xff]
        %v1684 = vld [vmem:[%s1658 + $0xc8] sm:$0xff]
        %v1685 = vld [vmem:[%s1658 + $0xd0] sm:$0xff]
        %v1686 = vld [vmem:[%s1658 + $0xd8] sm:$0xff]
        %v1687 = vld [vmem:[%s1658 + $0xe0] sm:$0xff]
        %v1688 = vld [vmem:[%s1658 + $0xe8] sm:$0xff]
        %v1689 = vld [vmem:[%s1658 + $0xf0] sm:$0xff]
        %v1690 = vld [vmem:[%s1658 + $0xf8] sm:$0xff]
        %s1691 = scalar_lea.vmem [#allocation10], 1792
        %v1692 = vld [vmem:[%s1691] sm:$0xff]
        %v1693 = vld [vmem:[%s1691 + $0x8] sm:$0xff]
        %v1694 = vld [vmem:[%s1691 + $0x10] sm:$0xff]
        %v1695 = vld [vmem:[%s1691 + $0x18] sm:$0xff]
        %v1696 = vld [vmem:[%s1691 + $0x20] sm:$0xff]
        %v1697 = vld [vmem:[%s1691 + $0x28] sm:$0xff]
        %v1698 = vld [vmem:[%s1691 + $0x30] sm:$0xff]
        %v1699 = vld [vmem:[%s1691 + $0x38] sm:$0xff]
        %v1700 = vld [vmem:[%s1691 + $0x40] sm:$0xff]
        %v1701 = vld [vmem:[%s1691 + $0x48] sm:$0xff]
        %v1702 = vld [vmem:[%s1691 + $0x50] sm:$0xff]
        %v1703 = vld [vmem:[%s1691 + $0x58] sm:$0xff]
        %v1704 = vld [vmem:[%s1691 + $0x60] sm:$0xff]
        %v1705 = vld [vmem:[%s1691 + $0x68] sm:$0xff]
        %v1706 = vld [vmem:[%s1691 + $0x70] sm:$0xff]
        %v1707 = vld [vmem:[%s1691 + $0x78] sm:$0xff]
        %v1708 = vld [vmem:[%s1691 + $0x80] sm:$0xff]
        %v1709 = vld [vmem:[%s1691 + $0x88] sm:$0xff]
        %v1710 = vld [vmem:[%s1691 + $0x90] sm:$0xff]
        %v1711 = vld [vmem:[%s1691 + $0x98] sm:$0xff]
        %v1712 = vld [vmem:[%s1691 + $0xa0] sm:$0xff]
        %v1713 = vld [vmem:[%s1691 + $0xa8] sm:$0xff]
        %v1714 = vld [vmem:[%s1691 + $0xb0] sm:$0xff]
        %v1715 = vld [vmem:[%s1691 + $0xb8] sm:$0xff]
        %v1716 = vld [vmem:[%s1691 + $0xc0] sm:$0xff]
        %v1717 = vld [vmem:[%s1691 + $0xc8] sm:$0xff]
        %v1718 = vld [vmem:[%s1691 + $0xd0] sm:$0xff]
        %v1719 = vld [vmem:[%s1691 + $0xd8] sm:$0xff]
        %v1720 = vld [vmem:[%s1691 + $0xe0] sm:$0xff]
        %v1721 = vld [vmem:[%s1691 + $0xe8] sm:$0xff]
        %v1722 = vld [vmem:[%s1691 + $0xf0] sm:$0xff]
        %v1723 = vld [vmem:[%s1691 + $0xf8] sm:$0xff]
        %s1724 = scalar_lea.vmem [#allocation11], 2
        %v1725 = vld [vmem:[%s1724] sm:$0x3]
        %s1726 = scalar_lea.vmem [#allocation13], 2
        %v1727 = vld [vmem:[%s1726] sm:$0x3]
        %vm1728 = vcmask 64512
        %v1729 = vsel %vm1728, %v948, 0
        %1731 = vmatprep.subr.mxu0 0.0
        %1732 = vmatpush1.msra.mxu0 %v1589
        %1733 = vmatprep.subr.mxu0 0.0
        %1734 = vmatpush1.msra.mxu0 0.0
        %1735 = vmatprep.subr.mxu0 0.0
        %1736 = vmatpush1.msra.mxu0 0.0
        %1737 = vmatprep.subr.mxu0 0.0
        %1738 = vmatpush1.msra.mxu0 0.0
        %1739 = vmatprep.subr.mxu0 0.0
        %1740 = vmatpush1.msra.mxu0 0.0
        %1741 = vmatprep.subr.mxu0 0.0
        %1742 = vmatpush1.msra.mxu0 0.0
        %1743 = vmatprep.subr.mxu0 0.0
        %1744 = vmatpush1.msra.mxu0 0.0
        %1745 = vmatprep.subr.mxu0 0.0
        %1746 = vmatpush1.msra.mxu0 0.0
        %1747 = vmatprep.subr.mxu0 0.0
        %1748 = vmatpush1.msra.mxu0 0.0
        %1749 = vmatprep.subr.mxu0 0.0
        %1750 = vmatpush1.msra.mxu0 0.0
        %1751 = vmatprep.subr.mxu0 0.0
        %1752 = vmatpush1.msra.mxu0 0.0
        %1753 = vmatprep.subr.mxu0 0.0
        %1754 = vmatpush1.msra.mxu0 0.0
        %1755 = vmatprep.subr.mxu0 0.0
        %1756 = vmatpush1.msra.mxu0 0.0
        %1757 = vmatprep.subr.mxu0 0.0
        %1758 = vmatpush1.msra.mxu0 0.0
        %1759 = vmatprep.subr.mxu0 0.0
        %1760 = vmatpush1.msra.mxu0 0.0
        %1761 = vmatprep.subr.mxu0 0.0
        %1762 = vmatpush1.msra.mxu0 0.0
        %1763 = vmatprep.subr.mxu0 0.0
        %1764 = vmatpush1.msra.mxu0 0.0
        %1765 = vmatprep.subr.mxu0 0.0
        %1766 = vmatpush1.msra.mxu0 0.0
        %1767 = vmatprep.subr.mxu0 0.0
        %1768 = vmatpush1.msra.mxu0 0.0
        %1769 = vmatprep.subr.mxu0 0.0
        %1770 = vmatpush1.msra.mxu0 0.0
        %1771 = vmatprep.subr.mxu0 0.0
        %1772 = vmatpush1.msra.mxu0 0.0
        %1773 = vmatprep.subr.mxu0 0.0
        %1774 = vmatpush1.msra.mxu0 0.0
        %1775 = vmatprep.subr.mxu0 0.0
        %1776 = vmatpush1.msra.mxu0 0.0
        %1777 = vmatprep.subr.mxu0 0.0
        %1778 = vmatpush1.msra.mxu0 0.0
        %1779 = vmatprep.subr.mxu0 0.0
        %1780 = vmatpush1.msra.mxu0 0.0
        %1781 = vmatprep.subr.mxu0 0.0
        %1782 = vmatpush1.msra.mxu0 0.0
        %1783 = vmatprep.subr.mxu0 0.0
        %1784 = vmatpush1.msra.mxu0 0.0
        %1785 = vmatprep.subr.mxu0 0.0
        %1786 = vmatpush1.msra.mxu0 0.0
        %1787 = vmatprep.subr.mxu0 0.0
        %1788 = vmatpush1.msra.mxu0 0.0
        %1789 = vmatprep.subr.mxu0 0.0
        %1790 = vmatpush1.msra.mxu0 0.0
        %1791 = vmatprep.subr.mxu0 0.0
        %1792 = vmatpush1.msra.mxu0 0.0
        %1793 = vmatprep.subr.mxu0 0.0
        %1794 = vmatpush1.msra.mxu0 0.0
        %1795 = vmatprep.mubr.f32.mxu0 0.0
        %1796 = vmatmul.mubr.f32.gmra.mrb[0].mxu0 %v1729
        %v1797 = vpop.f32.mrb[0].mxu0
        %v1798 = vadd.f32 0.0, %v1797
        %v1799 = vpop.f32.mrb[0].mxu0
        %1800 = vdwg.mxu0
        %v1801 = vsel %vm1728, %v952, 0
        %1803 = vmatprep.subr.mxu0 0.0
        %1804 = vmatpush1.msra.mxu0 %v1589
        %1805 = vmatprep.subr.mxu0 0.0
        %1806 = vmatpush1.msra.mxu0 0.0
        %1807 = vmatprep.subr.mxu0 0.0
        %1808 = vmatpush1.msra.mxu0 0.0
        %1809 = vmatprep.subr.mxu0 0.0
        %1810 = vmatpush1.msra.mxu0 0.0
        %1811 = vmatprep.subr.mxu0 0.0
        %1812 = vmatpush1.msra.mxu0 0.0
        %1813 = vmatprep.subr.mxu0 0.0
        %1814 = vmatpush1.msra.mxu0 0.0
        %1815 = vmatprep.subr.mxu0 0.0
        %1816 = vmatpush1.msra.mxu0 0.0
        %1817 = vmatprep.subr.mxu0 0.0
        %1818 = vmatpush1.msra.mxu0 0.0
        %1819 = vmatprep.subr.mxu0 0.0
        %1820 = vmatpush1.msra.mxu0 0.0
        %1821 = vmatprep.subr.mxu0 0.0
        %1822 = vmatpush1.msra.mxu0 0.0
        %1823 = vmatprep.subr.mxu0 0.0
        %1824 = vmatpush1.msra.mxu0 0.0
        %1825 = vmatprep.subr.mxu0 0.0
        %1826 = vmatpush1.msra.mxu0 0.0
        %1827 = vmatprep.subr.mxu0 0.0
        %1828 = vmatpush1.msra.mxu0 0.0
        %1829 = vmatprep.subr.mxu0 0.0
        %1830 = vmatpush1.msra.mxu0 0.0
        %1831 = vmatprep.subr.mxu0 0.0
        %1832 = vmatpush1.msra.mxu0 0.0
        %1833 = vmatprep.subr.mxu0 0.0
        %1834 = vmatpush1.msra.mxu0 0.0
        %1835 = vmatprep.subr.mxu0 0.0
        %1836 = vmatpush1.msra.mxu0 0.0
        %1837 = vmatprep.subr.mxu0 0.0
        %1838 = vmatpush1.msra.mxu0 0.0
        %1839 = vmatprep.subr.mxu0 0.0
        %1840 = vmatpush1.msra.mxu0 0.0
        %1841 = vmatprep.subr.mxu0 0.0
        %1842 = vmatpush1.msra.mxu0 0.0
        %1843 = vmatprep.subr.mxu0 0.0
        %1844 = vmatpush1.msra.mxu0 0.0
        %1845 = vmatprep.subr.mxu0 0.0
        %1846 = vmatpush1.msra.mxu0 0.0
        %1847 = vmatprep.subr.mxu0 0.0
        %1848 = vmatpush1.msra.mxu0 0.0
        %1849 = vmatprep.subr.mxu0 0.0
        %1850 = vmatpush1.msra.mxu0 0.0
        %1851 = vmatprep.subr.mxu0 0.0
        %1852 = vmatpush1.msra.mxu0 0.0
        %1853 = vmatprep.subr.mxu0 0.0
        %1854 = vmatpush1.msra.mxu0 0.0
        %1855 = vmatprep.subr.mxu0 0.0
        %1856 = vmatpush1.msra.mxu0 0.0
        %1857 = vmatprep.subr.mxu0 0.0
        %1858 = vmatpush1.msra.mxu0 0.0
        %1859 = vmatprep.subr.mxu0 0.0
        %1860 = vmatpush1.msra.mxu0 0.0
        %1861 = vmatprep.subr.mxu0 0.0
        %1862 = vmatpush1.msra.mxu0 0.0
        %1863 = vmatprep.subr.mxu0 0.0
        %1864 = vmatpush1.msra.mxu0 0.0
        %1865 = vmatprep.subr.mxu0 0.0
        %1866 = vmatpush1.msra.mxu0 0.0
        %1867 = vmatprep.mubr.f32.mxu0 0.0
        %1868 = vmatmul.mubr.f32.gmra.mrb[0].mxu0 %v1801
        %v1869 = vpop.f32.mrb[0].mxu0
        %v1870 = vadd.f32 0.0, %v1869
        %v1871 = vpop.f32.mrb[0].mxu0
        %1872 = vdwg.mxu0
        %1873 = vmatprep.subr.mxu0 %v1627
        %1874 = vmatpush1.msra.mxu0 %v1626
        %1875 = vmatprep.subr.mxu0 %v1629
        %1876 = vmatpush1.msra.mxu0 %v1628
        %1877 = vmatprep.subr.mxu0 %v1631
        %1878 = vmatpush1.msra.mxu0 %v1630
        %1879 = vmatprep.subr.mxu0 %v1633
        %1880 = vmatpush1.msra.mxu0 %v1632
        %1881 = vmatprep.subr.mxu0 %v1635
        %1882 = vmatpush1.msra.mxu0 %v1634
        %1883 = vmatprep.subr.mxu0 %v1637
        %1884 = vmatpush1.msra.mxu0 %v1636
        %1885 = vmatprep.subr.mxu0 %v1639
        %1886 = vmatpush1.msra.mxu0 %v1638
        %1887 = vmatprep.subr.mxu0 %v1641
        %1888 = vmatpush1.msra.mxu0 %v1640
        %1889 = vmatprep.subr.mxu0 %v1643
        %1890 = vmatpush1.msra.mxu0 %v1642
        %1891 = vmatprep.subr.mxu0 %v1645
        %1892 = vmatpush1.msra.mxu0 %v1644
        %1893 = vmatprep.subr.mxu0 %v1647
        %1894 = vmatpush1.msra.mxu0 %v1646
        %1895 = vmatprep.subr.mxu0 %v1649
        %1896 = vmatpush1.msra.mxu0 %v1648
        %1897 = vmatprep.subr.mxu0 %v1651
        %1898 = vmatpush1.msra.mxu0 %v1650
        %1899 = vmatprep.subr.mxu0 %v1653
        %1900 = vmatpush1.msra.mxu0 %v1652
        %1901 = vmatprep.subr.mxu0 %v1655
        %1902 = vmatpush1.msra.mxu0 %v1654
        %1903 = vmatprep.subr.mxu0 %v1657
        %1904 = vmatpush1.msra.mxu0 %v1656
        %1905 = vmatprep.subr.mxu0 0.0
        %1906 = vmatpush1.msra.mxu0 0.0
        %1907 = vmatprep.subr.mxu0 0.0
        %1908 = vmatpush1.msra.mxu0 0.0
        %1909 = vmatprep.subr.mxu0 0.0
        %1910 = vmatpush1.msra.mxu0 0.0
        %1911 = vmatprep.subr.mxu0 0.0
        %1912 = vmatpush1.msra.mxu0 0.0
        %1913 = vmatprep.subr.mxu0 0.0
        %1914 = vmatpush1.msra.mxu0 0.0
        %1915 = vmatprep.subr.mxu0 0.0
        %1916 = vmatpush1.msra.mxu0 0.0
        %1917 = vmatprep.subr.mxu0 0.0
        %1918 = vmatpush1.msra.mxu0 0.0
        %1919 = vmatprep.subr.mxu0 0.0
        %1920 = vmatpush1.msra.mxu0 0.0
        %1921 = vmatprep.subr.mxu0 0.0
        %1922 = vmatpush1.msra.mxu0 0.0
        %1923 = vmatprep.subr.mxu0 0.0
        %1924 = vmatpush1.msra.mxu0 0.0
        %1925 = vmatprep.subr.mxu0 0.0
        %1926 = vmatpush1.msra.mxu0 0.0
        %1927 = vmatprep.subr.mxu0 0.0
        %1928 = vmatpush1.msra.mxu0 0.0
        %1929 = vmatprep.subr.mxu0 0.0
        %1930 = vmatpush1.msra.mxu0 0.0
        %1931 = vmatprep.subr.mxu0 0.0
        %1932 = vmatpush1.msra.mxu0 0.0
        %1933 = vmatprep.subr.mxu0 0.0
        %1934 = vmatpush1.msra.mxu0 0.0
        %1935 = vmatprep.subr.mxu0 0.0
        %1936 = vmatpush1.msra.mxu0 0.0
        %1937 = vmatprep.mubr.f32.mxu0 0.0
        %1938 = vmatmul.mubr.f32.gmra.mrb[0].mxu0 %v1589
        %v1939 = vpop.f32.mrb[0].mxu0
        %v1940 = vadd.f32 0.0, %v1939
        %v1941 = vpop.f32.mrb[0].mxu0
        %v1942 = vadd.f32 0.0, %v1941
        %1943 = vdwg.mxu0
        %1944 = vmatprep.subr.mxu0 %v1594
        %1945 = vmatpush1.msra.mxu0 %v1593
        %1946 = vmatprep.subr.mxu0 %v1596
        %1947 = vmatpush1.msra.mxu0 %v1595
        %1948 = vmatprep.subr.mxu0 %v1598
        %1949 = vmatpush1.msra.mxu0 %v1597
        %1950 = vmatprep.subr.mxu0 %v1600
        %1951 = vmatpush1.msra.mxu0 %v1599
        %1952 = vmatprep.subr.mxu0 %v1602
        %1953 = vmatpush1.msra.mxu0 %v1601
        %1954 = vmatprep.subr.mxu0 %v1604
        %1955 = vmatpush1.msra.mxu0 %v1603
        %1956 = vmatprep.subr.mxu0 %v1606
        %1957 = vmatpush1.msra.mxu0 %v1605
        %1958 = vmatprep.subr.mxu0 %v1608
        %1959 = vmatpush1.msra.mxu0 %v1607
        %1960 = vmatprep.subr.mxu0 %v1610
        %1961 = vmatpush1.msra.mxu0 %v1609
        %1962 = vmatprep.subr.mxu0 %v1612
        %1963 = vmatpush1.msra.mxu0 %v1611
        %1964 = vmatprep.subr.mxu0 %v1614
        %1965 = vmatpush1.msra.mxu0 %v1613
        %1966 = vmatprep.subr.mxu0 %v1616
        %1967 = vmatpush1.msra.mxu0 %v1615
        %1968 = vmatprep.subr.mxu0 %v1618
        %1969 = vmatpush1.msra.mxu0 %v1617
        %1970 = vmatprep.subr.mxu0 %v1620
        %1971 = vmatpush1.msra.mxu0 %v1619
        %1972 = vmatprep.subr.mxu0 %v1622
        %1973 = vmatpush1.msra.mxu0 %v1621
        %1974 = vmatprep.subr.mxu0 %v1624
        %1975 = vmatpush1.msra.mxu0 %v1623
        %1976 = vmatprep.subr.mxu0 0.0
        %1977 = vmatpush1.msra.mxu0 0.0
        %1978 = vmatprep.subr.mxu0 0.0
        %1979 = vmatpush1.msra.mxu0 0.0
        %1980 = vmatprep.subr.mxu0 0.0
        %1981 = vmatpush1.msra.mxu0 0.0
        %1982 = vmatprep.subr.mxu0 0.0
        %1983 = vmatpush1.msra.mxu0 0.0
        %1984 = vmatprep.subr.mxu0 0.0
        %1985 = vmatpush1.msra.mxu0 0.0
        %1986 = vmatprep.subr.mxu0 0.0
        %1987 = vmatpush1.msra.mxu0 0.0
        %1988 = vmatprep.subr.mxu0 0.0
        %1989 = vmatpush1.msra.mxu0 0.0
        %1990 = vmatprep.subr.mxu0 0.0
        %1991 = vmatpush1.msra.mxu0 0.0
        %1992 = vmatprep.subr.mxu0 0.0
        %1993 = vmatpush1.msra.mxu0 0.0
        %1994 = vmatprep.subr.mxu0 0.0
        %1995 = vmatpush1.msra.mxu0 0.0
        %1996 = vmatprep.subr.mxu0 0.0
        %1997 = vmatpush1.msra.mxu0 0.0
        %1998 = vmatprep.subr.mxu0 0.0
        %1999 = vmatpush1.msra.mxu0 0.0
        %2000 = vmatprep.subr.mxu0 0.0
        %2001 = vmatpush1.msra.mxu0 0.0
        %2002 = vmatprep.subr.mxu0 0.0
        %2003 = vmatpush1.msra.mxu0 0.0
        %2004 = vmatprep.subr.mxu0 0.0
        %2005 = vmatpush1.msra.mxu0 0.0
        %2006 = vmatprep.subr.mxu0 0.0
        %2007 = vmatpush1.msra.mxu0 0.0
        %2008 = vmatprep.mubr.f32.mxu0 0.0
        %2009 = vmatmul.mubr.f32.gmra.mrb[0].mxu0 %v1798
        %v2010 = vpop.f32.mrb[0].mxu0
        %v2011 = vadd.f32 %v1940, %v2010
        %v2012 = vpop.f32.mrb[0].mxu0
        %v2013 = vadd.f32 %v1942, %v2012
        %2014 = vdwg.mxu0
        %2015 = vmatprep.subr.mxu0 %v1693
        %2016 = vmatpush1.msra.mxu0 %v1692
        %2017 = vmatprep.subr.mxu0 %v1695
        %2018 = vmatpush1.msra.mxu0 %v1694
        %2019 = vmatprep.subr.mxu0 %v1697
        %2020 = vmatpush1.msra.mxu0 %v1696
        %2021 = vmatprep.subr.mxu0 %v1699
        %2022 = vmatpush1.msra.mxu0 %v1698
        %2023 = vmatprep.subr.mxu0 %v1701
        %2024 = vmatpush1.msra.mxu0 %v1700
        %2025 = vmatprep.subr.mxu0 %v1703
        %2026 = vmatpush1.msra.mxu0 %v1702
        %2027 = vmatprep.subr.mxu0 %v1705
        %2028 = vmatpush1.msra.mxu0 %v1704
        %2029 = vmatprep.subr.mxu0 %v1707
        %2030 = vmatpush1.msra.mxu0 %v1706
        %2031 = vmatprep.subr.mxu0 %v1709
        %2032 = vmatpush1.msra.mxu0 %v1708
        %2033 = vmatprep.subr.mxu0 %v1711
        %2034 = vmatpush1.msra.mxu0 %v1710
        %2035 = vmatprep.subr.mxu0 %v1713
        %2036 = vmatpush1.msra.mxu0 %v1712
        %2037 = vmatprep.subr.mxu0 %v1715
        %2038 = vmatpush1.msra.mxu0 %v1714
        %2039 = vmatprep.subr.mxu0 %v1717
        %2040 = vmatpush1.msra.mxu0 %v1716
        %2041 = vmatprep.subr.mxu0 %v1719
        %2042 = vmatpush1.msra.mxu0 %v1718
        %2043 = vmatprep.subr.mxu0 %v1721
        %2044 = vmatpush1.msra.mxu0 %v1720
        %2045 = vmatprep.subr.mxu0 %v1723
        %2046 = vmatpush1.msra.mxu0 %v1722
        %2047 = vmatprep.subr.mxu0 0.0
        %2048 = vmatpush1.msra.mxu0 0.0
        %2049 = vmatprep.subr.mxu0 0.0
        %2050 = vmatpush1.msra.mxu0 0.0
        %2051 = vmatprep.subr.mxu0 0.0
        %2052 = vmatpush1.msra.mxu0 0.0
        %2053 = vmatprep.subr.mxu0 0.0
        %2054 = vmatpush1.msra.mxu0 0.0
        %2055 = vmatprep.subr.mxu0 0.0
        %2056 = vmatpush1.msra.mxu0 0.0
        %2057 = vmatprep.subr.mxu0 0.0
        %2058 = vmatpush1.msra.mxu0 0.0
        %2059 = vmatprep.subr.mxu0 0.0
        %2060 = vmatpush1.msra.mxu0 0.0
        %2061 = vmatprep.subr.mxu0 0.0
        %2062 = vmatpush1.msra.mxu0 0.0
        %2063 = vmatprep.subr.mxu0 0.0
        %2064 = vmatpush1.msra.mxu0 0.0
        %2065 = vmatprep.subr.mxu0 0.0
        %2066 = vmatpush1.msra.mxu0 0.0
        %2067 = vmatprep.subr.mxu0 0.0
        %2068 = vmatpush1.msra.mxu0 0.0
        %2069 = vmatprep.subr.mxu0 0.0
        %2070 = vmatpush1.msra.mxu0 0.0
        %2071 = vmatprep.subr.mxu0 0.0
        %2072 = vmatpush1.msra.mxu0 0.0
        %2073 = vmatprep.subr.mxu0 0.0
        %2074 = vmatpush1.msra.mxu0 0.0
        %2075 = vmatprep.subr.mxu0 0.0
        %2076 = vmatpush1.msra.mxu0 0.0
        %2077 = vmatprep.subr.mxu0 0.0
        %2078 = vmatpush1.msra.mxu0 0.0
        %2079 = vmatprep.mubr.f32.mxu0 0.0
        %2080 = vmatmul.mubr.f32.gmra.mrb[0].mxu0 %v1870
        %v2081 = vpop.f32.mrb[0].mxu0
        %v2082 = vadd.f32 0.0, %v2081
        %v2083 = vpop.f32.mrb[0].mxu0
        %v2084 = vadd.f32 0.0, %v2083
        %2085 = vdwg.mxu0
        %2086 = vmatprep.subr.mxu0 %v1660
        %2087 = vmatpush1.msra.mxu0 %v1659
        %2088 = vmatprep.subr.mxu0 %v1662
        %2089 = vmatpush1.msra.mxu0 %v1661
        %2090 = vmatprep.subr.mxu0 %v1664
        %2091 = vmatpush1.msra.mxu0 %v1663
        %2092 = vmatprep.subr.mxu0 %v1666
        %2093 = vmatpush1.msra.mxu0 %v1665
        %2094 = vmatprep.subr.mxu0 %v1668
        %2095 = vmatpush1.msra.mxu0 %v1667
        %2096 = vmatprep.subr.mxu0 %v1670
        %2097 = vmatpush1.msra.mxu0 %v1669
        %2098 = vmatprep.subr.mxu0 %v1672
        %2099 = vmatpush1.msra.mxu0 %v1671
        %2100 = vmatprep.subr.mxu0 %v1674
        %2101 = vmatpush1.msra.mxu0 %v1673
        %2102 = vmatprep.subr.mxu0 %v1676
        %2103 = vmatpush1.msra.mxu0 %v1675
        %2104 = vmatprep.subr.mxu0 %v1678
        %2105 = vmatpush1.msra.mxu0 %v1677
        %2106 = vmatprep.subr.mxu0 %v1680
        %2107 = vmatpush1.msra.mxu0 %v1679
        %2108 = vmatprep.subr.mxu0 %v1682
        %2109 = vmatpush1.msra.mxu0 %v1681
        %2110 = vmatprep.subr.mxu0 %v1684
        %2111 = vmatpush1.msra.mxu0 %v1683
        %2112 = vmatprep.subr.mxu0 %v1686
        %2113 = vmatpush1.msra.mxu0 %v1685
        %2114 = vmatprep.subr.mxu0 %v1688
        %2115 = vmatpush1.msra.mxu0 %v1687
        %2116 = vmatprep.subr.mxu0 %v1690
        %2117 = vmatpush1.msra.mxu0 %v1689
        %2118 = vmatprep.subr.mxu0 0.0
        %2119 = vmatpush1.msra.mxu0 0.0
        %2120 = vmatprep.subr.mxu0 0.0
        %2121 = vmatpush1.msra.mxu0 0.0
        %2122 = vmatprep.subr.mxu0 0.0
        %2123 = vmatpush1.msra.mxu0 0.0
        %2124 = vmatprep.subr.mxu0 0.0
        %2125 = vmatpush1.msra.mxu0 0.0
        %2126 = vmatprep.subr.mxu0 0.0
        %2127 = vmatpush1.msra.mxu0 0.0
        %2128 = vmatprep.subr.mxu0 0.0
        %2129 = vmatpush1.msra.mxu0 0.0
        %2130 = vmatprep.subr.mxu0 0.0
        %2131 = vmatpush1.msra.mxu0 0.0
        %2132 = vmatprep.subr.mxu0 0.0
        %2133 = vmatpush1.msra.mxu0 0.0
        %2134 = vmatprep.subr.mxu0 0.0
        %2135 = vmatpush1.msra.mxu0 0.0
        %2136 = vmatprep.subr.mxu0 0.0
        %2137 = vmatpush1.msra.mxu0 0.0
        %2138 = vmatprep.subr.mxu0 0.0
        %2139 = vmatpush1.msra.mxu0 0.0
        %2140 = vmatprep.subr.mxu0 0.0
        %2141 = vmatpush1.msra.mxu0 0.0
        %2142 = vmatprep.subr.mxu0 0.0
        %2143 = vmatpush1.msra.mxu0 0.0
        %2144 = vmatprep.subr.mxu0 0.0
        %2145 = vmatpush1.msra.mxu0 0.0
        %2146 = vmatprep.subr.mxu0 0.0
        %2147 = vmatpush1.msra.mxu0 0.0
        %2148 = vmatprep.subr.mxu0 0.0
        %2149 = vmatpush1.msra.mxu0 0.0
        %2150 = vmatprep.mubr.f32.mxu0 0.0
        %2151 = vmatmul.mubr.f32.gmra.mrb[0].mxu0 %v1589
        %v2152 = vpop.f32.mrb[0].mxu0
        %v2153 = vadd.f32 %v2082, %v2152
        %v2154 = vpop.f32.mrb[0].mxu0
        %v2155 = vadd.f32 %v2084, %v2154
        %2156 = vdwg.mxu0
        %v2158 = vlaneseq
        %v2159 = vshrl.u32 %v2158, 7
        %v2160 = vsub.s32 0, %v2159
        %v2161 = vrot.slane %v1725, %v2160
        %v2162 = vlaneseq
        %v2163 = vshrl.u32 %v2162, 7
        %v2164 = vsub.s32 1, %v2163
        %v2165 = vrot.slane %v1725, %v2164
        %v2168 = vmul.f32 %v2011, %v2161
        %v2169 = vmul.f32 %v2013, %v2165
        %v2171 = vlaneseq
        %v2172 = vshrl.u32 %v2171, 7
        %v2173 = vsub.s32 0, %v2172
        %v2174 = vrot.slane %v1727, %v2173
        %v2175 = vlaneseq
        %v2176 = vshrl.u32 %v2175, 7
        %v2177 = vsub.s32 1, %v2176
        %v2178 = vrot.slane %v1727, %v2177
        %v2181 = vadd.f32 %v2168, %v2174
        %v2182 = vadd.f32 %v2169, %v2178
        %v2183 = vmul.f32 %v2153, %v2161
        %v2184 = vmul.f32 %v2155, %v2165
        %v2185 = vadd.f32 %v2183, %v2174
        %v2186 = vadd.f32 %v2184, %v2178
        %v2187 = vxor.u32 %v2182, 2147483648
        %v2188 = vmul.f32 %v2187, 1.442695
        %v2189 = vpow.pop %v2188
        %v2190 = vadd.f32 %v2189, 1.0
        %v2191 = vrcp.pop %v2190
        %v2192 = vmul.f32 1.0, %v2191
        %v2193 = vmul.f32 %v2181, %v2192
        %v2194 = vxor.u32 %v2186, 2147483648
        %v2195 = vmul.f32 %v2194, 1.442695
        %v2196 = vpow.pop %v2195
        %v2197 = vadd.f32 %v2196, 1.0
        %v2198 = vrcp.pop %v2197
        %v2199 = vmul.f32 1.0, %v2198
        %v2200 = vmul.f32 %v2185, %v2199
        %v2201 = vadd.s32 %v738, 8
        %vm2202 = vcmp.eq.s32.totalorder %v1432, %v2201
        %v2203 = vsel %vm2202, 1, 0
        %v2204 = vcvt.s32.f32 %v2203
        %vm2205 = vcmp.eq.s32.totalorder %v1436, %v2201
        %v2206 = vsel %vm2205, 1, 0
        %v2207 = vcvt.s32.f32 %v2206
        %v2208 = vsel %vm1728, %v1439, 0
        %v2211 = vsel %vm1728, %v2207, 0
        %2213 = vmatprep.subr.mxu0 0.0
        %2214 = vmatpush1.msra.mxu0 %v2200
        %2215 = vmatprep.subr.mxu0 0.0
        %2216 = vmatpush1.msra.mxu0 0.0
        %2217 = vmatprep.subr.mxu0 0.0
        %2218 = vmatpush1.msra.mxu0 0.0
        %2219 = vmatprep.subr.mxu0 0.0
        %2220 = vmatpush1.msra.mxu0 0.0
        %2221 = vmatprep.subr.mxu0 0.0
        %2222 = vmatpush1.msra.mxu0 0.0
        %2223 = vmatprep.subr.mxu0 0.0
        %2224 = vmatpush1.msra.mxu0 0.0
        %2225 = vmatprep.subr.mxu0 0.0
        %2226 = vmatpush1.msra.mxu0 0.0
        %2227 = vmatprep.subr.mxu0 0.0
        %2228 = vmatpush1.msra.mxu0 0.0
        %2229 = vmatprep.subr.mxu0 0.0
        %2230 = vmatpush1.msra.mxu0 0.0
        %2231 = vmatprep.subr.mxu0 0.0
        %2232 = vmatpush1.msra.mxu0 0.0
        %2233 = vmatprep.subr.mxu0 0.0
        %2234 = vmatpush1.msra.mxu0 0.0
        %2235 = vmatprep.subr.mxu0 0.0
        %2236 = vmatpush1.msra.mxu0 0.0
        %2237 = vmatprep.subr.mxu0 0.0
        %2238 = vmatpush1.msra.mxu0 0.0
        %2239 = vmatprep.subr.mxu0 0.0
        %2240 = vmatpush1.msra.mxu0 0.0
        %2241 = vmatprep.subr.mxu0 0.0
        %2242 = vmatpush1.msra.mxu0 0.0
        %2243 = vmatprep.subr.mxu0 0.0
        %2244 = vmatpush1.msra.mxu0 0.0
        %2245 = vmatprep.subr.mxu0 0.0
        %2246 = vmatpush1.msra.mxu0 0.0
        %2247 = vmatprep.subr.mxu0 0.0
        %2248 = vmatpush1.msra.mxu0 0.0
        %2249 = vmatprep.subr.mxu0 0.0
        %2250 = vmatpush1.msra.mxu0 0.0
        %2251 = vmatprep.subr.mxu0 0.0
        %2252 = vmatpush1.msra.mxu0 0.0
        %2253 = vmatprep.subr.mxu0 0.0
        %2254 = vmatpush1.msra.mxu0 0.0
        %2255 = vmatprep.subr.mxu0 0.0
        %2256 = vmatpush1.msra.mxu0 0.0
        %2257 = vmatprep.subr.mxu0 0.0
        %2258 = vmatpush1.msra.mxu0 0.0
        %2259 = vmatprep.subr.mxu0 0.0
        %2260 = vmatpush1.msra.mxu0 0.0
        %2261 = vmatprep.subr.mxu0 0.0
        %2262 = vmatpush1.msra.mxu0 0.0
        %2263 = vmatprep.subr.mxu0 0.0
        %2264 = vmatpush1.msra.mxu0 0.0
        %2265 = vmatprep.subr.mxu0 0.0
        %2266 = vmatpush1.msra.mxu0 0.0
        %2267 = vmatprep.subr.mxu0 0.0
        %2268 = vmatpush1.msra.mxu0 0.0
        %2269 = vmatprep.subr.mxu0 0.0
        %2270 = vmatpush1.msra.mxu0 0.0
        %2271 = vmatprep.subr.mxu0 0.0
        %2272 = vmatpush1.msra.mxu0 0.0
        %2273 = vmatprep.subr.mxu0 0.0
        %2274 = vmatpush1.msra.mxu0 0.0
        %2275 = vmatprep.subr.mxu0 0.0
        %2276 = vmatpush1.msra.mxu0 0.0
        %2277 = vmatprep.mubr.f32.mxu0 0.0
        %2278 = vmatmul.mubr.f32.gmra.mrb[0].mxu0 %v2208
        %v2279 = vpop.f32.mrb[0].mxu0
        %v2280 = vadd.f32 0.0, %v2279
        %v2281 = vpop.f32.mrb[0].mxu0
        %2282 = vmatprep.mubr.f32.mxu0 0.0
        %2283 = vmatmul.mubr.f32.gmra.mrb[0].mxu0 %v2211
        %v2284 = vpop.f32.mrb[0].mxu0
        %v2285 = vadd.f32 0.0, %v2284
        %v2286 = vpop.f32.mrb[0].mxu0
        %2287 = vdwg.mxu0
        %v2288 = vsel %vm1728, %v1435, 0
        %v2291 = vsel %vm1728, %v2204, 0
        %2293 = vmatprep.subr.mxu0 0.0
        %2294 = vmatpush1.msra.mxu0 %v2193
        %2295 = vmatprep.subr.mxu0 0.0
        %2296 = vmatpush1.msra.mxu0 0.0
        %2297 = vmatprep.subr.mxu0 0.0
        %2298 = vmatpush1.msra.mxu0 0.0
        %2299 = vmatprep.subr.mxu0 0.0
        %2300 = vmatpush1.msra.mxu0 0.0
        %2301 = vmatprep.subr.mxu0 0.0
        %2302 = vmatpush1.msra.mxu0 0.0
        %2303 = vmatprep.subr.mxu0 0.0
        %2304 = vmatpush1.msra.mxu0 0.0
        %2305 = vmatprep.subr.mxu0 0.0
        %2306 = vmatpush1.msra.mxu0 0.0
        %2307 = vmatprep.subr.mxu0 0.0
        %2308 = vmatpush1.msra.mxu0 0.0
        %2309 = vmatprep.subr.mxu0 0.0
        %2310 = vmatpush1.msra.mxu0 0.0
        %2311 = vmatprep.subr.mxu0 0.0
        %2312 = vmatpush1.msra.mxu0 0.0
        %2313 = vmatprep.subr.mxu0 0.0
        %2314 = vmatpush1.msra.mxu0 0.0
        %2315 = vmatprep.subr.mxu0 0.0
        %2316 = vmatpush1.msra.mxu0 0.0
        %2317 = vmatprep.subr.mxu0 0.0
        %2318 = vmatpush1.msra.mxu0 0.0
        %2319 = vmatprep.subr.mxu0 0.0
        %2320 = vmatpush1.msra.mxu0 0.0
        %2321 = vmatprep.subr.mxu0 0.0
        %2322 = vmatpush1.msra.mxu0 0.0
        %2323 = vmatprep.subr.mxu0 0.0
        %2324 = vmatpush1.msra.mxu0 0.0
        %2325 = vmatprep.subr.mxu0 0.0
        %2326 = vmatpush1.msra.mxu0 0.0
        %2327 = vmatprep.subr.mxu0 0.0
        %2328 = vmatpush1.msra.mxu0 0.0
        %2329 = vmatprep.subr.mxu0 0.0
        %2330 = vmatpush1.msra.mxu0 0.0
        %2331 = vmatprep.subr.mxu0 0.0
        %2332 = vmatpush1.msra.mxu0 0.0
        %2333 = vmatprep.subr.mxu0 0.0
        %2334 = vmatpush1.msra.mxu0 0.0
        %2335 = vmatprep.subr.mxu0 0.0
        %2336 = vmatpush1.msra.mxu0 0.0
        %2337 = vmatprep.subr.mxu0 0.0
        %2338 = vmatpush1.msra.mxu0 0.0
        %2339 = vmatprep.subr.mxu0 0.0
        %2340 = vmatpush1.msra.mxu0 0.0
        %2341 = vmatprep.subr.mxu0 0.0
        %2342 = vmatpush1.msra.mxu0 0.0
        %2343 = vmatprep.subr.mxu0 0.0
        %2344 = vmatpush1.msra.mxu0 0.0
        %2345 = vmatprep.subr.mxu0 0.0
        %2346 = vmatpush1.msra.mxu0 0.0
        %2347 = vmatprep.subr.mxu0 0.0
        %2348 = vmatpush1.msra.mxu0 0.0
        %2349 = vmatprep.subr.mxu0 0.0
        %2350 = vmatpush1.msra.mxu0 0.0
        %2351 = vmatprep.subr.mxu0 0.0
        %2352 = vmatpush1.msra.mxu0 0.0
        %2353 = vmatprep.subr.mxu0 0.0
        %2354 = vmatpush1.msra.mxu0 0.0
        %2355 = vmatprep.subr.mxu0 0.0
        %2356 = vmatpush1.msra.mxu0 0.0
        %2357 = vmatprep.mubr.f32.mxu0 0.0
        %2358 = vmatmul.mubr.f32.gmra.mrb[0].mxu0 %v2288
        %v2359 = vpop.f32.mrb[0].mxu0
        %v2360 = vadd.f32 %v2280, %v2359
        %v2361 = vpop.f32.mrb[0].mxu0
        %2362 = vmatprep.mubr.f32.mxu0 0.0
        %2363 = vmatmul.mubr.f32.gmra.mrb[0].mxu0 %v2291
        %v2364 = vpop.f32.mrb[0].mxu0
        %v2365 = vadd.f32 %v2285, %v2364
        %v2366 = vpop.f32.mrb[0].mxu0
        %2367 = vdwg.mxu0
        %s2368 = scalar_lea.vmem [#allocation10], 2048
        %v2369 = vld [vmem:[%s2368] sm:$0xff]
        %v2370 = vld [vmem:[%s2368 + $0x8] sm:$0xff]
        %v2371 = vld [vmem:[%s2368 + $0x10] sm:$0xff]
        %v2372 = vld [vmem:[%s2368 + $0x18] sm:$0xff]
        %v2373 = vld [vmem:[%s2368 + $0x20] sm:$0xff]
        %v2374 = vld [vmem:[%s2368 + $0x28] sm:$0xff]
        %v2375 = vld [vmem:[%s2368 + $0x30] sm:$0xff]
        %v2376 = vld [vmem:[%s2368 + $0x38] sm:$0xff]
        %v2377 = vld [vmem:[%s2368 + $0x40] sm:$0xff]
        %v2378 = vld [vmem:[%s2368 + $0x48] sm:$0xff]
        %v2379 = vld [vmem:[%s2368 + $0x50] sm:$0xff]
        %v2380 = vld [vmem:[%s2368 + $0x58] sm:$0xff]
        %v2381 = vld [vmem:[%s2368 + $0x60] sm:$0xff]
        %v2382 = vld [vmem:[%s2368 + $0x68] sm:$0xff]
        %v2383 = vld [vmem:[%s2368 + $0x70] sm:$0xff]
        %v2384 = vld [vmem:[%s2368 + $0x78] sm:$0xff]
        %v2385 = vld [vmem:[%s2368 + $0x80] sm:$0xff]
        %v2386 = vld [vmem:[%s2368 + $0x88] sm:$0xff]
        %v2387 = vld [vmem:[%s2368 + $0x90] sm:$0xff]
        %v2388 = vld [vmem:[%s2368 + $0x98] sm:$0xff]
        %v2389 = vld [vmem:[%s2368 + $0xa0] sm:$0xff]
        %v2390 = vld [vmem:[%s2368 + $0xa8] sm:$0xff]
        %v2391 = vld [vmem:[%s2368 + $0xb0] sm:$0xff]
        %v2392 = vld [vmem:[%s2368 + $0xb8] sm:$0xff]
        %v2393 = vld [vmem:[%s2368 + $0xc0] sm:$0xff]
        %v2394 = vld [vmem:[%s2368 + $0xc8] sm:$0xff]
        %v2395 = vld [vmem:[%s2368 + $0xd0] sm:$0xff]
        %v2396 = vld [vmem:[%s2368 + $0xd8] sm:$0xff]
        %v2397 = vld [vmem:[%s2368 + $0xe0] sm:$0xff]
        %v2398 = vld [vmem:[%s2368 + $0xe8] sm:$0xff]
        %v2399 = vld [vmem:[%s2368 + $0xf0] sm:$0xff]
        %v2400 = vld [vmem:[%s2368 + $0xf8] sm:$0xff]
        %s2401 = scalar_lea.vmem [#allocation10], 2304
        %v2402 = vld [vmem:[%s2401] sm:$0xff]
        %v2403 = vld [vmem:[%s2401 + $0x8] sm:$0xff]
        %v2404 = vld [vmem:[%s2401 + $0x10] sm:$0xff]
        %v2405 = vld [vmem:[%s2401 + $0x18] sm:$0xff]
        %v2406 = vld [vmem:[%s2401 + $0x20] sm:$0xff]
        %v2407 = vld [vmem:[%s2401 + $0x28] sm:$0xff]
        %v2408 = vld [vmem:[%s2401 + $0x30] sm:$0xff]
        %v2409 = vld [vmem:[%s2401 + $0x38] sm:$0xff]
        %v2410 = vld [vmem:[%s2401 + $0x40] sm:$0xff]
        %v2411 = vld [vmem:[%s2401 + $0x48] sm:$0xff]
        %v2412 = vld [vmem:[%s2401 + $0x50] sm:$0xff]
        %v2413 = vld [vmem:[%s2401 + $0x58] sm:$0xff]
        %v2414 = vld [vmem:[%s2401 + $0x60] sm:$0xff]
        %v2415 = vld [vmem:[%s2401 + $0x68] sm:$0xff]
        %v2416 = vld [vmem:[%s2401 + $0x70] sm:$0xff]
        %v2417 = vld [vmem:[%s2401 + $0x78] sm:$0xff]
        %v2418 = vld [vmem:[%s2401 + $0x80] sm:$0xff]
        %v2419 = vld [vmem:[%s2401 + $0x88] sm:$0xff]
        %v2420 = vld [vmem:[%s2401 + $0x90] sm:$0xff]
        %v2421 = vld [vmem:[%s2401 + $0x98] sm:$0xff]
        %v2422 = vld [vmem:[%s2401 + $0xa0] sm:$0xff]
        %v2423 = vld [vmem:[%s2401 + $0xa8] sm:$0xff]
        %v2424 = vld [vmem:[%s2401 + $0xb0] sm:$0xff]
        %v2425 = vld [vmem:[%s2401 + $0xb8] sm:$0xff]
        %v2426 = vld [vmem:[%s2401 + $0xc0] sm:$0xff]
        %v2427 = vld [vmem:[%s2401 + $0xc8] sm:$0xff]
        %v2428 = vld [vmem:[%s2401 + $0xd0] sm:$0xff]
        %v2429 = vld [vmem:[%s2401 + $0xd8] sm:$0xff]
        %v2430 = vld [vmem:[%s2401 + $0xe0] sm:$0xff]
        %v2431 = vld [vmem:[%s2401 + $0xe8] sm:$0xff]
        %v2432 = vld [vmem:[%s2401 + $0xf0] sm:$0xff]
        %v2433 = vld [vmem:[%s2401 + $0xf8] sm:$0xff]
        %s2434 = scalar_lea.vmem [#allocation10], 2560
        %v2435 = vld [vmem:[%s2434] sm:$0xff]
        %v2436 = vld [vmem:[%s2434 + $0x8] sm:$0xff]
        %v2437 = vld [vmem:[%s2434 + $0x10] sm:$0xff]
        %v2438 = vld [vmem:[%s2434 + $0x18] sm:$0xff]
        %v2439 = vld [vmem:[%s2434 + $0x20] sm:$0xff]
        %v2440 = vld [vmem:[%s2434 + $0x28] sm:$0xff]
        %v2441 = vld [vmem:[%s2434 + $0x30] sm:$0xff]
        %v2442 = vld [vmem:[%s2434 + $0x38] sm:$0xff]
        %v2443 = vld [vmem:[%s2434 + $0x40] sm:$0xff]
        %v2444 = vld [vmem:[%s2434 + $0x48] sm:$0xff]
        %v2445 = vld [vmem:[%s2434 + $0x50] sm:$0xff]
        %v2446 = vld [vmem:[%s2434 + $0x58] sm:$0xff]
        %v2447 = vld [vmem:[%s2434 + $0x60] sm:$0xff]
        %v2448 = vld [vmem:[%s2434 + $0x68] sm:$0xff]
        %v2449 = vld [vmem:[%s2434 + $0x70] sm:$0xff]
        %v2450 = vld [vmem:[%s2434 + $0x78] sm:$0xff]
        %v2451 = vld [vmem:[%s2434 + $0x80] sm:$0xff]
        %v2452 = vld [vmem:[%s2434 + $0x88] sm:$0xff]
        %v2453 = vld [vmem:[%s2434 + $0x90] sm:$0xff]
        %v2454 = vld [vmem:[%s2434 + $0x98] sm:$0xff]
        %v2455 = vld [vmem:[%s2434 + $0xa0] sm:$0xff]
        %v2456 = vld [vmem:[%s2434 + $0xa8] sm:$0xff]
        %v2457 = vld [vmem:[%s2434 + $0xb0] sm:$0xff]
        %v2458 = vld [vmem:[%s2434 + $0xb8] sm:$0xff]
        %v2459 = vld [vmem:[%s2434 + $0xc0] sm:$0xff]
        %v2460 = vld [vmem:[%s2434 + $0xc8] sm:$0xff]
        %v2461 = vld [vmem:[%s2434 + $0xd0] sm:$0xff]
        %v2462 = vld [vmem:[%s2434 + $0xd8] sm:$0xff]
        %v2463 = vld [vmem:[%s2434 + $0xe0] sm:$0xff]
        %v2464 = vld [vmem:[%s2434 + $0xe8] sm:$0xff]
        %v2465 = vld [vmem:[%s2434 + $0xf0] sm:$0xff]
        %v2466 = vld [vmem:[%s2434 + $0xf8] sm:$0xff]
        %s2467 = scalar_lea.vmem [#allocation10], 2816
        %v2468 = vld [vmem:[%s2467] sm:$0xff]
        %v2469 = vld [vmem:[%s2467 + $0x8] sm:$0xff]
        %v2470 = vld [vmem:[%s2467 + $0x10] sm:$0xff]
        %v2471 = vld [vmem:[%s2467 + $0x18] sm:$0xff]
        %v2472 = vld [vmem:[%s2467 + $0x20] sm:$0xff]
        %v2473 = vld [vmem:[%s2467 + $0x28] sm:$0xff]
        %v2474 = vld [vmem:[%s2467 + $0x30] sm:$0xff]
        %v2475 = vld [vmem:[%s2467 + $0x38] sm:$0xff]
        %v2476 = vld [vmem:[%s2467 + $0x40] sm:$0xff]
        %v2477 = vld [vmem:[%s2467 + $0x48] sm:$0xff]
        %v2478 = vld [vmem:[%s2467 + $0x50] sm:$0xff]
        %v2479 = vld [vmem:[%s2467 + $0x58] sm:$0xff]
        %v2480 = vld [vmem:[%s2467 + $0x60] sm:$0xff]
        %v2481 = vld [vmem:[%s2467 + $0x68] sm:$0xff]
        %v2482 = vld [vmem:[%s2467 + $0x70] sm:$0xff]
        %v2483 = vld [vmem:[%s2467 + $0x78] sm:$0xff]
        %v2484 = vld [vmem:[%s2467 + $0x80] sm:$0xff]
        %v2485 = vld [vmem:[%s2467 + $0x88] sm:$0xff]
        %v2486 = vld [vmem:[%s2467 + $0x90] sm:$0xff]
        %v2487 = vld [vmem:[%s2467 + $0x98] sm:$0xff]
        %v2488 = vld [vmem:[%s2467 + $0xa0] sm:$0xff]
        %v2489 = vld [vmem:[%s2467 + $0xa8] sm:$0xff]
        %v2490 = vld [vmem:[%s2467 + $0xb0] sm:$0xff]
        %v2491 = vld [vmem:[%s2467 + $0xb8] sm:$0xff]
        %v2492 = vld [vmem:[%s2467 + $0xc0] sm:$0xff]
        %v2493 = vld [vmem:[%s2467 + $0xc8] sm:$0xff]
        %v2494 = vld [vmem:[%s2467 + $0xd0] sm:$0xff]
        %v2495 = vld [vmem:[%s2467 + $0xd8] sm:$0xff]
        %v2496 = vld [vmem:[%s2467 + $0xe0] sm:$0xff]
        %v2497 = vld [vmem:[%s2467 + $0xe8] sm:$0xff]
        %v2498 = vld [vmem:[%s2467 + $0xf0] sm:$0xff]
        %v2499 = vld [vmem:[%s2467 + $0xf8] sm:$0xff]
        %s2500 = scalar_lea.vmem [#allocation11], 4
        %v2501 = vld [vmem:[%s2500] sm:$0x3]
        %s2502 = scalar_lea.vmem [#allocation13], 4
        %v2503 = vld [vmem:[%s2502] sm:$0x3]
        %v2504 = vsub.s32 %v2201, 1
        %vm2505 = vcmp.eq.s32.totalorder %v944, %v2504
        %v2506 = vsel %vm2505, 1, 0
        %v2507 = vcvt.s32.f32 %v2506
        %v2508 = vadd.s32 %v2201, 1
        %vm2509 = vcmp.eq.s32.totalorder %v944, %v2508
        %v2510 = vsel %vm2509, 1, 0
        %v2511 = vcvt.s32.f32 %v2510
        %vm2512 = vcmask 130048
        %v2513 = vsel %vm2512, %v948, 0
        %v2516 = vsel %vm2512, %v2507, 0
        %2518 = vmatprep.subr.mxu0 0.0
        %2519 = vmatpush1.msra.mxu0 %v2360
        %2520 = vmatprep.subr.mxu0 0.0
        %2521 = vmatpush1.msra.mxu0 %v2365
        %2522 = vmatprep.subr.mxu0 0.0
        %2523 = vmatpush1.msra.mxu0 0.0
        %2524 = vmatprep.subr.mxu0 0.0
        %2525 = vmatpush1.msra.mxu0 0.0
        %2526 = vmatprep.subr.mxu0 0.0
        %2527 = vmatpush1.msra.mxu0 0.0
        %2528 = vmatprep.subr.mxu0 0.0
        %2529 = vmatpush1.msra.mxu0 0.0
        %2530 = vmatprep.subr.mxu0 0.0
        %2531 = vmatpush1.msra.mxu0 0.0
        %2532 = vmatprep.subr.mxu0 0.0
        %2533 = vmatpush1.msra.mxu0 0.0
        %2534 = vmatprep.subr.mxu0 0.0
        %2535 = vmatpush1.msra.mxu0 0.0
        %2536 = vmatprep.subr.mxu0 0.0
        %2537 = vmatpush1.msra.mxu0 0.0
        %2538 = vmatprep.subr.mxu0 0.0
        %2539 = vmatpush1.msra.mxu0 0.0
        %2540 = vmatprep.subr.mxu0 0.0
        %2541 = vmatpush1.msra.mxu0 0.0
        %2542 = vmatprep.subr.mxu0 0.0
        %2543 = vmatpush1.msra.mxu0 0.0
        %2544 = vmatprep.subr.mxu0 0.0
        %2545 = vmatpush1.msra.mxu0 0.0
        %2546 = vmatprep.subr.mxu0 0.0
        %2547 = vmatpush1.msra.mxu0 0.0
        %2548 = vmatprep.subr.mxu0 0.0
        %2549 = vmatpush1.msra.mxu0 0.0
        %2550 = vmatprep.subr.mxu0 0.0
        %2551 = vmatpush1.msra.mxu0 0.0
        %2552 = vmatprep.subr.mxu0 0.0
        %2553 = vmatpush1.msra.mxu0 0.0
        %2554 = vmatprep.subr.mxu0 0.0
        %2555 = vmatpush1.msra.mxu0 0.0
        %2556 = vmatprep.subr.mxu0 0.0
        %2557 = vmatpush1.msra.mxu0 0.0
        %2558 = vmatprep.subr.mxu0 0.0
        %2559 = vmatpush1.msra.mxu0 0.0
        %2560 = vmatprep.subr.mxu0 0.0
        %2561 = vmatpush1.msra.mxu0 0.0
        %2562 = vmatprep.subr.mxu0 0.0
        %2563 = vmatpush1.msra.mxu0 0.0
        %2564 = vmatprep.subr.mxu0 0.0
        %2565 = vmatpush1.msra.mxu0 0.0
        %2566 = vmatprep.subr.mxu0 0.0
        %2567 = vmatpush1.msra.mxu0 0.0
        %2568 = vmatprep.subr.mxu0 0.0
        %2569 = vmatpush1.msra.mxu0 0.0
        %2570 = vmatprep.subr.mxu0 0.0
        %2571 = vmatpush1.msra.mxu0 0.0
        %2572 = vmatprep.subr.mxu0 0.0
        %2573 = vmatpush1.msra.mxu0 0.0
        %2574 = vmatprep.subr.mxu0 0.0
        %2575 = vmatpush1.msra.mxu0 0.0
        %2576 = vmatprep.subr.mxu0 0.0
        %2577 = vmatpush1.msra.mxu0 0.0
        %2578 = vmatprep.subr.mxu0 0.0
        %2579 = vmatpush1.msra.mxu0 0.0
        %2580 = vmatprep.subr.mxu0 0.0
        %2581 = vmatpush1.msra.mxu0 0.0
        %2582 = vmatprep.mubr.f32.mxu0 0.0
        %2583 = vmatmul.mubr.f32.gmra.mrb[0].mxu0 %v2513
        %v2584 = vpop.f32.mrb[0].mxu0
        %v2585 = vadd.f32 0.0, %v2584
        %v2586 = vpop.f32.mrb[0].mxu0
        %2587 = vmatprep.mubr.f32.mxu0 0.0
        %2588 = vmatmul.mubr.f32.gmra.mrb[0].mxu0 %v2516
        %v2589 = vpop.f32.mrb[0].mxu0
        %v2590 = vadd.f32 0.0, %v2589
        %v2591 = vpop.f32.mrb[0].mxu0
        %2592 = vdwg.mxu0
        %v2593 = vsel %vm2512, %v952, 0
        %v2596 = vsel %vm2512, %v2511, 0
        %2598 = vmatprep.subr.mxu0 0.0
        %2599 = vmatpush1.msra.mxu0 %v2360
        %2600 = vmatprep.subr.mxu0 0.0
        %2601 = vmatpush1.msra.mxu0 %v2365
        %2602 = vmatprep.subr.mxu0 0.0
        %2603 = vmatpush1.msra.mxu0 0.0
        %2604 = vmatprep.subr.mxu0 0.0
        %2605 = vmatpush1.msra.mxu0 0.0
        %2606 = vmatprep.subr.mxu0 0.0
        %2607 = vmatpush1.msra.mxu0 0.0
        %2608 = vmatprep.subr.mxu0 0.0
        %2609 = vmatpush1.msra.mxu0 0.0
        %2610 = vmatprep.subr.mxu0 0.0
        %2611 = vmatpush1.msra.mxu0 0.0
        %2612 = vmatprep.subr.mxu0 0.0
        %2613 = vmatpush1.msra.mxu0 0.0
        %2614 = vmatprep.subr.mxu0 0.0
        %2615 = vmatpush1.msra.mxu0 0.0
        %2616 = vmatprep.subr.mxu0 0.0
        %2617 = vmatpush1.msra.mxu0 0.0
        %2618 = vmatprep.subr.mxu0 0.0
        %2619 = vmatpush1.msra.mxu0 0.0
        %2620 = vmatprep.subr.mxu0 0.0
        %2621 = vmatpush1.msra.mxu0 0.0
        %2622 = vmatprep.subr.mxu0 0.0
        %2623 = vmatpush1.msra.mxu0 0.0
        %2624 = vmatprep.subr.mxu0 0.0
        %2625 = vmatpush1.msra.mxu0 0.0
        %2626 = vmatprep.subr.mxu0 0.0
        %2627 = vmatpush1.msra.mxu0 0.0
        %2628 = vmatprep.subr.mxu0 0.0
        %2629 = vmatpush1.msra.mxu0 0.0
        %2630 = vmatprep.subr.mxu0 0.0
        %2631 = vmatpush1.msra.mxu0 0.0
        %2632 = vmatprep.subr.mxu0 0.0
        %2633 = vmatpush1.msra.mxu0 0.0
        %2634 = vmatprep.subr.mxu0 0.0
        %2635 = vmatpush1.msra.mxu0 0.0
        %2636 = vmatprep.subr.mxu0 0.0
        %2637 = vmatpush1.msra.mxu0 0.0
        %2638 = vmatprep.subr.mxu0 0.0
        %2639 = vmatpush1.msra.mxu0 0.0
        %2640 = vmatprep.subr.mxu0 0.0
        %2641 = vmatpush1.msra.mxu0 0.0
        %2642 = vmatprep.subr.mxu0 0.0
        %2643 = vmatpush1.msra.mxu0 0.0
        %2644 = vmatprep.subr.mxu0 0.0
        %2645 = vmatpush1.msra.mxu0 0.0
        %2646 = vmatprep.subr.mxu0 0.0
        %2647 = vmatpush1.msra.mxu0 0.0
        %2648 = vmatprep.subr.mxu0 0.0
        %2649 = vmatpush1.msra.mxu0 0.0
        %2650 = vmatprep.subr.mxu0 0.0
        %2651 = vmatpush1.msra.mxu0 0.0
        %2652 = vmatprep.subr.mxu0 0.0
        %2653 = vmatpush1.msra.mxu0 0.0
        %2654 = vmatprep.subr.mxu0 0.0
        %2655 = vmatpush1.msra.mxu0 0.0
        %2656 = vmatprep.subr.mxu0 0.0
        %2657 = vmatpush1.msra.mxu0 0.0
        %2658 = vmatprep.subr.mxu0 0.0
        %2659 = vmatpush1.msra.mxu0 0.0
        %2660 = vmatprep.subr.mxu0 0.0
        %2661 = vmatpush1.msra.mxu0 0.0
        %2662 = vmatprep.mubr.f32.mxu0 0.0
        %2663 = vmatmul.mubr.f32.gmra.mrb[0].mxu0 %v2593
        %v2664 = vpop.f32.mrb[0].mxu0
        %v2665 = vadd.f32 0.0, %v2664
        %v2666 = vpop.f32.mrb[0].mxu0
        %2667 = vmatprep.mubr.f32.mxu0 0.0
        %2668 = vmatmul.mubr.f32.gmra.mrb[0].mxu0 %v2596
        %v2669 = vpop.f32.mrb[0].mxu0
        %v2670 = vadd.f32 0.0, %v2669
        %v2671 = vpop.f32.mrb[0].mxu0
        %2672 = vdwg.mxu0
        %2673 = vmatprep.subr.mxu0 %v2403
        %2674 = vmatpush1.msra.mxu0 %v2402
        %2675 = vmatprep.subr.mxu0 %v2405
        %2676 = vmatpush1.msra.mxu0 %v2404
        %2677 = vmatprep.subr.mxu0 %v2407
        %2678 = vmatpush1.msra.mxu0 %v2406
        %2679 = vmatprep.subr.mxu0 %v2409
        %2680 = vmatpush1.msra.mxu0 %v2408
        %2681 = vmatprep.subr.mxu0 %v2411
        %2682 = vmatpush1.msra.mxu0 %v2410
        %2683 = vmatprep.subr.mxu0 %v2413
        %2684 = vmatpush1.msra.mxu0 %v2412
        %2685 = vmatprep.subr.mxu0 %v2415
        %2686 = vmatpush1.msra.mxu0 %v2414
        %2687 = vmatprep.subr.mxu0 %v2417
        %2688 = vmatpush1.msra.mxu0 %v2416
        %2689 = vmatprep.subr.mxu0 %v2419
        %2690 = vmatpush1.msra.mxu0 %v2418
        %2691 = vmatprep.subr.mxu0 %v2421
        %2692 = vmatpush1.msra.mxu0 %v2420
        %2693 = vmatprep.subr.mxu0 %v2423
        %2694 = vmatpush1.msra.mxu0 %v2422
        %2695 = vmatprep.subr.mxu0 %v2425
        %2696 = vmatpush1.msra.mxu0 %v2424
        %2697 = vmatprep.subr.mxu0 %v2427
        %2698 = vmatpush1.msra.mxu0 %v2426
        %2699 = vmatprep.subr.mxu0 %v2429
        %2700 = vmatpush1.msra.mxu0 %v2428
        %2701 = vmatprep.subr.mxu0 %v2431
        %2702 = vmatpush1.msra.mxu0 %v2430
        %2703 = vmatprep.subr.mxu0 %v2433
        %2704 = vmatpush1.msra.mxu0 %v2432
        %2705 = vmatprep.subr.mxu0 0.0
        %2706 = vmatpush1.msra.mxu0 0.0
        %2707 = vmatprep.subr.mxu0 0.0
        %2708 = vmatpush1.msra.mxu0 0.0
        %2709 = vmatprep.subr.mxu0 0.0
        %2710 = vmatpush1.msra.mxu0 0.0
        %2711 = vmatprep.subr.mxu0 0.0
        %2712 = vmatpush1.msra.mxu0 0.0
        %2713 = vmatprep.subr.mxu0 0.0
        %2714 = vmatpush1.msra.mxu0 0.0
        %2715 = vmatprep.subr.mxu0 0.0
        %2716 = vmatpush1.msra.mxu0 0.0
        %2717 = vmatprep.subr.mxu0 0.0
        %2718 = vmatpush1.msra.mxu0 0.0
        %2719 = vmatprep.subr.mxu0 0.0
        %2720 = vmatpush1.msra.mxu0 0.0
        %2721 = vmatprep.subr.mxu0 0.0
        %2722 = vmatpush1.msra.mxu0 0.0
        %2723 = vmatprep.subr.mxu0 0.0
        %2724 = vmatpush1.msra.mxu0 0.0
        %2725 = vmatprep.subr.mxu0 0.0
        %2726 = vmatpush1.msra.mxu0 0.0
        %2727 = vmatprep.subr.mxu0 0.0
        %2728 = vmatpush1.msra.mxu0 0.0
        %2729 = vmatprep.subr.mxu0 0.0
        %2730 = vmatpush1.msra.mxu0 0.0
        %2731 = vmatprep.subr.mxu0 0.0
        %2732 = vmatpush1.msra.mxu0 0.0
        %2733 = vmatprep.subr.mxu0 0.0
        %2734 = vmatpush1.msra.mxu0 0.0
        %2735 = vmatprep.subr.mxu0 0.0
        %2736 = vmatpush1.msra.mxu0 0.0
        %2737 = vmatprep.mubr.f32.mxu0 0.0
        %2738 = vmatmul.mubr.f32.gmra.mrb[0].mxu0 %v2360
        %v2739 = vpop.f32.mrb[0].mxu0
        %v2740 = vadd.f32 0.0, %v2739
        %v2741 = vpop.f32.mrb[0].mxu0
        %v2742 = vadd.f32 0.0, %v2741
        %2743 = vmatprep.mubr.f32.mxu0 0.0
        %2744 = vmatmul.mubr.f32.gmra.mrb[0].mxu0 %v2365
        %v2745 = vpop.f32.mrb[0].mxu0
        %v2746 = vadd.f32 0.0, %v2745
        %v2747 = vpop.f32.mrb[0].mxu0
        %v2748 = vadd.f32 0.0, %v2747
        %2749 = vdwg.mxu0
        %2750 = vmatprep.subr.mxu0 %v2370
        %2751 = vmatpush1.msra.mxu0 %v2369
        %2752 = vmatprep.subr.mxu0 %v2372
        %2753 = vmatpush1.msra.mxu0 %v2371
        %2754 = vmatprep.subr.mxu0 %v2374
        %2755 = vmatpush1.msra.mxu0 %v2373
        %2756 = vmatprep.subr.mxu0 %v2376
        %2757 = vmatpush1.msra.mxu0 %v2375
        %2758 = vmatprep.subr.mxu0 %v2378
        %2759 = vmatpush1.msra.mxu0 %v2377
        %2760 = vmatprep.subr.mxu0 %v2380
        %2761 = vmatpush1.msra.mxu0 %v2379
        %2762 = vmatprep.subr.mxu0 %v2382
        %2763 = vmatpush1.msra.mxu0 %v2381
        %2764 = vmatprep.subr.mxu0 %v2384
        %2765 = vmatpush1.msra.mxu0 %v2383
        %2766 = vmatprep.subr.mxu0 %v2386
        %2767 = vmatpush1.msra.mxu0 %v2385
        %2768 = vmatprep.subr.mxu0 %v2388
        %2769 = vmatpush1.msra.mxu0 %v2387
        %2770 = vmatprep.subr.mxu0 %v2390
        %2771 = vmatpush1.msra.mxu0 %v2389
        %2772 = vmatprep.subr.mxu0 %v2392
        %2773 = vmatpush1.msra.mxu0 %v2391
        %2774 = vmatprep.subr.mxu0 %v2394
        %2775 = vmatpush1.msra.mxu0 %v2393
        %2776 = vmatprep.subr.mxu0 %v2396
        %2777 = vmatpush1.msra.mxu0 %v2395
        %2778 = vmatprep.subr.mxu0 %v2398
        %2779 = vmatpush1.msra.mxu0 %v2397
        %2780 = vmatprep.subr.mxu0 %v2400
        %2781 = vmatpush1.msra.mxu0 %v2399
        %2782 = vmatprep.subr.mxu0 0.0
        %2783 = vmatpush1.msra.mxu0 0.0
        %2784 = vmatprep.subr.mxu0 0.0
        %2785 = vmatpush1.msra.mxu0 0.0
        %2786 = vmatprep.subr.mxu0 0.0
        %2787 = vmatpush1.msra.mxu0 0.0
        %2788 = vmatprep.subr.mxu0 0.0
        %2789 = vmatpush1.msra.mxu0 0.0
        %2790 = vmatprep.subr.mxu0 0.0
        %2791 = vmatpush1.msra.mxu0 0.0
        %2792 = vmatprep.subr.mxu0 0.0
        %2793 = vmatpush1.msra.mxu0 0.0
        %2794 = vmatprep.subr.mxu0 0.0
        %2795 = vmatpush1.msra.mxu0 0.0
        %2796 = vmatprep.subr.mxu0 0.0
        %2797 = vmatpush1.msra.mxu0 0.0
        %2798 = vmatprep.subr.mxu0 0.0
        %2799 = vmatpush1.msra.mxu0 0.0
        %2800 = vmatprep.subr.mxu0 0.0
        %2801 = vmatpush1.msra.mxu0 0.0
        %2802 = vmatprep.subr.mxu0 0.0
        %2803 = vmatpush1.msra.mxu0 0.0
        %2804 = vmatprep.subr.mxu0 0.0
        %2805 = vmatpush1.msra.mxu0 0.0
        %2806 = vmatprep.subr.mxu0 0.0
        %2807 = vmatpush1.msra.mxu0 0.0
        %2808 = vmatprep.subr.mxu0 0.0
        %2809 = vmatpush1.msra.mxu0 0.0
        %2810 = vmatprep.subr.mxu0 0.0
        %2811 = vmatpush1.msra.mxu0 0.0
        %2812 = vmatprep.subr.mxu0 0.0
        %2813 = vmatpush1.msra.mxu0 0.0
        %2814 = vmatprep.mubr.f32.mxu0 0.0
        %2815 = vmatmul.mubr.f32.gmra.mrb[0].mxu0 %v2585
        %v2816 = vpop.f32.mrb[0].mxu0
        %v2817 = vadd.f32 %v2740, %v2816
        %v2818 = vpop.f32.mrb[0].mxu0
        %v2819 = vadd.f32 %v2742, %v2818
        %2820 = vmatprep.mubr.f32.mxu0 0.0
        %2821 = vmatmul.mubr.f32.gmra.mrb[0].mxu0 %v2590
        %v2822 = vpop.f32.mrb[0].mxu0
        %v2823 = vadd.f32 %v2746, %v2822
        %v2824 = vpop.f32.mrb[0].mxu0
        %v2825 = vadd.f32 %v2748, %v2824
        %2826 = vdwg.mxu0
        %2827 = vmatprep.subr.mxu0 %v2469
        %2828 = vmatpush1.msra.mxu0 %v2468
        %2829 = vmatprep.subr.mxu0 %v2471
        %2830 = vmatpush1.msra.mxu0 %v2470
        %2831 = vmatprep.subr.mxu0 %v2473
        %2832 = vmatpush1.msra.mxu0 %v2472
        %2833 = vmatprep.subr.mxu0 %v2475
        %2834 = vmatpush1.msra.mxu0 %v2474
        %2835 = vmatprep.subr.mxu0 %v2477
        %2836 = vmatpush1.msra.mxu0 %v2476
        %2837 = vmatprep.subr.mxu0 %v2479
        %2838 = vmatpush1.msra.mxu0 %v2478
        %2839 = vmatprep.subr.mxu0 %v2481
        %2840 = vmatpush1.msra.mxu0 %v2480
        %2841 = vmatprep.subr.mxu0 %v2483
        %2842 = vmatpush1.msra.mxu0 %v2482
        %2843 = vmatprep.subr.mxu0 %v2485
        %2844 = vmatpush1.msra.mxu0 %v2484
        %2845 = vmatprep.subr.mxu0 %v2487
        %2846 = vmatpush1.msra.mxu0 %v2486
        %2847 = vmatprep.subr.mxu0 %v2489
        %2848 = vmatpush1.msra.mxu0 %v2488
        %2849 = vmatprep.subr.mxu0 %v2491
        %2850 = vmatpush1.msra.mxu0 %v2490
        %2851 = vmatprep.subr.mxu0 %v2493
        %2852 = vmatpush1.msra.mxu0 %v2492
        %2853 = vmatprep.subr.mxu0 %v2495
        %2854 = vmatpush1.msra.mxu0 %v2494
        %2855 = vmatprep.subr.mxu0 %v2497
        %2856 = vmatpush1.msra.mxu0 %v2496
        %2857 = vmatprep.subr.mxu0 %v2499
        %2858 = vmatpush1.msra.mxu0 %v2498
        %2859 = vmatprep.subr.mxu0 0.0
        %2860 = vmatpush1.msra.mxu0 0.0
        %2861 = vmatprep.subr.mxu0 0.0
        %2862 = vmatpush1.msra.mxu0 0.0
        %2863 = vmatprep.subr.mxu0 0.0
        %2864 = vmatpush1.msra.mxu0 0.0
        %2865 = vmatprep.subr.mxu0 0.0
        %2866 = vmatpush1.msra.mxu0 0.0
        %2867 = vmatprep.subr.mxu0 0.0
        %2868 = vmatpush1.msra.mxu0 0.0
        %2869 = vmatprep.subr.mxu0 0.0
        %2870 = vmatpush1.msra.mxu0 0.0
        %2871 = vmatprep.subr.mxu0 0.0
        %2872 = vmatpush1.msra.mxu0 0.0
        %2873 = vmatprep.subr.mxu0 0.0
        %2874 = vmatpush1.msra.mxu0 0.0
        %2875 = vmatprep.subr.mxu0 0.0
        %2876 = vmatpush1.msra.mxu0 0.0
        %2877 = vmatprep.subr.mxu0 0.0
        %2878 = vmatpush1.msra.mxu0 0.0
        %2879 = vmatprep.subr.mxu0 0.0
        %2880 = vmatpush1.msra.mxu0 0.0
        %2881 = vmatprep.subr.mxu0 0.0
        %2882 = vmatpush1.msra.mxu0 0.0
        %2883 = vmatprep.subr.mxu0 0.0
        %2884 = vmatpush1.msra.mxu0 0.0
        %2885 = vmatprep.subr.mxu0 0.0
        %2886 = vmatpush1.msra.mxu0 0.0
        %2887 = vmatprep.subr.mxu0 0.0
        %2888 = vmatpush1.msra.mxu0 0.0
        %2889 = vmatprep.subr.mxu0 0.0
        %2890 = vmatpush1.msra.mxu0 0.0
        %2891 = vmatprep.mubr.f32.mxu0 0.0
        %2892 = vmatmul.mubr.f32.gmra.mrb[0].mxu0 %v2665
        %v2893 = vpop.f32.mrb[0].mxu0
        %v2894 = vadd.f32 0.0, %v2893
        %v2895 = vpop.f32.mrb[0].mxu0
        %v2896 = vadd.f32 0.0, %v2895
        %2897 = vmatprep.mubr.f32.mxu0 0.0
        %2898 = vmatmul.mubr.f32.gmra.mrb[0].mxu0 %v2670
        %v2899 = vpop.f32.mrb[0].mxu0
        %v2900 = vadd.f32 0.0, %v2899
        %v2901 = vpop.f32.mrb[0].mxu0
        %v2902 = vadd.f32 0.0, %v2901
        %2903 = vdwg.mxu0
        %2904 = vmatprep.subr.mxu0 %v2436
        %2905 = vmatpush1.msra.mxu0 %v2435
        %2906 = vmatprep.subr.mxu0 %v2438
        %2907 = vmatpush1.msra.mxu0 %v2437
        %2908 = vmatprep.subr.mxu0 %v2440
        %2909 = vmatpush1.msra.mxu0 %v2439
        %2910 = vmatprep.subr.mxu0 %v2442
        %2911 = vmatpush1.msra.mxu0 %v2441
        %2912 = vmatprep.subr.mxu0 %v2444
        %2913 = vmatpush1.msra.mxu0 %v2443
        %2914 = vmatprep.subr.mxu0 %v2446
        %2915 = vmatpush1.msra.mxu0 %v2445
        %2916 = vmatprep.subr.mxu0 %v2448
        %2917 = vmatpush1.msra.mxu0 %v2447
        %2918 = vmatprep.subr.mxu0 %v2450
        %2919 = vmatpush1.msra.mxu0 %v2449
        %2920 = vmatprep.subr.mxu0 %v2452
        %2921 = vmatpush1.msra.mxu0 %v2451
        %2922 = vmatprep.subr.mxu0 %v2454
        %2923 = vmatpush1.msra.mxu0 %v2453
        %2924 = vmatprep.subr.mxu0 %v2456
        %2925 = vmatpush1.msra.mxu0 %v2455
        %2926 = vmatprep.subr.mxu0 %v2458
        %2927 = vmatpush1.msra.mxu0 %v2457
        %2928 = vmatprep.subr.mxu0 %v2460
        %2929 = vmatpush1.msra.mxu0 %v2459
        %2930 = vmatprep.subr.mxu0 %v2462
        %2931 = vmatpush1.msra.mxu0 %v2461
        %2932 = vmatprep.subr.mxu0 %v2464
        %2933 = vmatpush1.msra.mxu0 %v2463
        %2934 = vmatprep.subr.mxu0 %v2466
        %2935 = vmatpush1.msra.mxu0 %v2465
        %2936 = vmatprep.subr.mxu0 0.0
        %2937 = vmatpush1.msra.mxu0 0.0
        %2938 = vmatprep.subr.mxu0 0.0
        %2939 = vmatpush1.msra.mxu0 0.0
        %2940 = vmatprep.subr.mxu0 0.0
        %2941 = vmatpush1.msra.mxu0 0.0
        %2942 = vmatprep.subr.mxu0 0.0
        %2943 = vmatpush1.msra.mxu0 0.0
        %2944 = vmatprep.subr.mxu0 0.0
        %2945 = vmatpush1.msra.mxu0 0.0
        %2946 = vmatprep.subr.mxu0 0.0
        %2947 = vmatpush1.msra.mxu0 0.0
        %2948 = vmatprep.subr.mxu0 0.0
        %2949 = vmatpush1.msra.mxu0 0.0
        %2950 = vmatprep.subr.mxu0 0.0
        %2951 = vmatpush1.msra.mxu0 0.0
        %2952 = vmatprep.subr.mxu0 0.0
        %2953 = vmatpush1.msra.mxu0 0.0
        %2954 = vmatprep.subr.mxu0 0.0
        %2955 = vmatpush1.msra.mxu0 0.0
        %2956 = vmatprep.subr.mxu0 0.0
        %2957 = vmatpush1.msra.mxu0 0.0
        %2958 = vmatprep.subr.mxu0 0.0
        %2959 = vmatpush1.msra.mxu0 0.0
        %2960 = vmatprep.subr.mxu0 0.0
        %2961 = vmatpush1.msra.mxu0 0.0
        %2962 = vmatprep.subr.mxu0 0.0
        %2963 = vmatpush1.msra.mxu0 0.0
        %2964 = vmatprep.subr.mxu0 0.0
        %2965 = vmatpush1.msra.mxu0 0.0
        %2966 = vmatprep.subr.mxu0 0.0
        %2967 = vmatpush1.msra.mxu0 0.0
        %2968 = vmatprep.mubr.f32.mxu0 0.0
        %2969 = vmatmul.mubr.f32.gmra.mrb[0].mxu0 %v2360
        %v2970 = vpop.f32.mrb[0].mxu0
        %v2971 = vadd.f32 %v2894, %v2970
        %v2972 = vpop.f32.mrb[0].mxu0
        %v2973 = vadd.f32 %v2896, %v2972
        %2974 = vmatprep.mubr.f32.mxu0 0.0
        %2975 = vmatmul.mubr.f32.gmra.mrb[0].mxu0 %v2365
        %v2976 = vpop.f32.mrb[0].mxu0
        %v2977 = vadd.f32 %v2900, %v2976
        %v2978 = vpop.f32.mrb[0].mxu0
        %v2979 = vadd.f32 %v2902, %v2978
        %2980 = vdwg.mxu0
        %v2982 = vlaneseq
        %v2983 = vshrl.u32 %v2982, 7
        %v2984 = vsub.s32 0, %v2983
        %v2985 = vrot.slane %v2501, %v2984
        %v2986 = vlaneseq
        %v2987 = vshrl.u32 %v2986, 7
        %v2988 = vsub.s32 1, %v2987
        %v2989 = vrot.slane %v2501, %v2988
        %v2992 = vmul.f32 %v2817, %v2985
        %v2993 = vmul.f32 %v2819, %v2989
        %v2994 = vmul.f32 %v2823, %v2985
        %v2995 = vmul.f32 %v2825, %v2989
        %v2997 = vlaneseq
        %v2998 = vshrl.u32 %v2997, 7
        %v2999 = vsub.s32 0, %v2998
        %v3000 = vrot.slane %v2503, %v2999
        %v3001 = vlaneseq
        %v3002 = vshrl.u32 %v3001, 7
        %v3003 = vsub.s32 1, %v3002
        %v3004 = vrot.slane %v2503, %v3003
        %v3007 = vadd.f32 %v2992, %v3000
        %v3008 = vadd.f32 %v2993, %v3004
        %v3009 = vadd.f32 %v2994, %v3000
        %v3010 = vadd.f32 %v2995, %v3004
        %v3011 = vmul.f32 %v2971, %v2985
        %v3012 = vmul.f32 %v2973, %v2989
        %v3013 = vmul.f32 %v2977, %v2985
        %v3014 = vmul.f32 %v2979, %v2989
        %v3015 = vadd.f32 %v3011, %v3000
        %v3016 = vadd.f32 %v3012, %v3004
        %v3017 = vadd.f32 %v3013, %v3000
        %v3018 = vadd.f32 %v3014, %v3004
        %v3019 = vxor.u32 %v3008, 2147483648
        %v3020 = vxor.u32 %v3010, 2147483648
        %v3021 = vmul.f32 %v3019, 1.442695
        %v3022 = vpow.pop %v3021
        %v3023 = vmul.f32 %v3020, 1.442695
        %v3024 = vpow.pop %v3023
        %v3025 = vadd.f32 %v3022, 1.0
        %v3026 = vadd.f32 %v3024, 1.0
        %v3027 = vrcp.pop %v3025
        %v3028 = vmul.f32 1.0, %v3027
        %v3029 = vrcp.pop %v3026
        %v3030 = vmul.f32 1.0, %v3029
        %v3031 = vmul.f32 %v3007, %v3028
        %v3032 = vmul.f32 %v3009, %v3030
        %v3033 = vxor.u32 %v3016, 2147483648
        %v3034 = vxor.u32 %v3018, 2147483648
        %v3035 = vmul.f32 %v3033, 1.442695
        %v3036 = vpow.pop %v3035
        %v3037 = vmul.f32 %v3034, 1.442695
        %v3038 = vpow.pop %v3037
        %v3039 = vadd.f32 %v3036, 1.0
        %v3040 = vadd.f32 %v3038, 1.0
        %v3041 = vrcp.pop %v3039
        %v3042 = vmul.f32 1.0, %v3041
        %v3043 = vrcp.pop %v3040
        %v3044 = vmul.f32 1.0, %v3043
        %v3045 = vmul.f32 %v3015, %v3042
        %v3046 = vmul.f32 %v3017, %v3044
        %v3047 = vadd.s32 %v738, 16
        %v3048 = vadd.s32 %v738, 24
        %vm3049 = vcmp.eq.s32.totalorder %v1432, %v3047
        %vm3050 = vcmp.eq.s32.totalorder %v1432, %v3048
        %v3051 = vsel %vm3049, 1, 0
        %v3052 = vsel %vm3050, 1, 0
        %v3053 = vcvt.s32.f32 %v3051
        %v3054 = vcvt.s32.f32 %v3052
        %vm3055 = vcmp.eq.s32.totalorder %v1436, %v3047
        %vm3056 = vcmp.eq.s32.totalorder %v1436, %v3048
        %v3057 = vsel %vm3055, 1, 0
        %v3058 = vsel %vm3056, 1, 0
        %v3059 = vcvt.s32.f32 %v3057
        %v3060 = vcvt.s32.f32 %v3058
        %v3061 = vsel %vm2512, %v1439, 0
        %v3063 = vsel %vm2512, %v2207, 0
        %v3066 = vsel %vm2512, %v3059, 0
        %v3069 = vsel %vm2512, %v3060, 0
        %3071 = vmatprep.subr.mxu0 0.0
        %3072 = vmatpush1.msra.mxu0 %v3045
        %3073 = vmatprep.subr.mxu0 0.0
        %3074 = vmatpush1.msra.mxu0 %v3046
        %3075 = vmatprep.subr.mxu0 0.0
        %3076 = vmatpush1.msra.mxu0 0.0
        %3077 = vmatprep.subr.mxu0 0.0
        %3078 = vmatpush1.msra.mxu0 0.0
        %3079 = vmatprep.subr.mxu0 0.0
        %3080 = vmatpush1.msra.mxu0 0.0
        %3081 = vmatprep.subr.mxu0 0.0
        %3082 = vmatpush1.msra.mxu0 0.0
        %3083 = vmatprep.subr.mxu0 0.0
        %3084 = vmatpush1.msra.mxu0 0.0
        %3085 = vmatprep.subr.mxu0 0.0
        %3086 = vmatpush1.msra.mxu0 0.0
        %3087 = vmatprep.subr.mxu0 0.0
        %3088 = vmatpush1.msra.mxu0 0.0
        %3089 = vmatprep.subr.mxu0 0.0
        %3090 = vmatpush1.msra.mxu0 0.0
        %3091 = vmatprep.subr.mxu0 0.0
        %3092 = vmatpush1.msra.mxu0 0.0
        %3093 = vmatprep.subr.mxu0 0.0
        %3094 = vmatpush1.msra.mxu0 0.0
        %3095 = vmatprep.subr.mxu0 0.0
        %3096 = vmatpush1.msra.mxu0 0.0
        %3097 = vmatprep.subr.mxu0 0.0
        %3098 = vmatpush1.msra.mxu0 0.0
        %3099 = vmatprep.subr.mxu0 0.0
        %3100 = vmatpush1.msra.mxu0 0.0
        %3101 = vmatprep.subr.mxu0 0.0
        %3102 = vmatpush1.msra.mxu0 0.0
        %3103 = vmatprep.subr.mxu0 0.0
        %3104 = vmatpush1.msra.mxu0 0.0
        %3105 = vmatprep.subr.mxu0 0.0
        %3106 = vmatpush1.msra.mxu0 0.0
        %3107 = vmatprep.subr.mxu0 0.0
        %3108 = vmatpush1.msra.mxu0 0.0
        %3109 = vmatprep.subr.mxu0 0.0
        %3110 = vmatpush1.msra.mxu0 0.0
        %3111 = vmatprep.subr.mxu0 0.0
        %3112 = vmatpush1.msra.mxu0 0.0
        %3113 = vmatprep.subr.mxu0 0.0
        %3114 = vmatpush1.msra.mxu0 0.0
        %3115 = vmatprep.subr.mxu0 0.0
        %3116 = vmatpush1.msra.mxu0 0.0
        %3117 = vmatprep.subr.mxu0 0.0
        %3118 = vmatpush1.msra.mxu0 0.0
        %3119 = vmatprep.subr.mxu0 0.0
        %3120 = vmatpush1.msra.mxu0 0.0
        %3121 = vmatprep.subr.mxu0 0.0
        %3122 = vmatpush1.msra.mxu0 0.0
        %3123 = vmatprep.subr.mxu0 0.0
        %3124 = vmatpush1.msra.mxu0 0.0
        %3125 = vmatprep.subr.mxu0 0.0
        %3126 = vmatpush1.msra.mxu0 0.0
        %3127 = vmatprep.subr.mxu0 0.0
        %3128 = vmatpush1.msra.mxu0 0.0
        %3129 = vmatprep.subr.mxu0 0.0
        %3130 = vmatpush1.msra.mxu0 0.0
        %3131 = vmatprep.subr.mxu0 0.0
        %3132 = vmatpush1.msra.mxu0 0.0
        %3133 = vmatprep.subr.mxu0 0.0
        %3134 = vmatpush1.msra.mxu0 0.0
        %3135 = vmatprep.mubr.f32.mxu0 0.0
        %3136 = vmatmul.mubr.f32.gmra.mrb[0].mxu0 %v3061
        %v3137 = vpop.f32.mrb[0].mxu0
        %v3138 = vadd.f32 0.0, %v3137
        %v3139 = vpop.f32.mrb[0].mxu0
        %3140 = vmatprep.mubr.f32.mxu0 0.0
        %3141 = vmatmul.mubr.f32.gmra.mrb[0].mxu0 %v3063
        %v3142 = vpop.f32.mrb[0].mxu0
        %v3143 = vadd.f32 0.0, %v3142
        %v3144 = vpop.f32.mrb[0].mxu0
        %3145 = vmatprep.mubr.f32.mxu0 0.0
        %3146 = vmatmul.mubr.f32.gmra.mrb[0].mxu0 %v3066
        %v3147 = vpop.f32.mrb[0].mxu0
        %v3148 = vadd.f32 0.0, %v3147
        %v3149 = vpop.f32.mrb[0].mxu0
        %3150 = vmatprep.mubr.f32.mxu0 0.0
        %3151 = vmatmul.mubr.f32.gmra.mrb[0].mxu0 %v3069
        %v3152 = vpop.f32.mrb[0].mxu0
        %v3153 = vadd.f32 0.0, %v3152
        %v3154 = vpop.f32.mrb[0].mxu0
        %3155 = vdwg.mxu0
        %v3156 = vsel %vm2512, %v1435, 0
        %v3158 = vsel %vm2512, %v2204, 0
        %v3161 = vsel %vm2512, %v3053, 0
        %v3164 = vsel %vm2512, %v3054, 0
        %3166 = vmatprep.subr.mxu0 0.0
        %3167 = vmatpush1.msra.mxu0 %v3031
        %3168 = vmatprep.subr.mxu0 0.0
        %3169 = vmatpush1.msra.mxu0 %v3032
        %3170 = vmatprep.subr.mxu0 0.0
        %3171 = vmatpush1.msra.mxu0 0.0
        %3172 = vmatprep.subr.mxu0 0.0
        %3173 = vmatpush1.msra.mxu0 0.0
        %3174 = vmatprep.subr.mxu0 0.0
        %3175 = vmatpush1.msra.mxu0 0.0
        %3176 = vmatprep.subr.mxu0 0.0
        %3177 = vmatpush1.msra.mxu0 0.0
        %3178 = vmatprep.subr.mxu0 0.0
        %3179 = vmatpush1.msra.mxu0 0.0
        %3180 = vmatprep.subr.mxu0 0.0
        %3181 = vmatpush1.msra.mxu0 0.0
        %3182 = vmatprep.subr.mxu0 0.0
        %3183 = vmatpush1.msra.mxu0 0.0
        %3184 = vmatprep.subr.mxu0 0.0
        %3185 = vmatpush1.msra.mxu0 0.0
        %3186 = vmatprep.subr.mxu0 0.0
        %3187 = vmatpush1.msra.mxu0 0.0
        %3188 = vmatprep.subr.mxu0 0.0
        %3189 = vmatpush1.msra.mxu0 0.0
        %3190 = vmatprep.subr.mxu0 0.0
        %3191 = vmatpush1.msra.mxu0 0.0
        %3192 = vmatprep.subr.mxu0 0.0
        %3193 = vmatpush1.msra.mxu0 0.0
        %3194 = vmatprep.subr.mxu0 0.0
        %3195 = vmatpush1.msra.mxu0 0.0
        %3196 = vmatprep.subr.mxu0 0.0
        %3197 = vmatpush1.msra.mxu0 0.0
        %3198 = vmatprep.subr.mxu0 0.0
        %3199 = vmatpush1.msra.mxu0 0.0
        %3200 = vmatprep.subr.mxu0 0.0
        %3201 = vmatpush1.msra.mxu0 0.0
        %3202 = vmatprep.subr.mxu0 0.0
        %3203 = vmatpush1.msra.mxu0 0.0
        %3204 = vmatprep.subr.mxu0 0.0
        %3205 = vmatpush1.msra.mxu0 0.0
        %3206 = vmatprep.subr.mxu0 0.0
        %3207 = vmatpush1.msra.mxu0 0.0
        %3208 = vmatprep.subr.mxu0 0.0
        %3209 = vmatpush1.msra.mxu0 0.0
        %3210 = vmatprep.subr.mxu0 0.0
        %3211 = vmatpush1.msra.mxu0 0.0
        %3212 = vmatprep.subr.mxu0 0.0
        %3213 = vmatpush1.msra.mxu0 0.0
        %3214 = vmatprep.subr.mxu0 0.0
        %3215 = vmatpush1.msra.mxu0 0.0
        %3216 = vmatprep.subr.mxu0 0.0
        %3217 = vmatpush1.msra.mxu0 0.0
        %3218 = vmatprep.subr.mxu0 0.0
        %3219 = vmatpush1.msra.mxu0 0.0
        %3220 = vmatprep.subr.mxu0 0.0
        %3221 = vmatpush1.msra.mxu0 0.0
        %3222 = vmatprep.subr.mxu0 0.0
        %3223 = vmatpush1.msra.mxu0 0.0
        %3224 = vmatprep.subr.mxu0 0.0
        %3225 = vmatpush1.msra.mxu0 0.0
        %3226 = vmatprep.subr.mxu0 0.0
        %3227 = vmatpush1.msra.mxu0 0.0
        %3228 = vmatprep.subr.mxu0 0.0
        %3229 = vmatpush1.msra.mxu0 0.0
        %3230 = vmatprep.mubr.f32.mxu0 0.0
        %3231 = vmatmul.mubr.f32.gmra.mrb[0].mxu0 %v3156
        %v3232 = vpop.f32.mrb[0].mxu0
        %v3233 = vadd.f32 %v3138, %v3232
        %v3234 = vpop.f32.mrb[0].mxu0
        %3235 = vmatprep.mubr.f32.mxu0 0.0
        %3236 = vmatmul.mubr.f32.gmra.mrb[0].mxu0 %v3158
        %v3237 = vpop.f32.mrb[0].mxu0
        %v3238 = vadd.f32 %v3143, %v3237
        %v3239 = vpop.f32.mrb[0].mxu0
        %3240 = vmatprep.mubr.f32.mxu0 0.0
        %3241 = vmatmul.mubr.f32.gmra.mrb[0].mxu0 %v3161
        %v3242 = vpop.f32.mrb[0].mxu0
        %v3243 = vadd.f32 %v3148, %v3242
        %v3244 = vpop.f32.mrb[0].mxu0
        %3245 = vmatprep.mubr.f32.mxu0 0.0
        %3246 = vmatmul.mubr.f32.gmra.mrb[0].mxu0 %v3164
        %v3247 = vpop.f32.mrb[0].mxu0
        %v3248 = vadd.f32 %v3153, %v3247
        %v3249 = vpop.f32.mrb[0].mxu0
        %3250 = vdwg.mxu0
        %s3251 = scalar_lea.vmem [#allocation10], 3072
        %v3252 = vld [vmem:[%s3251] sm:$0xff]
        %v3253 = vld [vmem:[%s3251 + $0x8] sm:$0xff]
        %v3254 = vld [vmem:[%s3251 + $0x10] sm:$0xff]
        %v3255 = vld [vmem:[%s3251 + $0x18] sm:$0xff]
        %v3256 = vld [vmem:[%s3251 + $0x20] sm:$0xff]
        %v3257 = vld [vmem:[%s3251 + $0x28] sm:$0xff]
        %v3258 = vld [vmem:[%s3251 + $0x30] sm:$0xff]
        %v3259 = vld [vmem:[%s3251 + $0x38] sm:$0xff]
        %v3260 = vld [vmem:[%s3251 + $0x40] sm:$0xff]
        %v3261 = vld [vmem:[%s3251 + $0x48] sm:$0xff]
        %v3262 = vld [vmem:[%s3251 + $0x50] sm:$0xff]
        %v3263 = vld [vmem:[%s3251 + $0x58] sm:$0xff]
        %v3264 = vld [vmem:[%s3251 + $0x60] sm:$0xff]
        %v3265 = vld [vmem:[%s3251 + $0x68] sm:$0xff]
        %v3266 = vld [vmem:[%s3251 + $0x70] sm:$0xff]
        %v3267 = vld [vmem:[%s3251 + $0x78] sm:$0xff]
        %v3268 = vld [vmem:[%s3251 + $0x80] sm:$0xff]
        %v3269 = vld [vmem:[%s3251 + $0x88] sm:$0xff]
        %v3270 = vld [vmem:[%s3251 + $0x90] sm:$0xff]
        %v3271 = vld [vmem:[%s3251 + $0x98] sm:$0xff]
        %v3272 = vld [vmem:[%s3251 + $0xa0] sm:$0xff]
        %v3273 = vld [vmem:[%s3251 + $0xa8] sm:$0xff]
        %v3274 = vld [vmem:[%s3251 + $0xb0] sm:$0xff]
        %v3275 = vld [vmem:[%s3251 + $0xb8] sm:$0xff]
        %v3276 = vld [vmem:[%s3251 + $0xc0] sm:$0xff]
        %v3277 = vld [vmem:[%s3251 + $0xc8] sm:$0xff]
        %v3278 = vld [vmem:[%s3251 + $0xd0] sm:$0xff]
        %v3279 = vld [vmem:[%s3251 + $0xd8] sm:$0xff]
        %v3280 = vld [vmem:[%s3251 + $0xe0] sm:$0xff]
        %v3281 = vld [vmem:[%s3251 + $0xe8] sm:$0xff]
        %v3282 = vld [vmem:[%s3251 + $0xf0] sm:$0xff]
        %v3283 = vld [vmem:[%s3251 + $0xf8] sm:$0xff]
        %s3284 = scalar_lea.vmem [#allocation10], 3328
        %v3285 = vld [vmem:[%s3284] sm:$0xff]
        %v3286 = vld [vmem:[%s3284 + $0x8] sm:$0xff]
        %v3287 = vld [vmem:[%s3284 + $0x10] sm:$0xff]
        %v3288 = vld [vmem:[%s3284 + $0x18] sm:$0xff]
        %v3289 = vld [vmem:[%s3284 + $0x20] sm:$0xff]
        %v3290 = vld [vmem:[%s3284 + $0x28] sm:$0xff]
        %v3291 = vld [vmem:[%s3284 + $0x30] sm:$0xff]
        %v3292 = vld [vmem:[%s3284 + $0x38] sm:$0xff]
        %v3293 = vld [vmem:[%s3284 + $0x40] sm:$0xff]
        %v3294 = vld [vmem:[%s3284 + $0x48] sm:$0xff]
        %v3295 = vld [vmem:[%s3284 + $0x50] sm:$0xff]
        %v3296 = vld [vmem:[%s3284 + $0x58] sm:$0xff]
        %v3297 = vld [vmem:[%s3284 + $0x60] sm:$0xff]
        %v3298 = vld [vmem:[%s3284 + $0x68] sm:$0xff]
        %v3299 = vld [vmem:[%s3284 + $0x70] sm:$0xff]
        %v3300 = vld [vmem:[%s3284 + $0x78] sm:$0xff]
        %v3301 = vld [vmem:[%s3284 + $0x80] sm:$0xff]
        %v3302 = vld [vmem:[%s3284 + $0x88] sm:$0xff]
        %v3303 = vld [vmem:[%s3284 + $0x90] sm:$0xff]
        %v3304 = vld [vmem:[%s3284 + $0x98] sm:$0xff]
        %v3305 = vld [vmem:[%s3284 + $0xa0] sm:$0xff]
        %v3306 = vld [vmem:[%s3284 + $0xa8] sm:$0xff]
        %v3307 = vld [vmem:[%s3284 + $0xb0] sm:$0xff]
        %v3308 = vld [vmem:[%s3284 + $0xb8] sm:$0xff]
        %v3309 = vld [vmem:[%s3284 + $0xc0] sm:$0xff]
        %v3310 = vld [vmem:[%s3284 + $0xc8] sm:$0xff]
        %v3311 = vld [vmem:[%s3284 + $0xd0] sm:$0xff]
        %v3312 = vld [vmem:[%s3284 + $0xd8] sm:$0xff]
        %v3313 = vld [vmem:[%s3284 + $0xe0] sm:$0xff]
        %v3314 = vld [vmem:[%s3284 + $0xe8] sm:$0xff]
        %v3315 = vld [vmem:[%s3284 + $0xf0] sm:$0xff]
        %v3316 = vld [vmem:[%s3284 + $0xf8] sm:$0xff]
        %s3317 = scalar_lea.vmem [#allocation10], 3584
        %v3318 = vld [vmem:[%s3317] sm:$0xff]
        %v3319 = vld [vmem:[%s3317 + $0x8] sm:$0xff]
        %v3320 = vld [vmem:[%s3317 + $0x10] sm:$0xff]
        %v3321 = vld [vmem:[%s3317 + $0x18] sm:$0xff]
        %v3322 = vld [vmem:[%s3317 + $0x20] sm:$0xff]
        %v3323 = vld [vmem:[%s3317 + $0x28] sm:$0xff]
        %v3324 = vld [vmem:[%s3317 + $0x30] sm:$0xff]
        %v3325 = vld [vmem:[%s3317 + $0x38] sm:$0xff]
        %v3326 = vld [vmem:[%s3317 + $0x40] sm:$0xff]
        %v3327 = vld [vmem:[%s3317 + $0x48] sm:$0xff]
        %v3328 = vld [vmem:[%s3317 + $0x50] sm:$0xff]
        %v3329 = vld [vmem:[%s3317 + $0x58] sm:$0xff]
        %v3330 = vld [vmem:[%s3317 + $0x60] sm:$0xff]
        %v3331 = vld [vmem:[%s3317 + $0x68] sm:$0xff]
        %v3332 = vld [vmem:[%s3317 + $0x70] sm:$0xff]
        %v3333 = vld [vmem:[%s3317 + $0x78] sm:$0xff]
        %v3334 = vld [vmem:[%s3317 + $0x80] sm:$0xff]
        %v3335 = vld [vmem:[%s3317 + $0x88] sm:$0xff]
        %v3336 = vld [vmem:[%s3317 + $0x90] sm:$0xff]
        %v3337 = vld [vmem:[%s3317 + $0x98] sm:$0xff]
        %v3338 = vld [vmem:[%s3317 + $0xa0] sm:$0xff]
        %v3339 = vld [vmem:[%s3317 + $0xa8] sm:$0xff]
        %v3340 = vld [vmem:[%s3317 + $0xb0] sm:$0xff]
        %v3341 = vld [vmem:[%s3317 + $0xb8] sm:$0xff]
        %v3342 = vld [vmem:[%s3317 + $0xc0] sm:$0xff]
        %v3343 = vld [vmem:[%s3317 + $0xc8] sm:$0xff]
        %v3344 = vld [vmem:[%s3317 + $0xd0] sm:$0xff]
        %v3345 = vld [vmem:[%s3317 + $0xd8] sm:$0xff]
        %v3346 = vld [vmem:[%s3317 + $0xe0] sm:$0xff]
        %v3347 = vld [vmem:[%s3317 + $0xe8] sm:$0xff]
        %v3348 = vld [vmem:[%s3317 + $0xf0] sm:$0xff]
        %v3349 = vld [vmem:[%s3317 + $0xf8] sm:$0xff]
        %s3350 = scalar_lea.vmem [#allocation10], 3840
        %v3351 = vld [vmem:[%s3350] sm:$0xff]
        %v3352 = vld [vmem:[%s3350 + $0x8] sm:$0xff]
        %v3353 = vld [vmem:[%s3350 + $0x10] sm:$0xff]
        %v3354 = vld [vmem:[%s3350 + $0x18] sm:$0xff]
        %v3355 = vld [vmem:[%s3350 + $0x20] sm:$0xff]
        %v3356 = vld [vmem:[%s3350 + $0x28] sm:$0xff]
        %v3357 = vld [vmem:[%s3350 + $0x30] sm:$0xff]
        %v3358 = vld [vmem:[%s3350 + $0x38] sm:$0xff]
        %v3359 = vld [vmem:[%s3350 + $0x40] sm:$0xff]
        %v3360 = vld [vmem:[%s3350 + $0x48] sm:$0xff]
        %v3361 = vld [vmem:[%s3350 + $0x50] sm:$0xff]
        %v3362 = vld [vmem:[%s3350 + $0x58] sm:$0xff]
        %v3363 = vld [vmem:[%s3350 + $0x60] sm:$0xff]
        %v3364 = vld [vmem:[%s3350 + $0x68] sm:$0xff]
        %v3365 = vld [vmem:[%s3350 + $0x70] sm:$0xff]
        %v3366 = vld [vmem:[%s3350 + $0x78] sm:$0xff]
        %v3367 = vld [vmem:[%s3350 + $0x80] sm:$0xff]
        %v3368 = vld [vmem:[%s3350 + $0x88] sm:$0xff]
        %v3369 = vld [vmem:[%s3350 + $0x90] sm:$0xff]
        %v3370 = vld [vmem:[%s3350 + $0x98] sm:$0xff]
        %v3371 = vld [vmem:[%s3350 + $0xa0] sm:$0xff]
        %v3372 = vld [vmem:[%s3350 + $0xa8] sm:$0xff]
        %v3373 = vld [vmem:[%s3350 + $0xb0] sm:$0xff]
        %v3374 = vld [vmem:[%s3350 + $0xb8] sm:$0xff]
        %v3375 = vld [vmem:[%s3350 + $0xc0] sm:$0xff]
        %v3376 = vld [vmem:[%s3350 + $0xc8] sm:$0xff]
        %v3377 = vld [vmem:[%s3350 + $0xd0] sm:$0xff]
        %v3378 = vld [vmem:[%s3350 + $0xd8] sm:$0xff]
        %v3379 = vld [vmem:[%s3350 + $0xe0] sm:$0xff]
        %v3380 = vld [vmem:[%s3350 + $0xe8] sm:$0xff]
        %v3381 = vld [vmem:[%s3350 + $0xf0] sm:$0xff]
        %v3382 = vld [vmem:[%s3350 + $0xf8] sm:$0xff]
        %s3383 = scalar_lea.vmem [#allocation11], 6
        %v3384 = vld [vmem:[%s3383] sm:$0x3]
        %s3385 = scalar_lea.vmem [#allocation13], 6
        %v3386 = vld [vmem:[%s3385] sm:$0x3]
        %v3387 = vsub.s32 %v3047, 1
        %v3388 = vsub.s32 %v3048, 1
        %vm3389 = vcmp.eq.s32.totalorder %v944, %v3387
        %vm3390 = vcmp.eq.s32.totalorder %v944, %v3388
        %v3391 = vsel %vm3389, 1, 0
        %v3392 = vsel %vm3390, 1, 0
        %v3393 = vcvt.s32.f32 %v3391
        %v3394 = vcvt.s32.f32 %v3392
        %v3395 = vadd.s32 %v3047, 1
        %v3396 = vadd.s32 %v3048, 1
        %vm3397 = vcmp.eq.s32.totalorder %v944, %v3395
        %vm3398 = vcmp.eq.s32.totalorder %v944, %v3396
        %v3399 = vsel %vm3397, 1, 0
        %v3400 = vsel %vm3398, 1, 0
        %v3401 = vcvt.s32.f32 %v3399
        %v3402 = vcvt.s32.f32 %v3400
        %v3403 = vsel %vm449, %v948, 0
        %v3405 = vsel %vm449, %v2507, 0
        %v3408 = vsel %vm449, %v3393, 0
        %v3411 = vsel %vm449, %v3394, 0
        %3413 = vmatprep.subr.mxu0 0.0
        %3414 = vmatpush1.msra.mxu0 %v3233
        %3415 = vmatprep.subr.mxu0 0.0
        %3416 = vmatpush1.msra.mxu0 %v3238
        %3417 = vmatprep.subr.mxu0 0.0
        %3418 = vmatpush1.msra.mxu0 %v3243
        %3419 = vmatprep.subr.mxu0 0.0
        %3420 = vmatpush1.msra.mxu0 %v3248
        %3421 = vmatprep.subr.mxu0 0.0
        %3422 = vmatpush1.msra.mxu0 0.0
        %3423 = vmatprep.subr.mxu0 0.0
        %3424 = vmatpush1.msra.mxu0 0.0
        %3425 = vmatprep.subr.mxu0 0.0
        %3426 = vmatpush1.msra.mxu0 0.0
        %3427 = vmatprep.subr.mxu0 0.0
        %3428 = vmatpush1.msra.mxu0 0.0
        %3429 = vmatprep.subr.mxu0 0.0
        %3430 = vmatpush1.msra.mxu0 0.0
        %3431 = vmatprep.subr.mxu0 0.0
        %3432 = vmatpush1.msra.mxu0 0.0
        %3433 = vmatprep.subr.mxu0 0.0
        %3434 = vmatpush1.msra.mxu0 0.0
        %3435 = vmatprep.subr.mxu0 0.0
        %3436 = vmatpush1.msra.mxu0 0.0
        %3437 = vmatprep.subr.mxu0 0.0
        %3438 = vmatpush1.msra.mxu0 0.0
        %3439 = vmatprep.subr.mxu0 0.0
        %3440 = vmatpush1.msra.mxu0 0.0
        %3441 = vmatprep.subr.mxu0 0.0
        %3442 = vmatpush1.msra.mxu0 0.0
        %3443 = vmatprep.subr.mxu0 0.0
        %3444 = vmatpush1.msra.mxu0 0.0
        %3445 = vmatprep.subr.mxu0 0.0
        %3446 = vmatpush1.msra.mxu0 0.0
        %3447 = vmatprep.subr.mxu0 0.0
        %3448 = vmatpush1.msra.mxu0 0.0
        %3449 = vmatprep.subr.mxu0 0.0
        %3450 = vmatpush1.msra.mxu0 0.0
        %3451 = vmatprep.subr.mxu0 0.0
        %3452 = vmatpush1.msra.mxu0 0.0
        %3453 = vmatprep.subr.mxu0 0.0
        %3454 = vmatpush1.msra.mxu0 0.0
        %3455 = vmatprep.subr.mxu0 0.0
        %3456 = vmatpush1.msra.mxu0 0.0
        %3457 = vmatprep.subr.mxu0 0.0
        %3458 = vmatpush1.msra.mxu0 0.0
        %3459 = vmatprep.subr.mxu0 0.0
        %3460 = vmatpush1.msra.mxu0 0.0
        %3461 = vmatprep.subr.mxu0 0.0
        %3462 = vmatpush1.msra.mxu0 0.0
        %3463 = vmatprep.subr.mxu0 0.0
        %3464 = vmatpush1.msra.mxu0 0.0
        %3465 = vmatprep.subr.mxu0 0.0
        %3466 = vmatpush1.msra.mxu0 0.0
        %3467 = vmatprep.subr.mxu0 0.0
        %3468 = vmatpush1.msra.mxu0 0.0
        %3469 = vmatprep.subr.mxu0 0.0
        %3470 = vmatpush1.msra.mxu0 0.0
        %3471 = vmatprep.subr.mxu0 0.0
        %3472 = vmatpush1.msra.mxu0 0.0
        %3473 = vmatprep.subr.mxu0 0.0
        %3474 = vmatpush1.msra.mxu0 0.0
        %3475 = vmatprep.subr.mxu0 0.0
        %3476 = vmatpush1.msra.mxu0 0.0
        %3477 = vmatprep.mubr.f32.mxu0 0.0
        %3478 = vmatmul.mubr.f32.gmra.mrb[0].mxu0 %v3403
        %v3479 = vpop.f32.mrb[0].mxu0
        %v3480 = vadd.f32 0.0, %v3479
        %v3481 = vpop.f32.mrb[0].mxu0
        %3482 = vmatprep.mubr.f32.mxu0 0.0
        %3483 = vmatmul.mubr.f32.gmra.mrb[0].mxu0 %v3405
        %v3484 = vpop.f32.mrb[0].mxu0
        %v3485 = vadd.f32 0.0, %v3484
        %v3486 = vpop.f32.mrb[0].mxu0
        %3487 = vmatprep.mubr.f32.mxu0 0.0
        %3488 = vmatmul.mubr.f32.gmra.mrb[0].mxu0 %v3408
        %v3489 = vpop.f32.mrb[0].mxu0
        %v3490 = vadd.f32 0.0, %v3489
        %v3491 = vpop.f32.mrb[0].mxu0
        %3492 = vmatprep.mubr.f32.mxu0 0.0
        %3493 = vmatmul.mubr.f32.gmra.mrb[0].mxu0 %v3411
        %v3494 = vpop.f32.mrb[0].mxu0
        %v3495 = vadd.f32 0.0, %v3494
        %v3496 = vpop.f32.mrb[0].mxu0
        %3497 = vdwg.mxu0
        %v3498 = vsel %vm449, %v952, 0
        %v3500 = vsel %vm449, %v2511, 0
        %v3503 = vsel %vm449, %v3401, 0
        %v3506 = vsel %vm449, %v3402, 0
        %3508 = vmatprep.subr.mxu0 0.0
        %3509 = vmatpush1.msra.mxu0 %v3233
        %3510 = vmatprep.subr.mxu0 0.0
        %3511 = vmatpush1.msra.mxu0 %v3238
        %3512 = vmatprep.subr.mxu0 0.0
        %3513 = vmatpush1.msra.mxu0 %v3243
        %3514 = vmatprep.subr.mxu0 0.0
        %3515 = vmatpush1.msra.mxu0 %v3248
        %3516 = vmatprep.subr.mxu0 0.0
        %3517 = vmatpush1.msra.mxu0 0.0
        %3518 = vmatprep.subr.mxu0 0.0
        %3519 = vmatpush1.msra.mxu0 0.0
        %3520 = vmatprep.subr.mxu0 0.0
        %3521 = vmatpush1.msra.mxu0 0.0
        %3522 = vmatprep.subr.mxu0 0.0
        %3523 = vmatpush1.msra.mxu0 0.0
        %3524 = vmatprep.subr.mxu0 0.0
        %3525 = vmatpush1.msra.mxu0 0.0
        %3526 = vmatprep.subr.mxu0 0.0
        %3527 = vmatpush1.msra.mxu0 0.0
        %3528 = vmatprep.subr.mxu0 0.0
        %3529 = vmatpush1.msra.mxu0 0.0
        %3530 = vmatprep.subr.mxu0 0.0
        %3531 = vmatpush1.msra.mxu0 0.0
        %3532 = vmatprep.subr.mxu0 0.0
        %3533 = vmatpush1.msra.mxu0 0.0
        %3534 = vmatprep.subr.mxu0 0.0
        %3535 = vmatpush1.msra.mxu0 0.0
        %3536 = vmatprep.subr.mxu0 0.0
        %3537 = vmatpush1.msra.mxu0 0.0
        %3538 = vmatprep.subr.mxu0 0.0
        %3539 = vmatpush1.msra.mxu0 0.0
        %3540 = vmatprep.subr.mxu0 0.0
        %3541 = vmatpush1.msra.mxu0 0.0
        %3542 = vmatprep.subr.mxu0 0.0
        %3543 = vmatpush1.msra.mxu0 0.0
        %3544 = vmatprep.subr.mxu0 0.0
        %3545 = vmatpush1.msra.mxu0 0.0
        %3546 = vmatprep.subr.mxu0 0.0
        %3547 = vmatpush1.msra.mxu0 0.0
        %3548 = vmatprep.subr.mxu0 0.0
        %3549 = vmatpush1.msra.mxu0 0.0
        %3550 = vmatprep.subr.mxu0 0.0
        %3551 = vmatpush1.msra.mxu0 0.0
        %3552 = vmatprep.subr.mxu0 0.0
        %3553 = vmatpush1.msra.mxu0 0.0
        %3554 = vmatprep.subr.mxu0 0.0
        %3555 = vmatpush1.msra.mxu0 0.0
        %3556 = vmatprep.subr.mxu0 0.0
        %3557 = vmatpush1.msra.mxu0 0.0
        %3558 = vmatprep.subr.mxu0 0.0
        %3559 = vmatpush1.msra.mxu0 0.0
        %3560 = vmatprep.subr.mxu0 0.0
        %3561 = vmatpush1.msra.mxu0 0.0
        %3562 = vmatprep.subr.mxu0 0.0
        %3563 = vmatpush1.msra.mxu0 0.0
        %3564 = vmatprep.subr.mxu0 0.0
        %3565 = vmatpush1.msra.mxu0 0.0
        %3566 = vmatprep.subr.mxu0 0.0
        %3567 = vmatpush1.msra.mxu0 0.0
        %3568 = vmatprep.subr.mxu0 0.0
        %3569 = vmatpush1.msra.mxu0 0.0
        %3570 = vmatprep.subr.mxu0 0.0
        %3571 = vmatpush1.msra.mxu0 0.0
        %3572 = vmatprep.mubr.f32.mxu0 0.0
        %3573 = vmatmul.mubr.f32.gmra.mrb[0].mxu0 %v3498
        %v3574 = vpop.f32.mrb[0].mxu0
        %v3575 = vadd.f32 0.0, %v3574
        %v3576 = vpop.f32.mrb[0].mxu0
        %3577 = vmatprep.mubr.f32.mxu0 0.0
        %3578 = vmatmul.mubr.f32.gmra.mrb[0].mxu0 %v3500
        %v3579 = vpop.f32.mrb[0].mxu0
        %v3580 = vadd.f32 0.0, %v3579
        %v3581 = vpop.f32.mrb[0].mxu0
        %3582 = vmatprep.mubr.f32.mxu0 0.0
        %3583 = vmatmul.mubr.f32.gmra.mrb[0].mxu0 %v3503
        %v3584 = vpop.f32.mrb[0].mxu0
        %v3585 = vadd.f32 0.0, %v3584
        %v3586 = vpop.f32.mrb[0].mxu0
        %3587 = vmatprep.mubr.f32.mxu0 0.0
        %3588 = vmatmul.mubr.f32.gmra.mrb[0].mxu0 %v3506
        %v3589 = vpop.f32.mrb[0].mxu0
        %v3590 = vadd.f32 0.0, %v3589
        %v3591 = vpop.f32.mrb[0].mxu0
        %3592 = vdwg.mxu0
        %3593 = vmatprep.subr.mxu0 %v3286
        %3594 = vmatpush1.msra.mxu0 %v3285
        %3595 = vmatprep.subr.mxu0 %v3288
        %3596 = vmatpush1.msra.mxu0 %v3287
        %3597 = vmatprep.subr.mxu0 %v3290
        %3598 = vmatpush1.msra.mxu0 %v3289
        %3599 = vmatprep.subr.mxu0 %v3292
        %3600 = vmatpush1.msra.mxu0 %v3291
        %3601 = vmatprep.subr.mxu0 %v3294
        %3602 = vmatpush1.msra.mxu0 %v3293
        %3603 = vmatprep.subr.mxu0 %v3296
        %3604 = vmatpush1.msra.mxu0 %v3295
        %3605 = vmatprep.subr.mxu0 %v3298
        %3606 = vmatpush1.msra.mxu0 %v3297
        %3607 = vmatprep.subr.mxu0 %v3300
        %3608 = vmatpush1.msra.mxu0 %v3299
        %3609 = vmatprep.subr.mxu0 %v3302
        %3610 = vmatpush1.msra.mxu0 %v3301
        %3611 = vmatprep.subr.mxu0 %v3304
        %3612 = vmatpush1.msra.mxu0 %v3303
        %3613 = vmatprep.subr.mxu0 %v3306
        %3614 = vmatpush1.msra.mxu0 %v3305
        %3615 = vmatprep.subr.mxu0 %v3308
        %3616 = vmatpush1.msra.mxu0 %v3307
        %3617 = vmatprep.subr.mxu0 %v3310
        %3618 = vmatpush1.msra.mxu0 %v3309
        %3619 = vmatprep.subr.mxu0 %v3312
        %3620 = vmatpush1.msra.mxu0 %v3311
        %3621 = vmatprep.subr.mxu0 %v3314
        %3622 = vmatpush1.msra.mxu0 %v3313
        %3623 = vmatprep.subr.mxu0 %v3316
        %3624 = vmatpush1.msra.mxu0 %v3315
        %3625 = vmatprep.subr.mxu0 0.0
        %3626 = vmatpush1.msra.mxu0 0.0
        %3627 = vmatprep.subr.mxu0 0.0
        %3628 = vmatpush1.msra.mxu0 0.0
        %3629 = vmatprep.subr.mxu0 0.0
        %3630 = vmatpush1.msra.mxu0 0.0
        %3631 = vmatprep.subr.mxu0 0.0
        %3632 = vmatpush1.msra.mxu0 0.0
        %3633 = vmatprep.subr.mxu0 0.0
        %3634 = vmatpush1.msra.mxu0 0.0
        %3635 = vmatprep.subr.mxu0 0.0
        %3636 = vmatpush1.msra.mxu0 0.0
        %3637 = vmatprep.subr.mxu0 0.0
        %3638 = vmatpush1.msra.mxu0 0.0
        %3639 = vmatprep.subr.mxu0 0.0
        %3640 = vmatpush1.msra.mxu0 0.0
        %3641 = vmatprep.subr.mxu0 0.0
        %3642 = vmatpush1.msra.mxu0 0.0
        %3643 = vmatprep.subr.mxu0 0.0
        %3644 = vmatpush1.msra.mxu0 0.0
        %3645 = vmatprep.subr.mxu0 0.0
        %3646 = vmatpush1.msra.mxu0 0.0
        %3647 = vmatprep.subr.mxu0 0.0
        %3648 = vmatpush1.msra.mxu0 0.0
        %3649 = vmatprep.subr.mxu0 0.0
        %3650 = vmatpush1.msra.mxu0 0.0
        %3651 = vmatprep.subr.mxu0 0.0
        %3652 = vmatpush1.msra.mxu0 0.0
        %3653 = vmatprep.subr.mxu0 0.0
        %3654 = vmatpush1.msra.mxu0 0.0
        %3655 = vmatprep.subr.mxu0 0.0
        %3656 = vmatpush1.msra.mxu0 0.0
        %3657 = vmatprep.mubr.f32.mxu0 0.0
        %3658 = vmatmul.mubr.f32.gmra.mrb[0].mxu0 %v3233
        %v3659 = vpop.f32.mrb[0].mxu0
        %v3660 = vadd.f32 0.0, %v3659
        %v3661 = vpop.f32.mrb[0].mxu0
        %v3662 = vadd.f32 0.0, %v3661
        %3663 = vmatprep.mubr.f32.mxu0 0.0
        %3664 = vmatmul.mubr.f32.gmra.mrb[0].mxu0 %v3238
        %v3665 = vpop.f32.mrb[0].mxu0
        %v3666 = vadd.f32 0.0, %v3665
        %v3667 = vpop.f32.mrb[0].mxu0
        %v3668 = vadd.f32 0.0, %v3667
        %3669 = vmatprep.mubr.f32.mxu0 0.0
        %3670 = vmatmul.mubr.f32.gmra.mrb[0].mxu0 %v3243
        %v3671 = vpop.f32.mrb[0].mxu0
        %v3672 = vadd.f32 0.0, %v3671
        %v3673 = vpop.f32.mrb[0].mxu0
        %v3674 = vadd.f32 0.0, %v3673
        %3675 = vmatprep.mubr.f32.mxu0 0.0
        %3676 = vmatmul.mubr.f32.gmra.mrb[0].mxu0 %v3248
        %v3677 = vpop.f32.mrb[0].mxu0
        %v3678 = vadd.f32 0.0, %v3677
        %v3679 = vpop.f32.mrb[0].mxu0
        %v3680 = vadd.f32 0.0, %v3679
        %3681 = vdwg.mxu0
        %3682 = vmatprep.subr.mxu0 %v3253
        %3683 = vmatpush1.msra.mxu0 %v3252
        %3684 = vmatprep.subr.mxu0 %v3255
        %3685 = vmatpush1.msra.mxu0 %v3254
        %3686 = vmatprep.subr.mxu0 %v3257
        %3687 = vmatpush1.msra.mxu0 %v3256
        %3688 = vmatprep.subr.mxu0 %v3259
        %3689 = vmatpush1.msra.mxu0 %v3258
        %3690 = vmatprep.subr.mxu0 %v3261
        %3691 = vmatpush1.msra.mxu0 %v3260
        %3692 = vmatprep.subr.mxu0 %v3263
        %3693 = vmatpush1.msra.mxu0 %v3262
        %3694 = vmatprep.subr.mxu0 %v3265
        %3695 = vmatpush1.msra.mxu0 %v3264
        %3696 = vmatprep.subr.mxu0 %v3267
        %3697 = vmatpush1.msra.mxu0 %v3266
        %3698 = vmatprep.subr.mxu0 %v3269
        %3699 = vmatpush1.msra.mxu0 %v3268
        %3700 = vmatprep.subr.mxu0 %v3271
        %3701 = vmatpush1.msra.mxu0 %v3270
        %3702 = vmatprep.subr.mxu0 %v3273
        %3703 = vmatpush1.msra.mxu0 %v3272
        %3704 = vmatprep.subr.mxu0 %v3275
        %3705 = vmatpush1.msra.mxu0 %v3274
        %3706 = vmatprep.subr.mxu0 %v3277
        %3707 = vmatpush1.msra.mxu0 %v3276
        %3708 = vmatprep.subr.mxu0 %v3279
        %3709 = vmatpush1.msra.mxu0 %v3278
        %3710 = vmatprep.subr.mxu0 %v3281
        %3711 = vmatpush1.msra.mxu0 %v3280
        %3712 = vmatprep.subr.mxu0 %v3283
        %3713 = vmatpush1.msra.mxu0 %v3282
        %3714 = vmatprep.subr.mxu0 0.0
        %3715 = vmatpush1.msra.mxu0 0.0
        %3716 = vmatprep.subr.mxu0 0.0
        %3717 = vmatpush1.msra.mxu0 0.0
        %3718 = vmatprep.subr.mxu0 0.0
        %3719 = vmatpush1.msra.mxu0 0.0
        %3720 = vmatprep.subr.mxu0 0.0
        %3721 = vmatpush1.msra.mxu0 0.0
        %3722 = vmatprep.subr.mxu0 0.0
        %3723 = vmatpush1.msra.mxu0 0.0
        %3724 = vmatprep.subr.mxu0 0.0
        %3725 = vmatpush1.msra.mxu0 0.0
        %3726 = vmatprep.subr.mxu0 0.0
        %3727 = vmatpush1.msra.mxu0 0.0
        %3728 = vmatprep.subr.mxu0 0.0
        %3729 = vmatpush1.msra.mxu0 0.0
        %3730 = vmatprep.subr.mxu0 0.0
        %3731 = vmatpush1.msra.mxu0 0.0
        %3732 = vmatprep.subr.mxu0 0.0
        %3733 = vmatpush1.msra.mxu0 0.0
        %3734 = vmatprep.subr.mxu0 0.0
        %3735 = vmatpush1.msra.mxu0 0.0
        %3736 = vmatprep.subr.mxu0 0.0
        %3737 = vmatpush1.msra.mxu0 0.0
        %3738 = vmatprep.subr.mxu0 0.0
        %3739 = vmatpush1.msra.mxu0 0.0
        %3740 = vmatprep.subr.mxu0 0.0
        %3741 = vmatpush1.msra.mxu0 0.0
        %3742 = vmatprep.subr.mxu0 0.0
        %3743 = vmatpush1.msra.mxu0 0.0
        %3744 = vmatprep.subr.mxu0 0.0
        %3745 = vmatpush1.msra.mxu0 0.0
        %3746 = vmatprep.mubr.f32.mxu0 0.0
        %3747 = vmatmul.mubr.f32.gmra.mrb[0].mxu0 %v3480
        %v3748 = vpop.f32.mrb[0].mxu0
        %v3749 = vadd.f32 %v3660, %v3748
        %v3750 = vpop.f32.mrb[0].mxu0
        %v3751 = vadd.f32 %v3662, %v3750
        %3752 = vmatprep.mubr.f32.mxu0 0.0
        %3753 = vmatmul.mubr.f32.gmra.mrb[0].mxu0 %v3485
        %v3754 = vpop.f32.mrb[0].mxu0
        %v3755 = vadd.f32 %v3666, %v3754
        %v3756 = vpop.f32.mrb[0].mxu0
        %v3757 = vadd.f32 %v3668, %v3756
        %3758 = vmatprep.mubr.f32.mxu0 0.0
        %3759 = vmatmul.mubr.f32.gmra.mrb[0].mxu0 %v3490
        %v3760 = vpop.f32.mrb[0].mxu0
        %v3761 = vadd.f32 %v3672, %v3760
        %v3762 = vpop.f32.mrb[0].mxu0
        %v3763 = vadd.f32 %v3674, %v3762
        %3764 = vmatprep.mubr.f32.mxu0 0.0
        %3765 = vmatmul.mubr.f32.gmra.mrb[0].mxu0 %v3495
        %v3766 = vpop.f32.mrb[0].mxu0
        %v3767 = vadd.f32 %v3678, %v3766
        %v3768 = vpop.f32.mrb[0].mxu0
        %v3769 = vadd.f32 %v3680, %v3768
        %3770 = vdwg.mxu0
        %3771 = vmatprep.subr.mxu0 %v3352
        %3772 = vmatpush1.msra.mxu0 %v3351
        %3773 = vmatprep.subr.mxu0 %v3354
        %3774 = vmatpush1.msra.mxu0 %v3353
        %3775 = vmatprep.subr.mxu0 %v3356
        %3776 = vmatpush1.msra.mxu0 %v3355
        %3777 = vmatprep.subr.mxu0 %v3358
        %3778 = vmatpush1.msra.mxu0 %v3357
        %3779 = vmatprep.subr.mxu0 %v3360
        %3780 = vmatpush1.msra.mxu0 %v3359
        %3781 = vmatprep.subr.mxu0 %v3362
        %3782 = vmatpush1.msra.mxu0 %v3361
        %3783 = vmatprep.subr.mxu0 %v3364
        %3784 = vmatpush1.msra.mxu0 %v3363
        %3785 = vmatprep.subr.mxu0 %v3366
        %3786 = vmatpush1.msra.mxu0 %v3365
        %3787 = vmatprep.subr.mxu0 %v3368
        %3788 = vmatpush1.msra.mxu0 %v3367
        %3789 = vmatprep.subr.mxu0 %v3370
        %3790 = vmatpush1.msra.mxu0 %v3369
        %3791 = vmatprep.subr.mxu0 %v3372
        %3792 = vmatpush1.msra.mxu0 %v3371
        %3793 = vmatprep.subr.mxu0 %v3374
        %3794 = vmatpush1.msra.mxu0 %v3373
        %3795 = vmatprep.subr.mxu0 %v3376
        %3796 = vmatpush1.msra.mxu0 %v3375
        %3797 = vmatprep.subr.mxu0 %v3378
        %3798 = vmatpush1.msra.mxu0 %v3377
        %3799 = vmatprep.subr.mxu0 %v3380
        %3800 = vmatpush1.msra.mxu0 %v3379
        %3801 = vmatprep.subr.mxu0 %v3382
        %3802 = vmatpush1.msra.mxu0 %v3381
        %3803 = vmatprep.subr.mxu0 0.0
        %3804 = vmatpush1.msra.mxu0 0.0
        %3805 = vmatprep.subr.mxu0 0.0
        %3806 = vmatpush1.msra.mxu0 0.0
        %3807 = vmatprep.subr.mxu0 0.0
        %3808 = vmatpush1.msra.mxu0 0.0
        %3809 = vmatprep.subr.mxu0 0.0
        %3810 = vmatpush1.msra.mxu0 0.0
        %3811 = vmatprep.subr.mxu0 0.0
        %3812 = vmatpush1.msra.mxu0 0.0
        %3813 = vmatprep.subr.mxu0 0.0
        %3814 = vmatpush1.msra.mxu0 0.0
        %3815 = vmatprep.subr.mxu0 0.0
        %3816 = vmatpush1.msra.mxu0 0.0
        %3817 = vmatprep.subr.mxu0 0.0
        %3818 = vmatpush1.msra.mxu0 0.0
        %3819 = vmatprep.subr.mxu0 0.0
        %3820 = vmatpush1.msra.mxu0 0.0
        %3821 = vmatprep.subr.mxu0 0.0
        %3822 = vmatpush1.msra.mxu0 0.0
        %3823 = vmatprep.subr.mxu0 0.0
        %3824 = vmatpush1.msra.mxu0 0.0
        %3825 = vmatprep.subr.mxu0 0.0
        %3826 = vmatpush1.msra.mxu0 0.0
        %3827 = vmatprep.subr.mxu0 0.0
        %3828 = vmatpush1.msra.mxu0 0.0
        %3829 = vmatprep.subr.mxu0 0.0
        %3830 = vmatpush1.msra.mxu0 0.0
        %3831 = vmatprep.subr.mxu0 0.0
        %3832 = vmatpush1.msra.mxu0 0.0
        %3833 = vmatprep.subr.mxu0 0.0
        %3834 = vmatpush1.msra.mxu0 0.0
        %3835 = vmatprep.mubr.f32.mxu0 0.0
        %3836 = vmatmul.mubr.f32.gmra.mrb[0].mxu0 %v3575
        %v3837 = vpop.f32.mrb[0].mxu0
        %v3838 = vadd.f32 0.0, %v3837
        %v3839 = vpop.f32.mrb[0].mxu0
        %v3840 = vadd.f32 0.0, %v3839
        %3841 = vmatprep.mubr.f32.mxu0 0.0
        %3842 = vmatmul.mubr.f32.gmra.mrb[0].mxu0 %v3580
        %v3843 = vpop.f32.mrb[0].mxu0
        %v3844 = vadd.f32 0.0, %v3843
        %v3845 = vpop.f32.mrb[0].mxu0
        %v3846 = vadd.f32 0.0, %v3845
        %3847 = vmatprep.mubr.f32.mxu0 0.0
        %3848 = vmatmul.mubr.f32.gmra.mrb[0].mxu0 %v3585
        %v3849 = vpop.f32.mrb[0].mxu0
        %v3850 = vadd.f32 0.0, %v3849
        %v3851 = vpop.f32.mrb[0].mxu0
        %v3852 = vadd.f32 0.0, %v3851
        %3853 = vmatprep.mubr.f32.mxu0 0.0
        %3854 = vmatmul.mubr.f32.gmra.mrb[0].mxu0 %v3590
        %v3855 = vpop.f32.mrb[0].mxu0
        %v3856 = vadd.f32 0.0, %v3855
        %v3857 = vpop.f32.mrb[0].mxu0
        %v3858 = vadd.f32 0.0, %v3857
        %3859 = vdwg.mxu0
        %3860 = vmatprep.subr.mxu0 %v3319
        %3861 = vmatpush1.msra.mxu0 %v3318
        %3862 = vmatprep.subr.mxu0 %v3321
        %3863 = vmatpush1.msra.mxu0 %v3320
        %3864 = vmatprep.subr.mxu0 %v3323
        %3865 = vmatpush1.msra.mxu0 %v3322
        %3866 = vmatprep.subr.mxu0 %v3325
        %3867 = vmatpush1.msra.mxu0 %v3324
        %3868 = vmatprep.subr.mxu0 %v3327
        %3869 = vmatpush1.msra.mxu0 %v3326
        %3870 = vmatprep.subr.mxu0 %v3329
        %3871 = vmatpush1.msra.mxu0 %v3328
        %3872 = vmatprep.subr.mxu0 %v3331
        %3873 = vmatpush1.msra.mxu0 %v3330
        %3874 = vmatprep.subr.mxu0 %v3333
        %3875 = vmatpush1.msra.mxu0 %v3332
        %3876 = vmatprep.subr.mxu0 %v3335
        %3877 = vmatpush1.msra.mxu0 %v3334
        %3878 = vmatprep.subr.mxu0 %v3337
        %3879 = vmatpush1.msra.mxu0 %v3336
        %3880 = vmatprep.subr.mxu0 %v3339
        %3881 = vmatpush1.msra.mxu0 %v3338
        %3882 = vmatprep.subr.mxu0 %v3341
        %3883 = vmatpush1.msra.mxu0 %v3340
        %3884 = vmatprep.subr.mxu0 %v3343
        %3885 = vmatpush1.msra.mxu0 %v3342
        %3886 = vmatprep.subr.mxu0 %v3345
        %3887 = vmatpush1.msra.mxu0 %v3344
        %3888 = vmatprep.subr.mxu0 %v3347
        %3889 = vmatpush1.msra.mxu0 %v3346
        %3890 = vmatprep.subr.mxu0 %v3349
        %3891 = vmatpush1.msra.mxu0 %v3348
        %3892 = vmatprep.subr.mxu0 0.0
        %3893 = vmatpush1.msra.mxu0 0.0
        %3894 = vmatprep.subr.mxu0 0.0
        %3895 = vmatpush1.msra.mxu0 0.0
        %3896 = vmatprep.subr.mxu0 0.0
        %3897 = vmatpush1.msra.mxu0 0.0
        %3898 = vmatprep.subr.mxu0 0.0
        %3899 = vmatpush1.msra.mxu0 0.0
        %3900 = vmatprep.subr.mxu0 0.0
        %3901 = vmatpush1.msra.mxu0 0.0
        %3902 = vmatprep.subr.mxu0 0.0
        %3903 = vmatpush1.msra.mxu0 0.0
        %3904 = vmatprep.subr.mxu0 0.0
        %3905 = vmatpush1.msra.mxu0 0.0
        %3906 = vmatprep.subr.mxu0 0.0
        %3907 = vmatpush1.msra.mxu0 0.0
        %3908 = vmatprep.subr.mxu0 0.0
        %3909 = vmatpush1.msra.mxu0 0.0
        %3910 = vmatprep.subr.mxu0 0.0
        %3911 = vmatpush1.msra.mxu0 0.0
        %3912 = vmatprep.subr.mxu0 0.0
        %3913 = vmatpush1.msra.mxu0 0.0
        %3914 = vmatprep.subr.mxu0 0.0
        %3915 = vmatpush1.msra.mxu0 0.0
        %3916 = vmatprep.subr.mxu0 0.0
        %3917 = vmatpush1.msra.mxu0 0.0
        %3918 = vmatprep.subr.mxu0 0.0
        %3919 = vmatpush1.msra.mxu0 0.0
        %3920 = vmatprep.subr.mxu0 0.0
        %3921 = vmatpush1.msra.mxu0 0.0
        %3922 = vmatprep.subr.mxu0 0.0
        %3923 = vmatpush1.msra.mxu0 0.0
        %3924 = vmatprep.mubr.f32.mxu0 0.0
        %3925 = vmatmul.mubr.f32.gmra.mrb[0].mxu0 %v3233
        %v3926 = vpop.f32.mrb[0].mxu0
        %v3927 = vadd.f32 %v3838, %v3926
        %v3928 = vpop.f32.mrb[0].mxu0
        %v3929 = vadd.f32 %v3840, %v3928
        %3930 = vmatprep.mubr.f32.mxu0 0.0
        %3931 = vmatmul.mubr.f32.gmra.mrb[0].mxu0 %v3238
        %v3932 = vpop.f32.mrb[0].mxu0
        %v3933 = vadd.f32 %v3844, %v3932
        %v3934 = vpop.f32.mrb[0].mxu0
        %v3935 = vadd.f32 %v3846, %v3934
        %3936 = vmatprep.mubr.f32.mxu0 0.0
        %3937 = vmatmul.mubr.f32.gmra.mrb[0].mxu0 %v3243
        %v3938 = vpop.f32.mrb[0].mxu0
        %v3939 = vadd.f32 %v3850, %v3938
        %v3940 = vpop.f32.mrb[0].mxu0
        %v3941 = vadd.f32 %v3852, %v3940
        %3942 = vmatprep.mubr.f32.mxu0 0.0
        %3943 = vmatmul.mubr.f32.gmra.mrb[0].mxu0 %v3248
        %v3944 = vpop.f32.mrb[0].mxu0
        %v3945 = vadd.f32 %v3856, %v3944
        %v3946 = vpop.f32.mrb[0].mxu0
        %v3947 = vadd.f32 %v3858, %v3946
        %3948 = vdwg.mxu0
        %v3950 = vlaneseq
        %v3951 = vshrl.u32 %v3950, 7
        %v3952 = vsub.s32 0, %v3951
        %v3953 = vrot.slane %v3384, %v3952
        %v3954 = vlaneseq
        %v3955 = vshrl.u32 %v3954, 7
        %v3956 = vsub.s32 1, %v3955
        %v3957 = vrot.slane %v3384, %v3956
        %v3960 = vmul.f32 %v3749, %v3953
        %v3961 = vmul.f32 %v3751, %v3957
        %v3962 = vmul.f32 %v3755, %v3953
        %v3963 = vmul.f32 %v3757, %v3957
        %v3964 = vmul.f32 %v3761, %v3953
        %v3965 = vmul.f32 %v3763, %v3957
        %v3966 = vmul.f32 %v3767, %v3953
        %v3967 = vmul.f32 %v3769, %v3957
        %v3969 = vlaneseq
        %v3970 = vshrl.u32 %v3969, 7
        %v3971 = vsub.s32 0, %v3970
        %v3972 = vrot.slane %v3386, %v3971
        %v3973 = vlaneseq
        %v3974 = vshrl.u32 %v3973, 7
        %v3975 = vsub.s32 1, %v3974
        %v3976 = vrot.slane %v3386, %v3975
        %v3979 = vadd.f32 %v3960, %v3972
        %v3980 = vadd.f32 %v3961, %v3976
        %v3981 = vadd.f32 %v3962, %v3972
        %v3982 = vadd.f32 %v3963, %v3976
        %v3983 = vadd.f32 %v3964, %v3972
        %v3984 = vadd.f32 %v3965, %v3976
        %v3985 = vadd.f32 %v3966, %v3972
        %v3986 = vadd.f32 %v3967, %v3976
        %v3987 = vmul.f32 %v3927, %v3953
        %v3988 = vmul.f32 %v3929, %v3957
        %v3989 = vmul.f32 %v3933, %v3953
        %v3990 = vmul.f32 %v3935, %v3957
        %v3991 = vmul.f32 %v3939, %v3953
        %v3992 = vmul.f32 %v3941, %v3957
        %v3993 = vmul.f32 %v3945, %v3953
        %v3994 = vmul.f32 %v3947, %v3957
        %v3995 = vadd.f32 %v3987, %v3972
        %v3996 = vadd.f32 %v3988, %v3976
        %v3997 = vadd.f32 %v3989, %v3972
        %v3998 = vadd.f32 %v3990, %v3976
        %v3999 = vadd.f32 %v3991, %v3972
        %v4000 = vadd.f32 %v3992, %v3976
        %v4001 = vadd.f32 %v3993, %v3972
        %v4002 = vadd.f32 %v3994, %v3976
        %v4003 = vxor.u32 %v3980, 2147483648
        %v4004 = vxor.u32 %v3982, 2147483648
        %v4005 = vxor.u32 %v3984, 2147483648
        %v4006 = vxor.u32 %v3986, 2147483648
        %v4007 = vmul.f32 %v4003, 1.442695
        %v4008 = vpow.pop %v4007
        %v4009 = vmul.f32 %v4004, 1.442695
        %v4010 = vpow.pop %v4009
        %v4011 = vmul.f32 %v4005, 1.442695
        %v4012 = vpow.pop %v4011
        %v4013 = vmul.f32 %v4006, 1.442695
        %v4014 = vpow.pop %v4013
        %v4015 = vadd.f32 %v4008, 1.0
        %v4016 = vadd.f32 %v4010, 1.0
        %v4017 = vadd.f32 %v4012, 1.0
        %v4018 = vadd.f32 %v4014, 1.0
        %v4019 = vrcp.pop %v4015
        %v4020 = vmul.f32 1.0, %v4019
        %v4021 = vrcp.pop %v4016
        %v4022 = vmul.f32 1.0, %v4021
        %v4023 = vrcp.pop %v4017
        %v4024 = vmul.f32 1.0, %v4023
        %v4025 = vrcp.pop %v4018
        %v4026 = vmul.f32 1.0, %v4025
        %v4027 = vmul.f32 %v3979, %v4020
        %v4028 = vmul.f32 %v3981, %v4022
        %v4029 = vmul.f32 %v3983, %v4024
        %v4030 = vmul.f32 %v3985, %v4026
        %v4031 = vxor.u32 %v3996, 2147483648
        %v4032 = vxor.u32 %v3998, 2147483648
        %v4033 = vxor.u32 %v4000, 2147483648
        %v4034 = vxor.u32 %v4002, 2147483648
        %v4035 = vmul.f32 %v4031, 1.442695
        %v4036 = vpow.pop %v4035
        %v4037 = vmul.f32 %v4032, 1.442695
        %v4038 = vpow.pop %v4037
        %v4039 = vmul.f32 %v4033, 1.442695
        %v4040 = vpow.pop %v4039
        %v4041 = vmul.f32 %v4034, 1.442695
        %v4042 = vpow.pop %v4041
        %v4043 = vadd.f32 %v4036, 1.0
        %v4044 = vadd.f32 %v4038, 1.0
        %v4045 = vadd.f32 %v4040, 1.0
        %v4046 = vadd.f32 %v4042, 1.0
        %v4047 = vrcp.pop %v4043
        %v4048 = vmul.f32 1.0, %v4047
        %v4049 = vrcp.pop %v4044
        %v4050 = vmul.f32 1.0, %v4049
        %v4051 = vrcp.pop %v4045
        %v4052 = vmul.f32 1.0, %v4051
        %v4053 = vrcp.pop %v4046
        %v4054 = vmul.f32 1.0, %v4053
        %v4055 = vmul.f32 %v3995, %v4048
        %v4056 = vmul.f32 %v3997, %v4050
        %v4057 = vmul.f32 %v3999, %v4052
        %v4058 = vmul.f32 %v4001, %v4054
        %v4059 = vadd.s32 %v738, 32
        %v4060 = vadd.s32 %v738, 40
        %v4061 = vadd.s32 %v738, 48
        %v4062 = vadd.s32 %v738, 56
        %vm4063 = vcmp.eq.s32.totalorder %v1432, %v4059
        %vm4064 = vcmp.eq.s32.totalorder %v1432, %v4060
        %vm4065 = vcmp.eq.s32.totalorder %v1432, %v4061
        %vm4066 = vcmp.eq.s32.totalorder %v1432, %v4062
        %v4067 = vsel %vm4063, 1, 0
        %v4068 = vsel %vm4064, 1, 0
        %v4069 = vsel %vm4065, 1, 0
        %v4070 = vsel %vm4066, 1, 0
        %v4071 = vcvt.s32.f32 %v4067
        %v4072 = vcvt.s32.f32 %v4068
        %v4073 = vcvt.s32.f32 %v4069
        %v4074 = vcvt.s32.f32 %v4070
        %vm4075 = vcmp.eq.s32.totalorder %v1436, %v4059
        %vm4076 = vcmp.eq.s32.totalorder %v1436, %v4060
        %vm4077 = vcmp.eq.s32.totalorder %v1436, %v4061
        %vm4078 = vcmp.eq.s32.totalorder %v1436, %v4062
        %v4079 = vsel %vm4075, 1, 0
        %v4080 = vsel %vm4076, 1, 0
        %v4081 = vsel %vm4077, 1, 0
        %v4082 = vsel %vm4078, 1, 0
        %v4083 = vcvt.s32.f32 %v4079
        %v4084 = vcvt.s32.f32 %v4080
        %v4085 = vcvt.s32.f32 %v4081
        %v4086 = vcvt.s32.f32 %v4082
        %v4087 = vsel %vm449, %v1439, 0
        %v4089 = vsel %vm449, %v2207, 0
        %v4091 = vsel %vm449, %v3059, 0
        %v4093 = vsel %vm449, %v3060, 0
        %v4096 = vsel %vm449, %v4083, 0
        %v4099 = vsel %vm449, %v4084, 0
        %v4102 = vsel %vm449, %v4085, 0
        %v4105 = vsel %vm449, %v4086, 0
        %4107 = vmatprep.subr.mxu0 0.0
        %4108 = vmatpush1.msra.mxu0 %v4055
        %4109 = vmatprep.subr.mxu0 0.0
        %4110 = vmatpush1.msra.mxu0 %v4056
        %4111 = vmatprep.subr.mxu0 0.0
        %4112 = vmatpush1.msra.mxu0 %v4057
        %4113 = vmatprep.subr.mxu0 0.0
        %4114 = vmatpush1.msra.mxu0 %v4058
        %4115 = vmatprep.subr.mxu0 0.0
        %4116 = vmatpush1.msra.mxu0 0.0
        %4117 = vmatprep.subr.mxu0 0.0
        %4118 = vmatpush1.msra.mxu0 0.0
        %4119 = vmatprep.subr.mxu0 0.0
        %4120 = vmatpush1.msra.mxu0 0.0
        %4121 = vmatprep.subr.mxu0 0.0
        %4122 = vmatpush1.msra.mxu0 0.0
        %4123 = vmatprep.subr.mxu0 0.0
        %4124 = vmatpush1.msra.mxu0 0.0
        %4125 = vmatprep.subr.mxu0 0.0
        %4126 = vmatpush1.msra.mxu0 0.0
        %4127 = vmatprep.subr.mxu0 0.0
        %4128 = vmatpush1.msra.mxu0 0.0
        %4129 = vmatprep.subr.mxu0 0.0
        %4130 = vmatpush1.msra.mxu0 0.0
        %4131 = vmatprep.subr.mxu0 0.0
        %4132 = vmatpush1.msra.mxu0 0.0
        %4133 = vmatprep.subr.mxu0 0.0
        %4134 = vmatpush1.msra.mxu0 0.0
        %4135 = vmatprep.subr.mxu0 0.0
        %4136 = vmatpush1.msra.mxu0 0.0
        %4137 = vmatprep.subr.mxu0 0.0
        %4138 = vmatpush1.msra.mxu0 0.0
        %4139 = vmatprep.subr.mxu0 0.0
        %4140 = vmatpush1.msra.mxu0 0.0
        %4141 = vmatprep.subr.mxu0 0.0
        %4142 = vmatpush1.msra.mxu0 0.0
        %4143 = vmatprep.subr.mxu0 0.0
        %4144 = vmatpush1.msra.mxu0 0.0
        %4145 = vmatprep.subr.mxu0 0.0
        %4146 = vmatpush1.msra.mxu0 0.0
        %4147 = vmatprep.subr.mxu0 0.0
        %4148 = vmatpush1.msra.mxu0 0.0
        %4149 = vmatprep.subr.mxu0 0.0
        %4150 = vmatpush1.msra.mxu0 0.0
        %4151 = vmatprep.subr.mxu0 0.0
        %4152 = vmatpush1.msra.mxu0 0.0
        %4153 = vmatprep.subr.mxu0 0.0
        %4154 = vmatpush1.msra.mxu0 0.0
        %4155 = vmatprep.subr.mxu0 0.0
        %4156 = vmatpush1.msra.mxu0 0.0
        %4157 = vmatprep.subr.mxu0 0.0
        %4158 = vmatpush1.msra.mxu0 0.0
        %4159 = vmatprep.subr.mxu0 0.0
        %4160 = vmatpush1.msra.mxu0 0.0
        %4161 = vmatprep.subr.mxu0 0.0
        %4162 = vmatpush1.msra.mxu0 0.0
        %4163 = vmatprep.subr.mxu0 0.0
        %4164 = vmatpush1.msra.mxu0 0.0
        %4165 = vmatprep.subr.mxu0 0.0
        %4166 = vmatpush1.msra.mxu0 0.0
        %4167 = vmatprep.subr.mxu0 0.0
        %4168 = vmatpush1.msra.mxu0 0.0
        %4169 = vmatprep.subr.mxu0 0.0
        %4170 = vmatpush1.msra.mxu0 0.0
        %4171 = vmatprep.mubr.f32.mxu0 0.0
        %4172 = vmatmul.mubr.f32.gmra.mrb[0].mxu0 %v4087
        %v4173 = vpop.f32.mrb[0].mxu0
        %v4174 = vadd.f32 0.0, %v4173
        %v4175 = vpop.f32.mrb[0].mxu0
        %4176 = vmatprep.mubr.f32.mxu0 0.0
        %4177 = vmatmul.mubr.f32.gmra.mrb[0].mxu0 %v4089
        %v4178 = vpop.f32.mrb[0].mxu0
        %v4179 = vadd.f32 0.0, %v4178
        %v4180 = vpop.f32.mrb[0].mxu0
        %4181 = vmatprep.mubr.f32.mxu0 0.0
        %4182 = vmatmul.mubr.f32.gmra.mrb[0].mxu0 %v4091
        %v4183 = vpop.f32.mrb[0].mxu0
        %v4184 = vadd.f32 0.0, %v4183
        %v4185 = vpop.f32.mrb[0].mxu0
        %4186 = vmatprep.mubr.f32.mxu0 0.0
        %4187 = vmatmul.mubr.f32.gmra.mrb[0].mxu0 %v4093
        %v4188 = vpop.f32.mrb[0].mxu0
        %v4189 = vadd.f32 0.0, %v4188
        %v4190 = vpop.f32.mrb[0].mxu0
        %4191 = vmatprep.mubr.f32.mxu0 0.0
        %4192 = vmatmul.mubr.f32.gmra.mrb[0].mxu0 %v4096
        %v4193 = vpop.f32.mrb[0].mxu0
        %v4194 = vadd.f32 0.0, %v4193
        %v4195 = vpop.f32.mrb[0].mxu0
        %4196 = vmatprep.mubr.f32.mxu0 0.0
        %4197 = vmatmul.mubr.f32.gmra.mrb[0].mxu0 %v4099
        %v4198 = vpop.f32.mrb[0].mxu0
        %v4199 = vadd.f32 0.0, %v4198
        %v4200 = vpop.f32.mrb[0].mxu0
        %4201 = vmatprep.mubr.f32.mxu0 0.0
        %4202 = vmatmul.mubr.f32.gmra.mrb[0].mxu0 %v4102
        %v4203 = vpop.f32.mrb[0].mxu0
        %v4204 = vadd.f32 0.0, %v4203
        %v4205 = vpop.f32.mrb[0].mxu0
        %4206 = vmatprep.mubr.f32.mxu0 0.0
        %4207 = vmatmul.mubr.f32.gmra.mrb[0].mxu0 %v4105
        %v4208 = vpop.f32.mrb[0].mxu0
        %v4209 = vadd.f32 0.0, %v4208
        %v4210 = vpop.f32.mrb[0].mxu0
        %4211 = vdwg.mxu0
        %v4212 = vsel %vm449, %v1435, 0
        %v4214 = vsel %vm449, %v2204, 0
        %v4216 = vsel %vm449, %v3053, 0
        %v4218 = vsel %vm449, %v3054, 0
        %v4221 = vsel %vm449, %v4071, 0
        %v4224 = vsel %vm449, %v4072, 0
        %v4227 = vsel %vm449, %v4073, 0
        %v4230 = vsel %vm449, %v4074, 0
        %4232 = vmatprep.subr.mxu0 0.0
        %4233 = vmatpush1.msra.mxu0 %v4027
        %4234 = vmatprep.subr.mxu0 0.0
        %4235 = vmatpush1.msra.mxu0 %v4028
        %4236 = vmatprep.subr.mxu0 0.0
        %4237 = vmatpush1.msra.mxu0 %v4029
        %4238 = vmatprep.subr.mxu0 0.0
        %4239 = vmatpush1.msra.mxu0 %v4030
        %4240 = vmatprep.subr.mxu0 0.0
        %4241 = vmatpush1.msra.mxu0 0.0
        %4242 = vmatprep.subr.mxu0 0.0
        %4243 = vmatpush1.msra.mxu0 0.0
        %4244 = vmatprep.subr.mxu0 0.0
        %4245 = vmatpush1.msra.mxu0 0.0
        %4246 = vmatprep.subr.mxu0 0.0
        %4247 = vmatpush1.msra.mxu0 0.0
        %4248 = vmatprep.subr.mxu0 0.0
        %4249 = vmatpush1.msra.mxu0 0.0
        %4250 = vmatprep.subr.mxu0 0.0
        %4251 = vmatpush1.msra.mxu0 0.0
        %4252 = vmatprep.subr.mxu0 0.0
        %4253 = vmatpush1.msra.mxu0 0.0
        %4254 = vmatprep.subr.mxu0 0.0
        %4255 = vmatpush1.msra.mxu0 0.0
        %4256 = vmatprep.subr.mxu0 0.0
        %4257 = vmatpush1.msra.mxu0 0.0
        %4258 = vmatprep.subr.mxu0 0.0
        %4259 = vmatpush1.msra.mxu0 0.0
        %4260 = vmatprep.subr.mxu0 0.0
        %4261 = vmatpush1.msra.mxu0 0.0
        %4262 = vmatprep.subr.mxu0 0.0
        %4263 = vmatpush1.msra.mxu0 0.0
        %4264 = vmatprep.subr.mxu0 0.0
        %4265 = vmatpush1.msra.mxu0 0.0
        %4266 = vmatprep.subr.mxu0 0.0
        %4267 = vmatpush1.msra.mxu0 0.0
        %4268 = vmatprep.subr.mxu0 0.0
        %4269 = vmatpush1.msra.mxu0 0.0
        %4270 = vmatprep.subr.mxu0 0.0
        %4271 = vmatpush1.msra.mxu0 0.0
        %4272 = vmatprep.subr.mxu0 0.0
        %4273 = vmatpush1.msra.mxu0 0.0
        %4274 = vmatprep.subr.mxu0 0.0
        %4275 = vmatpush1.msra.mxu0 0.0
        %4276 = vmatprep.subr.mxu0 0.0
        %4277 = vmatpush1.msra.mxu0 0.0
        %4278 = vmatprep.subr.mxu0 0.0
        %4279 = vmatpush1.msra.mxu0 0.0
        %4280 = vmatprep.subr.mxu0 0.0
        %4281 = vmatpush1.msra.mxu0 0.0
        %4282 = vmatprep.subr.mxu0 0.0
        %4283 = vmatpush1.msra.mxu0 0.0
        %4284 = vmatprep.subr.mxu0 0.0
        %4285 = vmatpush1.msra.mxu0 0.0
        %4286 = vmatprep.subr.mxu0 0.0
        %4287 = vmatpush1.msra.mxu0 0.0
        %4288 = vmatprep.subr.mxu0 0.0
        %4289 = vmatpush1.msra.mxu0 0.0
        %4290 = vmatprep.subr.mxu0 0.0
        %4291 = vmatpush1.msra.mxu0 0.0
        %4292 = vmatprep.subr.mxu0 0.0
        %4293 = vmatpush1.msra.mxu0 0.0
        %4294 = vmatprep.subr.mxu0 0.0
        %4295 = vmatpush1.msra.mxu0 0.0
        %4296 = vmatprep.mubr.f32.mxu0 0.0
        %4297 = vmatmul.mubr.f32.gmra.mrb[0].mxu0 %v4212
        %v4298 = vpop.f32.mrb[0].mxu0
        %v4299 = vadd.f32 %v4174, %v4298
        %v4300 = vpop.f32.mrb[0].mxu0
        %4301 = vmatprep.mubr.f32.mxu0 0.0
        %4302 = vmatmul.mubr.f32.gmra.mrb[0].mxu0 %v4214
        %v4303 = vpop.f32.mrb[0].mxu0
        %v4304 = vadd.f32 %v4179, %v4303
        %v4305 = vpop.f32.mrb[0].mxu0
        %4306 = vmatprep.mubr.f32.mxu0 0.0
        %4307 = vmatmul.mubr.f32.gmra.mrb[0].mxu0 %v4216
        %v4308 = vpop.f32.mrb[0].mxu0
        %v4309 = vadd.f32 %v4184, %v4308
        %v4310 = vpop.f32.mrb[0].mxu0
        %4311 = vmatprep.mubr.f32.mxu0 0.0
        %4312 = vmatmul.mubr.f32.gmra.mrb[0].mxu0 %v4218
        %v4313 = vpop.f32.mrb[0].mxu0
        %v4314 = vadd.f32 %v4189, %v4313
        %v4315 = vpop.f32.mrb[0].mxu0
        %4316 = vmatprep.mubr.f32.mxu0 0.0
        %4317 = vmatmul.mubr.f32.gmra.mrb[0].mxu0 %v4221
        %v4318 = vpop.f32.mrb[0].mxu0
        %v4319 = vadd.f32 %v4194, %v4318
        %v4320 = vpop.f32.mrb[0].mxu0
        %4321 = vmatprep.mubr.f32.mxu0 0.0
        %4322 = vmatmul.mubr.f32.gmra.mrb[0].mxu0 %v4224
        %v4323 = vpop.f32.mrb[0].mxu0
        %v4324 = vadd.f32 %v4199, %v4323
        %v4325 = vpop.f32.mrb[0].mxu0
        %4326 = vmatprep.mubr.f32.mxu0 0.0
        %4327 = vmatmul.mubr.f32.gmra.mrb[0].mxu0 %v4227
        %v4328 = vpop.f32.mrb[0].mxu0
        %v4329 = vadd.f32 %v4204, %v4328
        %v4330 = vpop.f32.mrb[0].mxu0
        %4331 = vmatprep.mubr.f32.mxu0 0.0
        %4332 = vmatmul.mubr.f32.gmra.mrb[0].mxu0 %v4230
        %v4333 = vpop.f32.mrb[0].mxu0
        %v4334 = vadd.f32 %v4209, %v4333
        %v4335 = vpop.f32.mrb[0].mxu0
        %4336 = vdwg.mxu0
        %v4337 = vld [vmem:[#allocation14] sm:$0xff]
        %v4338 = vld [vmem:[#allocation14 + $0x8] sm:$0xff]
        %v4339 = vld [vmem:[#allocation14 + $0x10] sm:$0xff]
        %v4340 = vld [vmem:[#allocation14 + $0x18] sm:$0xff]
        %v4341 = vld [vmem:[#allocation14 + $0x20] sm:$0xff]
        %v4342 = vld [vmem:[#allocation14 + $0x28] sm:$0xff]
        %v4343 = vld [vmem:[#allocation14 + $0x30] sm:$0xff]
        %v4344 = vld [vmem:[#allocation14 + $0x38] sm:$0xff]
        %v4345 = vld [vmem:[#allocation14 + $0x40] sm:$0xff]
        %v4346 = vld [vmem:[#allocation14 + $0x48] sm:$0xff]
        %v4347 = vld [vmem:[#allocation14 + $0x50] sm:$0xff]
        %v4348 = vld [vmem:[#allocation14 + $0x58] sm:$0xff]
        %v4349 = vld [vmem:[#allocation14 + $0x60] sm:$0xff]
        %v4350 = vld [vmem:[#allocation14 + $0x68] sm:$0xff]
        %v4351 = vld [vmem:[#allocation14 + $0x70] sm:$0xff]
        %v4352 = vld [vmem:[#allocation14 + $0x78] sm:$0xff]
        %4353 = vmatprep.subr.mxu0 0.0
        %4354 = vmatpush1.msra.mxu0 %v4337
        %4355 = vmatprep.subr.mxu0 0.0
        %4356 = vmatpush1.msra.mxu0 %v4338
        %4357 = vmatprep.subr.mxu0 0.0
        %4358 = vmatpush1.msra.mxu0 %v4339
        %4359 = vmatprep.subr.mxu0 0.0
        %4360 = vmatpush1.msra.mxu0 %v4340
        %4361 = vmatprep.subr.mxu0 0.0
        %4362 = vmatpush1.msra.mxu0 %v4341
        %4363 = vmatprep.subr.mxu0 0.0
        %4364 = vmatpush1.msra.mxu0 %v4342
        %4365 = vmatprep.subr.mxu0 0.0
        %4366 = vmatpush1.msra.mxu0 %v4343
        %4367 = vmatprep.subr.mxu0 0.0
        %4368 = vmatpush1.msra.mxu0 %v4344
        %4369 = vmatprep.subr.mxu0 0.0
        %4370 = vmatpush1.msra.mxu0 %v4345
        %4371 = vmatprep.subr.mxu0 0.0
        %4372 = vmatpush1.msra.mxu0 %v4346
        %4373 = vmatprep.subr.mxu0 0.0
        %4374 = vmatpush1.msra.mxu0 %v4347
        %4375 = vmatprep.subr.mxu0 0.0
        %4376 = vmatpush1.msra.mxu0 %v4348
        %4377 = vmatprep.subr.mxu0 0.0
        %4378 = vmatpush1.msra.mxu0 %v4349
        %4379 = vmatprep.subr.mxu0 0.0
        %4380 = vmatpush1.msra.mxu0 %v4350
        %4381 = vmatprep.subr.mxu0 0.0
        %4382 = vmatpush1.msra.mxu0 %v4351
        %4383 = vmatprep.subr.mxu0 0.0
        %4384 = vmatpush1.msra.mxu0 %v4352
        %4385 = vmatprep.subr.mxu0 0.0
        %4386 = vmatpush1.msra.mxu0 0.0
        %4387 = vmatprep.subr.mxu0 0.0
        %4388 = vmatpush1.msra.mxu0 0.0
        %4389 = vmatprep.subr.mxu0 0.0
        %4390 = vmatpush1.msra.mxu0 0.0
        %4391 = vmatprep.subr.mxu0 0.0
        %4392 = vmatpush1.msra.mxu0 0.0
        %4393 = vmatprep.subr.mxu0 0.0
        %4394 = vmatpush1.msra.mxu0 0.0
        %4395 = vmatprep.subr.mxu0 0.0
        %4396 = vmatpush1.msra.mxu0 0.0
        %4397 = vmatprep.subr.mxu0 0.0
        %4398 = vmatpush1.msra.mxu0 0.0
        %4399 = vmatprep.subr.mxu0 0.0
        %4400 = vmatpush1.msra.mxu0 0.0
        %4401 = vmatprep.subr.mxu0 0.0
        %4402 = vmatpush1.msra.mxu0 0.0
        %4403 = vmatprep.subr.mxu0 0.0
        %4404 = vmatpush1.msra.mxu0 0.0
        %4405 = vmatprep.subr.mxu0 0.0
        %4406 = vmatpush1.msra.mxu0 0.0
        %4407 = vmatprep.subr.mxu0 0.0
        %4408 = vmatpush1.msra.mxu0 0.0
        %4409 = vmatprep.subr.mxu0 0.0
        %4410 = vmatpush1.msra.mxu0 0.0
        %4411 = vmatprep.subr.mxu0 0.0
        %4412 = vmatpush1.msra.mxu0 0.0
        %4413 = vmatprep.subr.mxu0 0.0
        %4414 = vmatpush1.msra.mxu0 0.0
        %4415 = vmatprep.subr.mxu0 0.0
        %4416 = vmatpush1.msra.mxu0 0.0
        %4417 = vmatprep.mubr.f32.mxu0 0.0
        %4418 = vmatmul.mubr.f32.gmra.mrb[0].mxu0 %v4299
        %v4419 = vpop.f32.mrb[0].mxu0
        %v4420 = vadd.f32 0.0, %v4419
        %v4421 = vpop.f32.mrb[0].mxu0
        %4422 = vmatprep.mubr.f32.mxu0 0.0
        %4423 = vmatmul.mubr.f32.gmra.mrb[0].mxu0 %v4304
        %v4424 = vpop.f32.mrb[0].mxu0
        %v4425 = vadd.f32 0.0, %v4424
        %v4426 = vpop.f32.mrb[0].mxu0
        %4427 = vmatprep.mubr.f32.mxu0 0.0
        %4428 = vmatmul.mubr.f32.gmra.mrb[0].mxu0 %v4309
        %v4429 = vpop.f32.mrb[0].mxu0
        %v4430 = vadd.f32 0.0, %v4429
        %v4431 = vpop.f32.mrb[0].mxu0
        %4432 = vmatprep.mubr.f32.mxu0 0.0
        %4433 = vmatmul.mubr.f32.gmra.mrb[0].mxu0 %v4314
        %v4434 = vpop.f32.mrb[0].mxu0
        %v4435 = vadd.f32 0.0, %v4434
        %v4436 = vpop.f32.mrb[0].mxu0
        %4437 = vmatprep.mubr.f32.mxu0 0.0
        %4438 = vmatmul.mubr.f32.gmra.mrb[0].mxu0 %v4319
        %v4439 = vpop.f32.mrb[0].mxu0
        %v4440 = vadd.f32 0.0, %v4439
        %v4441 = vpop.f32.mrb[0].mxu0
        %4442 = vmatprep.mubr.f32.mxu0 0.0
        %4443 = vmatmul.mubr.f32.gmra.mrb[0].mxu0 %v4324
        %v4444 = vpop.f32.mrb[0].mxu0
        %v4445 = vadd.f32 0.0, %v4444
        %v4446 = vpop.f32.mrb[0].mxu0
        %4447 = vmatprep.mubr.f32.mxu0 0.0
        %4448 = vmatmul.mubr.f32.gmra.mrb[0].mxu0 %v4329
        %v4449 = vpop.f32.mrb[0].mxu0
        %v4450 = vadd.f32 0.0, %v4449
        %v4451 = vpop.f32.mrb[0].mxu0
        %4452 = vmatprep.mubr.f32.mxu0 0.0
        %4453 = vmatmul.mubr.f32.gmra.mrb[0].mxu0 %v4334
        %v4454 = vpop.f32.mrb[0].mxu0
        %v4455 = vadd.f32 0.0, %v4454
        %v4456 = vpop.f32.mrb[0].mxu0
        %4457 = vdwg.mxu0
        %vm4458 = vcmask 523264
        %4459 = vst.msk [vmem:[%s415] sm:$0xff] %vm4458, %v4420
        %4460 = vst.msk [vmem:[%s415 + $0x8] sm:$0xff] %vm4458, %v4425
        %4461 = vst.msk [vmem:[%s415 + $0x10] sm:$0xff] %vm4458, %v4430
        %4462 = vst.msk [vmem:[%s415 + $0x18] sm:$0xff] %vm4458, %v4435
        %4463 = vst.msk [vmem:[%s415 + $0x20] sm:$0xff] %vm4458, %v4440
        %4464 = vst.msk [vmem:[%s415 + $0x28] sm:$0xff] %vm4458, %v4445
        %4465 = vst.msk [vmem:[%s415 + $0x30] sm:$0xff] %vm4458, %v4450
        %4466 = vst.msk [vmem:[%s415 + $0x38] sm:$0xff] %vm4458, %v4455
        %4475 = vrot.lane.b32.xlu0 %v4420, 64
        %v4476 = vpop.permute.xlu0 %4475
        %4477 = vrot.lane.b32.xlu0 %v4425, 64
        %v4478 = vpop.permute.xlu0 %4477
        %4479 = vrot.lane.b32.xlu0 %v4430, 64
        %v4480 = vpop.permute.xlu0 %4479
        %4481 = vrot.lane.b32.xlu0 %v4435, 64
        %v4482 = vpop.permute.xlu0 %4481
        %4483 = vrot.lane.b32.xlu0 %v4440, 64
        %v4484 = vpop.permute.xlu0 %4483
        %4485 = vrot.lane.b32.xlu0 %v4445, 64
        %v4486 = vpop.permute.xlu0 %4485
        %4487 = vrot.lane.b32.xlu0 %v4450, 64
        %v4488 = vpop.permute.xlu0 %4487
        %4489 = vrot.lane.b32.xlu0 %v4455, 64
        %v4490 = vpop.permute.xlu0 %4489
        %s4499 = scalar_lea.vmem %s415, 64 [#allocation16]
        %4500 = vst.msk [vmem:[%s4499] sm:$0xff] %vm4458, %v4476
        %4501 = vst.msk [vmem:[%s4499 + $0x8] sm:$0xff] %vm4458, %v4478
        %4502 = vst.msk [vmem:[%s4499 + $0x10] sm:$0xff] %vm4458, %v4480
        %4503 = vst.msk [vmem:[%s4499 + $0x18] sm:$0xff] %vm4458, %v4482
        %4504 = vst.msk [vmem:[%s4499 + $0x20] sm:$0xff] %vm4458, %v4484
        %4505 = vst.msk [vmem:[%s4499 + $0x28] sm:$0xff] %vm4458, %v4486
        %4506 = vst.msk [vmem:[%s4499 + $0x30] sm:$0xff] %vm4458, %v4488
        %4507 = vst.msk [vmem:[%s4499 + $0x38] sm:$0xff] %vm4458, %v4490
        %s4508 = sand.u32 %s210, 1
        %s4509 = scalar_lea.sflag [#allocation4], %s4508
        %s4510 = sand.u32 %s210, 1
        %s4511 = smul.addr %s4510, 128
        %s4512 = scalar_lea.vmem [#allocation16], %s4511
        // Predicated region
        $region85: #{tpu_custom_call.1} parent=51 // pred_check
          %p4513 = pneg %p220
        $region86: #{tpu_custom_call.1} parent=51 // pred_check_branch
          %4515 = sbr.rel (%p4513) target = $region88
        $region87: #{tpu_custom_call.1} parent=51 // pred_region
          %s4517 = ssub.s32 2048, 2048
          %4518 = vsyncadd %s4509, %s4517
          %s4519 = smul.addr %s29, 16
          %s4520 = smul.addr %s4519, 128
          %s4521 = scalar_lea.hbm %s8, %s4520
          %s4522 = sshll.u32 %s4512, 4
          %s4523 = int_to_ptr.vmem [resolvable:$true] %s4522
          %4528 = dma.vmem_to_hbm [thread:$0]  %s4523, 2048, %s4521, %s4509, 128, 128, 8
        $region88: #{tpu_custom_call.1} parent=51 // pred_fallthru
          _
      $region52: #{tpu_custom_call.1} parent=5 // pred_fallthru
        _
      %p4529 = scmp.le.s32.totalorder 2, %s24
      // Predicated region
      $region89: #{tpu_custom_call.1} parent=5 // pred_check
        %p4530 = pneg %p4529
      $region90: #{tpu_custom_call.1} parent=5 // pred_check_branch
        %4532 = sbr.rel (%p4530) target = $region92
      $region91: #{tpu_custom_call.1} parent=5 // pred_region
        %s4533 = ssub.s32 %s24, 2
        // Predicated region
        $region93: #{tpu_custom_call.1} parent=91 // pred_check
          %p4534 = pneg %p226
        $region94: #{tpu_custom_call.1} parent=91 // pred_check_branch
          %4536 = sbr.rel (%p4534) target = $region96
        $region95: #{tpu_custom_call.1} parent=91 // pred_region
          %s4537 = sand.u32 %s211, 1
          %s4538 = scalar_lea.sflag [#allocation4], %s4537
          %s4539 = sand.u32 %s211, 1
          %s4540 = smul.addr %s4539, 128
          %s4541 = scalar_lea.vmem [#allocation16], %s4540
          %4542 = dma.done %s4538, 2048
        $region96: #{tpu_custom_call.1} parent=91 // pred_fallthru
          _
      $region92: #{tpu_custom_call.1} parent=5 // pred_fallthru
        _
    $region6: #{tpu_custom_call.1} parent=1 // loop_footer
      %s28 = sadd.s32 1, %s24
    $region7: #{tpu_custom_call.1} parent=1 // loop_footer_branch
      %23 = sbr.rel target = $region3
    $region8: #{tpu_custom_call.1} parent=1 // loop_exit
      _
    %4543 = vsyncpa [#allocation3], 1
    %s4544 = scalar_lea.sflag [#allocation3], 1
    %4545 = vsyncpa %s4544, 1
    %4546 = vsyncpa [#allocation6], 1
    %4547 = vsyncpa [#allocation9], 1
    %4548 = vsyncpa [#allocation12], 1
    %4549 = vsyncpa [#allocation15], 1
    %4550 = vsyncpa [#allocation4], 1
    %s4551 = scalar_lea.sflag [#allocation4], 1
    %4552 = vsyncpa %s4551, 1

</llo_original>
